<compile_context>
chip_gen: v6e
topology: v6e:2x2x1
jax: 0.10.0
libtpu: 0.0.40
codegen_flags: <defaults>
</compile_context>

<pallas_src>
import jax
import jax.numpy as jnp
from jax import lax
from jax.experimental import pallas as pl
from jax.experimental.pallas import tpu as pltpu

# ---------------- synthetic config (small CLIP-vision) ----------------
IMAGE_SIZE = 16
PATCH_SIZE = 8
CHANNELS = 3
HIDDEN = 32
INTERMEDIATE = 64
NUM_LAYERS = 2
NUM_HEADS = 4
HEAD_DIM = HIDDEN // NUM_HEADS
PROJECTION_DIM = 16
NUM_PATCHES = (IMAGE_SIZE // PATCH_SIZE) ** 2
SEQ = NUM_PATCHES + 1                 # +1 class token
SEQ_PAD = 8                           # pad token dim to a multiple of 8 sublanes
PATCH_DIM = CHANNELS * PATCH_SIZE * PATCH_SIZE
LN_EPS = 1e-5


# --------------------------- in-kernel helpers ---------------------------
def _layernorm(x, gamma, beta):
    """x: (..., HIDDEN) f32; one-pass stats (single dependent XLU reduction chain)."""
    mu = jnp.mean(x, axis=-1, keepdims=True)
    msq = jnp.mean(x * x, axis=-1, keepdims=True)
    var = jnp.maximum(msq - mu * mu, 0.0)
    return (x - mu) * lax.rsqrt(var + LN_EPS) * gamma + beta


def _dense(x2, w_bf16, b_f32):
    """2-D dense: bf16 MXU operands, f32 accumulate, f32 bias add."""
    y = jnp.dot(x2.astype(jnp.bfloat16), w_bf16, preferred_element_type=jnp.float32)
    return y + b_f32


# ----------------------------- fused kernel ------------------------------
def _encoder_kernel(
    patches_ref, patch_w_ref, emb_ref, pre_ln_ref,
    ln1_ref, qkv_w_ref, qkv_b_ref, ow_ref, ob_ref,
    ln2_ref, fc1_w_ref, fc1_b_ref, fc2_w_ref, fc2_b_ref,
    post_ln_ref, proj_w_ref, proj_b_ref,
    out_ref,
):
    tb = patches_ref.shape[0]                       # batch items in this tile

    # ---- patch embed + (cls+pos) table + pre-LN (all 2-D) ----
    pe = jnp.dot(
        patches_ref[...].reshape(tb * SEQ_PAD, PATCH_DIM),   # bf16 (zero CLS/pad rows)
        patch_w_ref[...],
        preferred_element_type=jnp.float32,
    )
    x2 = _layernorm(pe + emb_ref[...], pre_ln_ref[0:1, :], pre_ln_ref[1:2, :])

    # ---- key mask, hoisted once (padded key positions) ----
    key_idx = lax.broadcasted_iota(jnp.int32, (1, SEQ_PAD), 1)
    key_mask = jnp.where(key_idx < SEQ, 0.0, -1e30)          # broadcasts over (b, q, k)

    # ---- encoder layers (static loop: all weights already resident in VMEM) ----
    for l in range(NUM_LAYERS):
        # -- self-attention block --
        ln1 = ln1_ref[l]
        hs = _layernorm(x2, ln1[0:1, :], ln1[1:2, :])
        qkv2 = _dense(hs, qkv_w_ref[l], qkv_b_ref[l])         # (TB*S, 3H); q pre-scaled
        qkv3 = qkv2.reshape(tb, SEQ_PAD, 3 * HIDDEN)          # leading-dim split (free)
        ow_l = ow_ref[l]                                      # (HIDDEN, HIDDEN) bf16

        attn2 = None
        for h in range(NUM_HEADS):                            # static unroll
            lo = h * HEAD_DIM
            q_h = qkv3[..., lo:lo + HEAD_DIM].astype(jnp.bfloat16)
            k_h = qkv3[..., HIDDEN + lo:HIDDEN + lo + HEAD_DIM].astype(jnp.bfloat16)
            v_h = qkv3[..., 2 * HIDDEN + lo:2 * HIDDEN + lo + HEAD_DIM].astype(jnp.bfloat16)

            s = jnp.einsum("bqd,bkd->bqk", q_h, k_h,
                           preferred_element_type=jnp.float32)
            s = s + key_mask
            s = s - jnp.max(s, axis=-1, keepdims=True)
            p = jnp.exp(s)
            # approx reciprocal: EUP slot, fine for inference (noted in review)
            p = p * pl.reciprocal(jnp.sum(p, axis=-1, keepdims=True), approx=True)
            ctx = jnp.einsum("bqk,bkd->bqd", p.astype(jnp.bfloat16), v_h,
                             preferred_element_type=jnp.float32)

            # fold head-concat into the out-projection:
            #   concat(heads) @ Wo == sum_h ctx_h @ Wo[h*D:(h+1)*D, :]
            part = jnp.dot(
                ctx.reshape(tb * SEQ_PAD, HEAD_DIM).astype(jnp.bfloat16),
                ow_l[lo:lo + HEAD_DIM, :],
                preferred_element_type=jnp.float32,
            )
            attn2 = part if attn2 is None else attn2 + part

        x2 = attn2 + ob_ref[l] + x2                           # out-proj bias + residual

        # -- MLP block --
        ln2 = ln2_ref[l]
        hs = _layernorm(x2, ln2[0:1, :], ln2[1:2, :])
        h1 = _dense(hs, fc1_w_ref[l], fc1_b_ref[l])
        h1 = h1 * jax.nn.sigmoid(1.702 * h1)                  # QuickGELU (f32)
        x2 = _dense(h1, fc2_w_ref[l], fc2_b_ref[l]) + x2

    # NOTE: padded token rows (SEQ..SEQ_PAD-1) carry junk — only CLS rows are read below.
    # ---- pooled CLS token + post-LN + projection ----
    pooled = x2.reshape(tb, SEQ_PAD, HIDDEN)[:, 0, :]         # (TB, HIDDEN)
    pooled = _layernorm(pooled, post_ln_ref[0:1, :], post_ln_ref[1:2, :])
    out = jnp.dot(pooled.astype(jnp.bfloat16), proj_w_ref[...],
                  preferred_element_type=jnp.float32) + proj_b_ref[...]
    out_ref[...] = out.astype(out_ref.dtype)


# ------------------------------ wrapper ----------------------------------
def _const_spec(shape):
    nd = len(shape)
    return pl.BlockSpec(shape, lambda i, nd=nd: (0,) * nd)


def i2v_encoder_forward(images, pp):
    """images: (B, 3, H, W) NCHW f32 -> (B, PROJECTION_DIM)."""
    b = images.shape[0]
    p = PATCH_SIZE
    nh = IMAGE_SIZE // p

    # Batch tile size: full batch at toy sizes (single grid step).
    # On v7x set TB = cdiv(B, 2) so the "parallel" grid axis shards across both TCs.
    tb = b
    n_tiles = pl.cdiv(b, tb)

    # NCHW -> (B, NUM_PATCHES, C*P*P); pad so row 0 (CLS) and trailing rows are zero.
    patches = images.reshape(b, CHANNELS, nh, p, nh, p)
    patches = patches.transpose(0, 2, 4, 1, 3, 5).reshape(b, NUM_PATCHES, PATCH_DIM)
    patches = jnp.pad(patches, ((0, 0), (1, SEQ_PAD - SEQ), (0, 0))).astype(jnp.bfloat16)

    # Per-position (cls+pos) table tiled to one batch tile -> pure 2-D bias add in-kernel.
    emb_tiled = jnp.tile(pp["emb"], (tb, 1))                  # (TB*SEQ_PAD, HIDDEN) f32

    return pl.pallas_call(
        _encoder_kernel,
        out_shape=jax.ShapeDtypeStruct((b, PROJECTION_DIM), jnp.float32),
        grid=(n_tiles,),
        in_specs=[
            pl.BlockSpec((tb, SEQ_PAD, PATCH_DIM), lambda i: (i, 0, 0)),  # patches (bf16)
            _const_spec((PATCH_DIM, HIDDEN)),                 # patch embedding weight (bf16)
            _const_spec((tb * SEQ_PAD, HIDDEN)),              # tiled cls+pos table (f32)
            _const_spec((2, HIDDEN)),                         # pre-LN [gamma; beta]
            _const_spec((NUM_LAYERS, 2, HIDDEN)),             # ln1
            _const_spec((NUM_LAYERS, HIDDEN, 3 * HIDDEN)),    # fused qkv weight (q pre-scaled, bf16)
            _const_spec((NUM_LAYERS, 1, 3 * HIDDEN)),         # fused qkv bias
            _const_spec((NUM_LAYERS, HIDDEN, HIDDEN)),        # out-proj weight (bf16)
            _const_spec((NUM_LAYERS, 1, HIDDEN)),             # out-proj bias
            _const_spec((NUM_LAYERS, 2, HIDDEN)),             # ln2
            _const_spec((NUM_LAYERS, HIDDEN, INTERMEDIATE)),  # fc1 weight (bf16)
            _const_spec((NUM_LAYERS, 1, INTERMEDIATE)),       # fc1 bias
            _const_spec((NUM_LAYERS, INTERMEDIATE, HIDDEN)),  # fc2 weight (bf16)
            _const_spec((NUM_LAYERS, 1, HIDDEN)),             # fc2 bias
            _const_spec((2, HIDDEN)),                         # post-LN
            _const_spec((HIDDEN, PROJECTION_DIM)),            # projection weight (bf16)
            _const_spec((1, PROJECTION_DIM)),                 # projection bias
        ],
        out_specs=pl.BlockSpec((tb, PROJECTION_DIM), lambda i: (i, 0)),
        compiler_params=pltpu.CompilerParams(
            dimension_semantics=("parallel",),                # batch tiles: v7x megacore ready
            vmem_limit_bytes=32 * 1024 * 1024,
        ),
    )(
        patches, pp["patch_w"], emb_tiled, pp["pre_ln"],
        pp["ln1"], pp["qkv_w"], pp["qkv_b"], pp["o_w"], pp["o_b"],
        pp["ln2"], pp["fc1_w"], pp["fc1_b"], pp["fc2_w"], pp["fc2_b"],
        pp["post_ln"], pp["proj_w"], pp["proj_b"],
    )


# ------------------------- parameter init / prep -------------------------
def init_params(key):
    def nrm(k, shape, scale=0.02):
        return scale * jax.random.normal(k, shape, jnp.float32)

    keys = iter(jax.random.split(key, 16 + NUM_LAYERS * 16))
    p = {
        "patch_w": nrm(next(keys), (PATCH_DIM, HIDDEN)),
        "class_emb": nrm(next(keys), (HIDDEN,)),
        "pos_emb": nrm(next(keys), (SEQ, HIDDEN)),
        "pre_ln_g": jnp.ones((HIDDEN,), jnp.float32),
        "pre_ln_b": jnp.zeros((HIDDEN,), jnp.float32),
        "post_ln_g": jnp.ones((HIDDEN,), jnp.float32),
        "post_ln_b": jnp.zeros((HIDDEN,), jnp.float32),
        "proj_w": nrm(next(keys), (HIDDEN, PROJECTION_DIM)),
        "proj_b": nrm(next(keys), (PROJECTION_DIM,)),
        "layers": [],
    }
    for _ in range(NUM_LAYERS):
        p["layers"].append({
            "ln1_g": jnp.ones((HIDDEN,), jnp.float32),
            "ln1_b": jnp.zeros((HIDDEN,), jnp.float32),
            "q_w": nrm(next(keys), (HIDDEN, HIDDEN)),
            "q_b": nrm(next(keys), (HIDDEN,)),
            "k_w": nrm(next(keys), (HIDDEN, HIDDEN)),
            "k_b": nrm(next(keys), (HIDDEN,)),
            "v_w": nrm(next(keys), (HIDDEN, HIDDEN)),
            "v_b": nrm(next(keys), (HIDDEN,)),
            "o_w": nrm(next(keys), (HIDDEN, HIDDEN)),
            "o_b": nrm(next(keys), (HIDDEN,)),
            "ln2_g": jnp.ones((HIDDEN,), jnp.float32),
            "ln2_b": jnp.zeros((HIDDEN,), jnp.float32),
            "fc1_w": nrm(next(keys), (HIDDEN, INTERMEDIATE)),
            "fc1_b": nrm(next(keys), (INTERMEDIATE,)),
            "fc2_w": nrm(next(keys), (INTERMEDIATE, HIDDEN)),
            "fc2_b": nrm(next(keys), (HIDDEN,)),
        })
    return p


def prepare_params(params):
    """Stack per-layer weights along a leading layer dim, fuse QKV, fold the attention
    scale into q, precompute the (cls + pos) embedding table, and store MXU weights bf16."""
    scale = HEAD_DIM ** -0.5
    bf = jnp.bfloat16

    emb = jnp.concatenate(
        [(params["class_emb"] + params["pos_emb"][0])[None, :], params["pos_emb"][1:]],
        axis=0)
    emb = jnp.pad(emb, ((0, SEQ_PAD - SEQ), (0, 0)))          # (SEQ_PAD, HIDDEN) f32

    def stack(fn):
        return jnp.stack([fn(lp) for lp in params["layers"]], axis=0)

    return {
        "patch_w": params["patch_w"].astype(bf),
        "emb": emb,
        "pre_ln": jnp.stack([params["pre_ln_g"], params["pre_ln_b"]]),
        "post_ln": jnp.stack([params["post_ln_g"], params["post_ln_b"]]),
        "proj_w": params["proj_w"].astype(bf),
        "proj_b": params["proj_b"].reshape(1, PROJECTION_DIM),
        "ln1": stack(lambda lp: jnp.stack([lp["ln1_g"], lp["ln1_b"]])),
        "qkv_w": stack(lambda lp: jnp.concatenate(
            [lp["q_w"] * scale, lp["k_w"], lp["v_w"]], axis=1)).astype(bf),
        "qkv_b": stack(lambda lp: jnp.concatenate(
            [lp["q_b"] * scale, lp["k_b"], lp["v_b"]], axis=0).reshape(1, 3 * HIDDEN)),
        "o_w": stack(lambda lp: lp["o_w"]).astype(bf),
        "o_b": stack(lambda lp: lp["o_b"].reshape(1, HIDDEN)),
        "ln2": stack(lambda lp: jnp.stack([lp["ln2_g"], lp["ln2_b"]])),
        "fc1_w": stack(lambda lp: lp["fc1_w"]).astype(bf),
        "fc1_b": stack(lambda lp: lp["fc1_b"].reshape(1, INTERMEDIATE)),
        "fc2_w": stack(lambda lp: lp["fc2_w"]).astype(bf),
        "fc2_b": stack(lambda lp: lp["fc2_b"].reshape(1, HIDDEN)),
    }


# -------------------------------- main ------------------------------------
if __name__ == "__main__":
    key = jax.random.PRNGKey(0)
    pkey, xkey = jax.random.split(key)
    params = init_params(pkey)
    prepped = prepare_params(params)
    images = jax.random.normal(xkey, (2, CHANNELS, IMAGE_SIZE, IMAGE_SIZE), jnp.float32)

    fwd = jax.jit(i2v_encoder_forward)
    out = jax.block_until_ready(fwd(images, prepped))
    assert out.shape == (2, PROJECTION_DIM), out.shape
    assert bool(jnp.all(jnp.isfinite(out)))
    print("KERNEL_OK")
</pallas_src>

<mosaic_0001>
module attributes {stable_mosaic.version = 11 : i64} {
  func.func @_encoder_kernel(%arg0: i32, %arg1: memref<2x8x192xbf16, #tpu.memory_space<vmem>>, %arg2: memref<192x32xbf16, #tpu.memory_space<vmem>>, %arg3: memref<16x32xf32, #tpu.memory_space<vmem>>, %arg4: memref<2x32xf32, #tpu.memory_space<vmem>>, %arg5: memref<2x2x32xf32, #tpu.memory_space<vmem>>, %arg6: memref<2x32x96xbf16, #tpu.memory_space<vmem>>, %arg7: memref<2x1x96xf32, #tpu.memory_space<vmem>>, %arg8: memref<2x32x32xbf16, #tpu.memory_space<vmem>>, %arg9: memref<2x1x32xf32, #tpu.memory_space<vmem>>, %arg10: memref<2x2x32xf32, #tpu.memory_space<vmem>>, %arg11: memref<2x32x64xbf16, #tpu.memory_space<vmem>>, %arg12: memref<2x1x64xf32, #tpu.memory_space<vmem>>, %arg13: memref<2x64x32xbf16, #tpu.memory_space<vmem>>, %arg14: memref<2x1x32xf32, #tpu.memory_space<vmem>>, %arg15: memref<2x32xf32, #tpu.memory_space<vmem>>, %arg16: memref<32x16xbf16, #tpu.memory_space<vmem>>, %arg17: memref<1x16xf32, #tpu.memory_space<vmem>>, %arg18: memref<2x16xf32, #tpu.memory_space<vmem>>) attributes {dimension_semantics = [#tpu.dimension_semantics<parallel>], iteration_bounds = array<i64: 1>, scalar_prefetch = 0 : i64, scratch_operands = 0 : i64, tpu.core_type = #tpu.core_type<tc>, window_params = [{transform_indices = @transform_0, window_bounds = array<i64: 2, 8, 192>}, {pipeline_mode = #tpu.pipeline_mode<synchronous>, transform_indices = @transform_1, window_bounds = array<i64: 192, 32>}, {pipeline_mode = #tpu.pipeline_mode<synchronous>, transform_indices = @transform_2, window_bounds = array<i64: 16, 32>}, {pipeline_mode = #tpu.pipeline_mode<synchronous>, transform_indices = @transform_3, window_bounds = array<i64: 2, 32>}, {pipeline_mode = #tpu.pipeline_mode<synchronous>, transform_indices = @transform_4, window_bounds = array<i64: 2, 2, 32>}, {pipeline_mode = #tpu.pipeline_mode<synchronous>, transform_indices = @transform_5, window_bounds = array<i64: 2, 32, 96>}, {pipeline_mode = #tpu.pipeline_mode<synchronous>, transform_indices = @transform_6, window_bounds = array<i64: 2, 1, 96>}, {pipeline_mode = #tpu.pipeline_mode<synchronous>, transform_indices = @transform_7, window_bounds = array<i64: 2, 32, 32>}, {pipeline_mode = #tpu.pipeline_mode<synchronous>, transform_indices = @transform_8, window_bounds = array<i64: 2, 1, 32>}, {pipeline_mode = #tpu.pipeline_mode<synchronous>, transform_indices = @transform_9, window_bounds = array<i64: 2, 2, 32>}, {pipeline_mode = #tpu.pipeline_mode<synchronous>, transform_indices = @transform_10, window_bounds = array<i64: 2, 32, 64>}, {pipeline_mode = #tpu.pipeline_mode<synchronous>, transform_indices = @transform_11, window_bounds = array<i64: 2, 1, 64>}, {pipeline_mode = #tpu.pipeline_mode<synchronous>, transform_indices = @transform_12, window_bounds = array<i64: 2, 64, 32>}, {pipeline_mode = #tpu.pipeline_mode<synchronous>, transform_indices = @transform_13, window_bounds = array<i64: 2, 1, 32>}, {pipeline_mode = #tpu.pipeline_mode<synchronous>, transform_indices = @transform_14, window_bounds = array<i64: 2, 32>}, {pipeline_mode = #tpu.pipeline_mode<synchronous>, transform_indices = @transform_15, window_bounds = array<i64: 32, 16>}, {pipeline_mode = #tpu.pipeline_mode<synchronous>, transform_indices = @transform_16, window_bounds = array<i64: 1, 16>}, {transform_indices = @transform_17, window_bounds = array<i64: 2, 16>}]} {
    %c0 = arith.constant 0 : index
    %c0_0 = arith.constant 0 : index
    %c0_1 = arith.constant 0 : index
    %0 = vector.load %arg1[%c0, %c0_0, %c0_1] : memref<2x8x192xbf16, #tpu.memory_space<vmem>>, vector<2x8x192xbf16>
    %1 = vector.shape_cast %0 : vector<2x8x192xbf16> to vector<16x192xbf16>
    %c0_2 = arith.constant 0 : index
    %c0_3 = arith.constant 0 : index
    %2 = vector.load %arg2[%c0_2, %c0_3] : memref<192x32xbf16, #tpu.memory_space<vmem>>, vector<192x32xbf16>
    %cst = arith.constant dense<0.000000e+00> : vector<16x32xf32>
    %3 = tpu.matmul %1, %2, %cst {dimension_numbers = #tpu.dot_dimension_numbers<[1], [0], [0], [1], [0, 0, 1, 1], [], []>} : vector<16x192xbf16>, vector<192x32xbf16>, vector<16x32xf32> -> vector<16x32xf32>
    %c0_4 = arith.constant 0 : index
    %c0_5 = arith.constant 0 : index
    %4 = vector.load %arg3[%c0_4, %c0_5] : memref<16x32xf32, #tpu.memory_space<vmem>>, vector<16x32xf32>
    %5 = arith.addf %3, %4 : vector<16x32xf32>
    %c0_6 = arith.constant 0 : index
    %c0_7 = arith.constant 0 : index
    %6 = vector.load %arg4[%c0_6, %c0_7] : memref<2x32xf32, #tpu.memory_space<vmem>>, vector<1x32xf32>
    %c1 = arith.constant 1 : index
    %c0_8 = arith.constant 0 : index
    %7 = vector.load %arg4[%c1, %c0_8] : memref<2x32xf32, #tpu.memory_space<vmem>>, vector<1x32xf32>
    %cst_9 = arith.constant dense<0.000000e+00> : vector<16xf32>
    %8 = vector.multi_reduction <add>, %5, %cst_9 [1] : vector<16x32xf32> to vector<16xf32>
    %9 = vector.shape_cast %8 : vector<16xf32> to vector<16x1xf32>
    %cst_10 = arith.constant 3.200000e+01 : f32
    %10 = vector.broadcast %cst_10 : f32 to vector<16x1xf32>
    %11 = arith.divf %9, %10 : vector<16x1xf32>
    %12 = arith.mulf %5, %5 : vector<16x32xf32>
    %cst_11 = arith.constant dense<0.000000e+00> : vector<16xf32>
    %13 = vector.multi_reduction <add>, %12, %cst_11 [1] : vector<16x32xf32> to vector<16xf32>
    %14 = vector.shape_cast %13 : vector<16xf32> to vector<16x1xf32>
    %cst_12 = arith.constant 3.200000e+01 : f32
    %15 = vector.broadcast %cst_12 : f32 to vector<16x1xf32>
    %16 = arith.divf %14, %15 : vector<16x1xf32>
    %17 = arith.mulf %11, %11 : vector<16x1xf32>
    %18 = arith.subf %16, %17 : vector<16x1xf32>
    %cst_13 = arith.constant 0.000000e+00 : f32
    %19 = vector.broadcast %cst_13 : f32 to vector<16x1xf32>
    %20 = arith.maximumf %18, %19 : vector<16x1xf32>
    %21 = vector.broadcast %11 : vector<16x1xf32> to vector<16x32xf32>
    %22 = arith.subf %5, %21 : vector<16x32xf32>
    %cst_14 = arith.constant 9.99999974E-6 : f32
    %23 = vector.broadcast %cst_14 : f32 to vector<16x1xf32>
    %24 = arith.addf %20, %23 : vector<16x1xf32>
    %25 = math.rsqrt %24 : vector<16x1xf32>
    %26 = vector.broadcast %25 : vector<16x1xf32> to vector<16x32xf32>
    %27 = arith.mulf %22, %26 : vector<16x32xf32>
    %28 = vector.broadcast %6 : vector<1x32xf32> to vector<16x32xf32>
    %29 = arith.mulf %27, %28 : vector<16x32xf32>
    %30 = vector.broadcast %7 : vector<1x32xf32> to vector<16x32xf32>
    %31 = arith.addf %29, %30 : vector<16x32xf32>
    %32 = tpu.iota {dimensions = array<i32: 1>} : vector<1x8xi32>
    %c5_i32 = arith.constant 5 : i32
    %33 = vector.broadcast %c5_i32 : i32 to vector<1x8xi32>
    %34 = arith.cmpi slt, %32, %33 : vector<1x8xi32>
    %cst_15 = arith.constant 0.000000e+00 : f32
    %cst_16 = arith.constant -1.000000e+30 : f32
    %35 = vector.broadcast %cst_15 : f32 to vector<1x8xf32>
    %36 = vector.broadcast %cst_16 : f32 to vector<1x8xf32>
    %37 = arith.select %34, %35, %36 : vector<1x8xi1>, vector<1x8xf32>
    %c0_17 = arith.constant 0 : index
    %c0_18 = arith.constant 0 : index
    %c0_19 = arith.constant 0 : index
    %38 = vector.load %arg5[%c0_17, %c0_18, %c0_19] : memref<2x2x32xf32, #tpu.memory_space<vmem>>, vector<1x2x32xf32>
    %39 = vector.shape_cast %38 : vector<1x2x32xf32> to vector<2x32xf32>
    %40 = vector.extract_strided_slice %39 {offsets = [0, 0], sizes = [1, 32], strides = [1, 1]} : vector<2x32xf32> to vector<1x32xf32>
    %41 = vector.extract_strided_slice %39 {offsets = [1, 0], sizes = [1, 32], strides = [1, 1]} : vector<2x32xf32> to vector<1x32xf32>
    %cst_20 = arith.constant dense<0.000000e+00> : vector<16xf32>
    %42 = vector.multi_reduction <add>, %31, %cst_20 [1] : vector<16x32xf32> to vector<16xf32>
    %43 = vector.shape_cast %42 : vector<16xf32> to vector<16x1xf32>
    %cst_21 = arith.constant 3.200000e+01 : f32
    %44 = vector.broadcast %cst_21 : f32 to vector<16x1xf32>
    %45 = arith.divf %43, %44 : vector<16x1xf32>
    %46 = arith.mulf %31, %31 : vector<16x32xf32>
    %cst_22 = arith.constant dense<0.000000e+00> : vector<16xf32>
    %47 = vector.multi_reduction <add>, %46, %cst_22 [1] : vector<16x32xf32> to vector<16xf32>
    %48 = vector.shape_cast %47 : vector<16xf32> to vector<16x1xf32>
    %cst_23 = arith.constant 3.200000e+01 : f32
    %49 = vector.broadcast %cst_23 : f32 to vector<16x1xf32>
    %50 = arith.divf %48, %49 : vector<16x1xf32>
    %51 = arith.mulf %45, %45 : vector<16x1xf32>
    %52 = arith.subf %50, %51 : vector<16x1xf32>
    %cst_24 = arith.constant 0.000000e+00 : f32
    %53 = vector.broadcast %cst_24 : f32 to vector<16x1xf32>
    %54 = arith.maximumf %52, %53 : vector<16x1xf32>
    %55 = vector.broadcast %45 : vector<16x1xf32> to vector<16x32xf32>
    %56 = arith.subf %31, %55 : vector<16x32xf32>
    %cst_25 = arith.constant 9.99999974E-6 : f32
    %57 = vector.broadcast %cst_25 : f32 to vector<16x1xf32>
    %58 = arith.addf %54, %57 : vector<16x1xf32>
    %59 = math.rsqrt %58 : vector<16x1xf32>
    %60 = vector.broadcast %59 : vector<16x1xf32> to vector<16x32xf32>
    %61 = arith.mulf %56, %60 : vector<16x32xf32>
    %62 = vector.broadcast %40 : vector<1x32xf32> to vector<16x32xf32>
    %63 = arith.mulf %61, %62 : vector<16x32xf32>
    %64 = vector.broadcast %41 : vector<1x32xf32> to vector<16x32xf32>
    %65 = arith.addf %63, %64 : vector<16x32xf32>
    %c0_26 = arith.constant 0 : index
    %c0_27 = arith.constant 0 : index
    %c0_28 = arith.constant 0 : index
    %66 = vector.load %arg6[%c0_26, %c0_27, %c0_28] : memref<2x32x96xbf16, #tpu.memory_space<vmem>>, vector<1x32x96xbf16>
    %67 = vector.shape_cast %66 : vector<1x32x96xbf16> to vector<32x96xbf16>
    %c0_29 = arith.constant 0 : index
    %c0_30 = arith.constant 0 : index
    %c0_31 = arith.constant 0 : index
    %68 = vector.load %arg7[%c0_29, %c0_30, %c0_31] : memref<2x1x96xf32, #tpu.memory_space<vmem>>, vector<1x1x96xf32>
    %69 = vector.shape_cast %68 : vector<1x1x96xf32> to vector<1x96xf32>
    %70 = arith.truncf %65 : vector<16x32xf32> to vector<16x32xbf16>
    %cst_32 = arith.constant dense<0.000000e+00> : vector<16x96xf32>
    %71 = tpu.matmul %70, %67, %cst_32 {dimension_numbers = #tpu.dot_dimension_numbers<[1], [0], [0], [1], [0, 0, 1, 1], [], []>} : vector<16x32xbf16>, vector<32x96xbf16>, vector<16x96xf32> -> vector<16x96xf32>
    %72 = vector.broadcast %69 : vector<1x96xf32> to vector<16x96xf32>
    %73 = arith.addf %71, %72 : vector<16x96xf32>
    %74 = vector.shape_cast %73 : vector<16x96xf32> to vector<2x8x96xf32>
    %c0_33 = arith.constant 0 : index
    %c0_34 = arith.constant 0 : index
    %c0_35 = arith.constant 0 : index
    %75 = vector.load %arg8[%c0_33, %c0_34, %c0_35] : memref<2x32x32xbf16, #tpu.memory_space<vmem>>, vector<1x32x32xbf16>
    %76 = vector.shape_cast %75 : vector<1x32x32xbf16> to vector<32x32xbf16>
    %77 = vector.extract_strided_slice %74 {offsets = [0, 0, 0], sizes = [2, 8, 8], strides = [1, 1, 1]} : vector<2x8x96xf32> to vector<2x8x8xf32>
    %78 = arith.truncf %77 : vector<2x8x8xf32> to vector<2x8x8xbf16>
    %79 = vector.extract_strided_slice %74 {offsets = [0, 0, 32], sizes = [2, 8, 8], strides = [1, 1, 1]} : vector<2x8x96xf32> to vector<2x8x8xf32>
    %80 = arith.truncf %79 : vector<2x8x8xf32> to vector<2x8x8xbf16>
    %81 = vector.extract_strided_slice %74 {offsets = [0, 0, 64], sizes = [2, 8, 8], strides = [1, 1, 1]} : vector<2x8x96xf32> to vector<2x8x8xf32>
    %82 = arith.truncf %81 : vector<2x8x8xf32> to vector<2x8x8xbf16>
    "tpu.trace_start"() <{level = 10 : i32, message = "bqd,bkd->bqk"}> : () -> ()
    %cst_36 = arith.constant dense<0.000000e+00> : vector<2x8x8xf32>
    %83 = tpu.matmul %78, %80, %cst_36 {dimension_numbers = #tpu.dot_dimension_numbers<[2], [2], [1], [1], [0, 0, 0, 1, 1, 1], [0], [0]>} : vector<2x8x8xbf16>, vector<2x8x8xbf16>, vector<2x8x8xf32> -> vector<2x8x8xf32>
    "tpu.trace_stop"() : () -> ()
    %84 = vector.shape_cast %37 : vector<1x8xf32> to vector<1x1x8xf32>
    %85 = vector.broadcast %84 : vector<1x1x8xf32> to vector<2x8x8xf32>
    %86 = arith.addf %83, %85 : vector<2x8x8xf32>
    %cst_37 = arith.constant dense<0xFF800000> : vector<2x8xf32>
    %87 = vector.multi_reduction <maximumf>, %86, %cst_37 [2] : vector<2x8x8xf32> to vector<2x8xf32>
    %88 = vector.shape_cast %87 : vector<2x8xf32> to vector<2x8x1xf32>
    %89 = vector.broadcast %88 : vector<2x8x1xf32> to vector<2x8x8xf32>
    %90 = arith.subf %86, %89 : vector<2x8x8xf32>
    %91 = math.exp %90 : vector<2x8x8xf32>
    %cst_38 = arith.constant dense<0.000000e+00> : vector<2x8xf32>
    %92 = vector.multi_reduction <add>, %91, %cst_38 [2] : vector<2x8x8xf32> to vector<2x8xf32>
    %93 = vector.shape_cast %92 : vector<2x8xf32> to vector<2x8x1xf32>
    %94 = tpu.reciprocal %93 {approx = true} : vector<2x8x1xf32> -> vector<2x8x1xf32>
    %95 = vector.broadcast %94 : vector<2x8x1xf32> to vector<2x8x8xf32>
    %96 = arith.mulf %91, %95 : vector<2x8x8xf32>
    %97 = arith.truncf %96 : vector<2x8x8xf32> to vector<2x8x8xbf16>
    "tpu.trace_start"() <{level = 10 : i32, message = "bqk,bkd->bqd"}> : () -> ()
    %cst_39 = arith.constant dense<0.000000e+00> : vector<2x8x8xf32>
    %98 = tpu.matmul %97, %82, %cst_39 {dimension_numbers = #tpu.dot_dimension_numbers<[2], [1], [1], [2], [0, 0, 0, 1, 1, 2], [0], [0]>} : vector<2x8x8xbf16>, vector<2x8x8xbf16>, vector<2x8x8xf32> -> vector<2x8x8xf32>
    "tpu.trace_stop"() : () -> ()
    %99 = vector.shape_cast %98 : vector<2x8x8xf32> to vector<16x8xf32>
    %100 = arith.truncf %99 : vector<16x8xf32> to vector<16x8xbf16>
    %101 = vector.extract_strided_slice %76 {offsets = [0, 0], sizes = [8, 32], strides = [1, 1]} : vector<32x32xbf16> to vector<8x32xbf16>
    %cst_40 = arith.constant dense<0.000000e+00> : vector<16x32xf32>
    %102 = tpu.matmul %100, %101, %cst_40 {dimension_numbers = #tpu.dot_dimension_numbers<[1], [0], [0], [1], [0, 0, 1, 1], [], []>} : vector<16x8xbf16>, vector<8x32xbf16>, vector<16x32xf32> -> vector<16x32xf32>
    %103 = vector.extract_strided_slice %74 {offsets = [0, 0, 8], sizes = [2, 8, 8], strides = [1, 1, 1]} : vector<2x8x96xf32> to vector<2x8x8xf32>
    %104 = arith.truncf %103 : vector<2x8x8xf32> to vector<2x8x8xbf16>
    %105 = vector.extract_strided_slice %74 {offsets = [0, 0, 40], sizes = [2, 8, 8], strides = [1, 1, 1]} : vector<2x8x96xf32> to vector<2x8x8xf32>
    %106 = arith.truncf %105 : vector<2x8x8xf32> to vector<2x8x8xbf16>
    %107 = vector.extract_strided_slice %74 {offsets = [0, 0, 72], sizes = [2, 8, 8], strides = [1, 1, 1]} : vector<2x8x96xf32> to vector<2x8x8xf32>
    %108 = arith.truncf %107 : vector<2x8x8xf32> to vector<2x8x8xbf16>
    "tpu.trace_start"() <{level = 10 : i32, message = "bqd,bkd->bqk"}> : () -> ()
    %cst_41 = arith.constant dense<0.000000e+00> : vector<2x8x8xf32>
    %109 = tpu.matmul %104, %106, %cst_41 {dimension_numbers = #tpu.dot_dimension_numbers<[2], [2], [1], [1], [0, 0, 0, 1, 1, 1], [0], [0]>} : vector<2x8x8xbf16>, vector<2x8x8xbf16>, vector<2x8x8xf32> -> vector<2x8x8xf32>
    "tpu.trace_stop"() : () -> ()
    %110 = vector.shape_cast %37 : vector<1x8xf32> to vector<1x1x8xf32>
    %111 = vector.broadcast %110 : vector<1x1x8xf32> to vector<2x8x8xf32>
    %112 = arith.addf %109, %111 : vector<2x8x8xf32>
    %cst_42 = arith.constant dense<0xFF800000> : vector<2x8xf32>
    %113 = vector.multi_reduction <maximumf>, %112, %cst_42 [2] : vector<2x8x8xf32> to vector<2x8xf32>
    %114 = vector.shape_cast %113 : vector<2x8xf32> to vector<2x8x1xf32>
    %115 = vector.broadcast %114 : vector<2x8x1xf32> to vector<2x8x8xf32>
    %116 = arith.subf %112, %115 : vector<2x8x8xf32>
    %117 = math.exp %116 : vector<2x8x8xf32>
    %cst_43 = arith.constant dense<0.000000e+00> : vector<2x8xf32>
    %118 = vector.multi_reduction <add>, %117, %cst_43 [2] : vector<2x8x8xf32> to vector<2x8xf32>
    %119 = vector.shape_cast %118 : vector<2x8xf32> to vector<2x8x1xf32>
    %120 = tpu.reciprocal %119 {approx = true} : vector<2x8x1xf32> -> vector<2x8x1xf32>
    %121 = vector.broadcast %120 : vector<2x8x1xf32> to vector<2x8x8xf32>
    %122 = arith.mulf %117, %121 : vector<2x8x8xf32>
    %123 = arith.truncf %122 : vector<2x8x8xf32> to vector<2x8x8xbf16>
    "tpu.trace_start"() <{level = 10 : i32, message = "bqk,bkd->bqd"}> : () -> ()
    %cst_44 = arith.constant dense<0.000000e+00> : vector<2x8x8xf32>
    %124 = tpu.matmul %123, %108, %cst_44 {dimension_numbers = #tpu.dot_dimension_numbers<[2], [1], [1], [2], [0, 0, 0, 1, 1, 2], [0], [0]>} : vector<2x8x8xbf16>, vector<2x8x8xbf16>, vector<2x8x8xf32> -> vector<2x8x8xf32>
    "tpu.trace_stop"() : () -> ()
    %125 = vector.shape_cast %124 : vector<2x8x8xf32> to vector<16x8xf32>
    %126 = arith.truncf %125 : vector<16x8xf32> to vector<16x8xbf16>
    %127 = vector.extract_strided_slice %76 {offsets = [8, 0], sizes = [8, 32], strides = [1, 1]} : vector<32x32xbf16> to vector<8x32xbf16>
    %cst_45 = arith.constant dense<0.000000e+00> : vector<16x32xf32>
    %128 = tpu.matmul %126, %127, %cst_45 {dimension_numbers = #tpu.dot_dimension_numbers<[1], [0], [0], [1], [0, 0, 1, 1], [], []>} : vector<16x8xbf16>, vector<8x32xbf16>, vector<16x32xf32> -> vector<16x32xf32>
    %129 = arith.addf %102, %128 : vector<16x32xf32>
    %130 = vector.extract_strided_slice %74 {offsets = [0, 0, 16], sizes = [2, 8, 8], strides = [1, 1, 1]} : vector<2x8x96xf32> to vector<2x8x8xf32>
    %131 = arith.truncf %130 : vector<2x8x8xf32> to vector<2x8x8xbf16>
    %132 = vector.extract_strided_slice %74 {offsets = [0, 0, 48], sizes = [2, 8, 8], strides = [1, 1, 1]} : vector<2x8x96xf32> to vector<2x8x8xf32>
    %133 = arith.truncf %132 : vector<2x8x8xf32> to vector<2x8x8xbf16>
    %134 = vector.extract_strided_slice %74 {offsets = [0, 0, 80], sizes = [2, 8, 8], strides = [1, 1, 1]} : vector<2x8x96xf32> to vector<2x8x8xf32>
    %135 = arith.truncf %134 : vector<2x8x8xf32> to vector<2x8x8xbf16>
    "tpu.trace_start"() <{level = 10 : i32, message = "bqd,bkd->bqk"}> : () -> ()
    %cst_46 = arith.constant dense<0.000000e+00> : vector<2x8x8xf32>
    %136 = tpu.matmul %131, %133, %cst_46 {dimension_numbers = #tpu.dot_dimension_numbers<[2], [2], [1], [1], [0, 0, 0, 1, 1, 1], [0], [0]>} : vector<2x8x8xbf16>, vector<2x8x8xbf16>, vector<2x8x8xf32> -> vector<2x8x8xf32>
    "tpu.trace_stop"() : () -> ()
    %137 = vector.shape_cast %37 : vector<1x8xf32> to vector<1x1x8xf32>
    %138 = vector.broadcast %137 : vector<1x1x8xf32> to vector<2x8x8xf32>
    %139 = arith.addf %136, %138 : vector<2x8x8xf32>
    %cst_47 = arith.constant dense<0xFF800000> : vector<2x8xf32>
    %140 = vector.multi_reduction <maximumf>, %139, %cst_47 [2] : vector<2x8x8xf32> to vector<2x8xf32>
    %141 = vector.shape_cast %140 : vector<2x8xf32> to vector<2x8x1xf32>
    %142 = vector.broadcast %141 : vector<2x8x1xf32> to vector<2x8x8xf32>
    %143 = arith.subf %139, %142 : vector<2x8x8xf32>
    %144 = math.exp %143 : vector<2x8x8xf32>
    %cst_48 = arith.constant dense<0.000000e+00> : vector<2x8xf32>
    %145 = vector.multi_reduction <add>, %144, %cst_48 [2] : vector<2x8x8xf32> to vector<2x8xf32>
    %146 = vector.shape_cast %145 : vector<2x8xf32> to vector<2x8x1xf32>
    %147 = tpu.reciprocal %146 {approx = true} : vector<2x8x1xf32> -> vector<2x8x1xf32>
    %148 = vector.broadcast %147 : vector<2x8x1xf32> to vector<2x8x8xf32>
    %149 = arith.mulf %144, %148 : vector<2x8x8xf32>
    %150 = arith.truncf %149 : vector<2x8x8xf32> to vector<2x8x8xbf16>
    "tpu.trace_start"() <{level = 10 : i32, message = "bqk,bkd->bqd"}> : () -> ()
    %cst_49 = arith.constant dense<0.000000e+00> : vector<2x8x8xf32>
    %151 = tpu.matmul %150, %135, %cst_49 {dimension_numbers = #tpu.dot_dimension_numbers<[2], [1], [1], [2], [0, 0, 0, 1, 1, 2], [0], [0]>} : vector<2x8x8xbf16>, vector<2x8x8xbf16>, vector<2x8x8xf32> -> vector<2x8x8xf32>
    "tpu.trace_stop"() : () -> ()
    %152 = vector.shape_cast %151 : vector<2x8x8xf32> to vector<16x8xf32>
    %153 = arith.truncf %152 : vector<16x8xf32> to vector<16x8xbf16>
    %154 = vector.extract_strided_slice %76 {offsets = [16, 0], sizes = [8, 32], strides = [1, 1]} : vector<32x32xbf16> to vector<8x32xbf16>
    %cst_50 = arith.constant dense<0.000000e+00> : vector<16x32xf32>
    %155 = tpu.matmul %153, %154, %cst_50 {dimension_numbers = #tpu.dot_dimension_numbers<[1], [0], [0], [1], [0, 0, 1, 1], [], []>} : vector<16x8xbf16>, vector<8x32xbf16>, vector<16x32xf32> -> vector<16x32xf32>
    %156 = arith.addf %129, %155 : vector<16x32xf32>
    %157 = vector.extract_strided_slice %74 {offsets = [0, 0, 24], sizes = [2, 8, 8], strides = [1, 1, 1]} : vector<2x8x96xf32> to vector<2x8x8xf32>
    %158 = arith.truncf %157 : vector<2x8x8xf32> to vector<2x8x8xbf16>
    %159 = vector.extract_strided_slice %74 {offsets = [0, 0, 56], sizes = [2, 8, 8], strides = [1, 1, 1]} : vector<2x8x96xf32> to vector<2x8x8xf32>
    %160 = arith.truncf %159 : vector<2x8x8xf32> to vector<2x8x8xbf16>
    %161 = vector.extract_strided_slice %74 {offsets = [0, 0, 88], sizes = [2, 8, 8], strides = [1, 1, 1]} : vector<2x8x96xf32> to vector<2x8x8xf32>
    %162 = arith.truncf %161 : vector<2x8x8xf32> to vector<2x8x8xbf16>
    "tpu.trace_start"() <{level = 10 : i32, message = "bqd,bkd->bqk"}> : () -> ()
    %cst_51 = arith.constant dense<0.000000e+00> : vector<2x8x8xf32>
    %163 = tpu.matmul %158, %160, %cst_51 {dimension_numbers = #tpu.dot_dimension_numbers<[2], [2], [1], [1], [0, 0, 0, 1, 1, 1], [0], [0]>} : vector<2x8x8xbf16>, vector<2x8x8xbf16>, vector<2x8x8xf32> -> vector<2x8x8xf32>
    "tpu.trace_stop"() : () -> ()
    %164 = vector.shape_cast %37 : vector<1x8xf32> to vector<1x1x8xf32>
    %165 = vector.broadcast %164 : vector<1x1x8xf32> to vector<2x8x8xf32>
    %166 = arith.addf %163, %165 : vector<2x8x8xf32>
    %cst_52 = arith.constant dense<0xFF800000> : vector<2x8xf32>
    %167 = vector.multi_reduction <maximumf>, %166, %cst_52 [2] : vector<2x8x8xf32> to vector<2x8xf32>
    %168 = vector.shape_cast %167 : vector<2x8xf32> to vector<2x8x1xf32>
    %169 = vector.broadcast %168 : vector<2x8x1xf32> to vector<2x8x8xf32>
    %170 = arith.subf %166, %169 : vector<2x8x8xf32>
    %171 = math.exp %170 : vector<2x8x8xf32>
    %cst_53 = arith.constant dense<0.000000e+00> : vector<2x8xf32>
    %172 = vector.multi_reduction <add>, %171, %cst_53 [2] : vector<2x8x8xf32> to vector<2x8xf32>
    %173 = vector.shape_cast %172 : vector<2x8xf32> to vector<2x8x1xf32>
    %174 = tpu.reciprocal %173 {approx = true} : vector<2x8x1xf32> -> vector<2x8x1xf32>
    %175 = vector.broadcast %174 : vector<2x8x1xf32> to vector<2x8x8xf32>
    %176 = arith.mulf %171, %175 : vector<2x8x8xf32>
    %177 = arith.truncf %176 : vector<2x8x8xf32> to vector<2x8x8xbf16>
    "tpu.trace_start"() <{level = 10 : i32, message = "bqk,bkd->bqd"}> : () -> ()
    %cst_54 = arith.constant dense<0.000000e+00> : vector<2x8x8xf32>
    %178 = tpu.matmul %177, %162, %cst_54 {dimension_numbers = #tpu.dot_dimension_numbers<[2], [1], [1], [2], [0, 0, 0, 1, 1, 2], [0], [0]>} : vector<2x8x8xbf16>, vector<2x8x8xbf16>, vector<2x8x8xf32> -> vector<2x8x8xf32>
    "tpu.trace_stop"() : () -> ()
    %179 = vector.shape_cast %178 : vector<2x8x8xf32> to vector<16x8xf32>
    %180 = arith.truncf %179 : vector<16x8xf32> to vector<16x8xbf16>
    %181 = vector.extract_strided_slice %76 {offsets = [24, 0], sizes = [8, 32], strides = [1, 1]} : vector<32x32xbf16> to vector<8x32xbf16>
    %cst_55 = arith.constant dense<0.000000e+00> : vector<16x32xf32>
    %182 = tpu.matmul %180, %181, %cst_55 {dimension_numbers = #tpu.dot_dimension_numbers<[1], [0], [0], [1], [0, 0, 1, 1], [], []>} : vector<16x8xbf16>, vector<8x32xbf16>, vector<16x32xf32> -> vector<16x32xf32>
    %183 = arith.addf %156, %182 : vector<16x32xf32>
    %c0_56 = arith.constant 0 : index
    %c0_57 = arith.constant 0 : index
    %c0_58 = arith.constant 0 : index
    %184 = vector.load %arg9[%c0_56, %c0_57, %c0_58] : memref<2x1x32xf32, #tpu.memory_space<vmem>>, vector<1x1x32xf32>
    %185 = vector.shape_cast %184 : vector<1x1x32xf32> to vector<1x32xf32>
    %186 = vector.broadcast %185 : vector<1x32xf32> to vector<16x32xf32>
    %187 = arith.addf %183, %186 : vector<16x32xf32>
    %188 = arith.addf %187, %31 : vector<16x32xf32>
    %c0_59 = arith.constant 0 : index
    %c0_60 = arith.constant 0 : index
    %c0_61 = arith.constant 0 : index
    %189 = vector.load %arg10[%c0_59, %c0_60, %c0_61] : memref<2x2x32xf32, #tpu.memory_space<vmem>>, vector<1x2x32xf32>
    %190 = vector.shape_cast %189 : vector<1x2x32xf32> to vector<2x32xf32>
    %191 = vector.extract_strided_slice %190 {offsets = [0, 0], sizes = [1, 32], strides = [1, 1]} : vector<2x32xf32> to vector<1x32xf32>
    %192 = vector.extract_strided_slice %190 {offsets = [1, 0], sizes = [1, 32], strides = [1, 1]} : vector<2x32xf32> to vector<1x32xf32>
    %cst_62 = arith.constant dense<0.000000e+00> : vector<16xf32>
    %193 = vector.multi_reduction <add>, %188, %cst_62 [1] : vector<16x32xf32> to vector<16xf32>
    %194 = vector.shape_cast %193 : vector<16xf32> to vector<16x1xf32>
    %cst_63 = arith.constant 3.200000e+01 : f32
    %195 = vector.broadcast %cst_63 : f32 to vector<16x1xf32>
    %196 = arith.divf %194, %195 : vector<16x1xf32>
    %197 = arith.mulf %188, %188 : vector<16x32xf32>
    %cst_64 = arith.constant dense<0.000000e+00> : vector<16xf32>
    %198 = vector.multi_reduction <add>, %197, %cst_64 [1] : vector<16x32xf32> to vector<16xf32>
    %199 = vector.shape_cast %198 : vector<16xf32> to vector<16x1xf32>
    %cst_65 = arith.constant 3.200000e+01 : f32
    %200 = vector.broadcast %cst_65 : f32 to vector<16x1xf32>
    %201 = arith.divf %199, %200 : vector<16x1xf32>
    %202 = arith.mulf %196, %196 : vector<16x1xf32>
    %203 = arith.subf %201, %202 : vector<16x1xf32>
    %cst_66 = arith.constant 0.000000e+00 : f32
    %204 = vector.broadcast %cst_66 : f32 to vector<16x1xf32>
    %205 = arith.maximumf %203, %204 : vector<16x1xf32>
    %206 = vector.broadcast %196 : vector<16x1xf32> to vector<16x32xf32>
    %207 = arith.subf %188, %206 : vector<16x32xf32>
    %cst_67 = arith.constant 9.99999974E-6 : f32
    %208 = vector.broadcast %cst_67 : f32 to vector<16x1xf32>
    %209 = arith.addf %205, %208 : vector<16x1xf32>
    %210 = math.rsqrt %209 : vector<16x1xf32>
    %211 = vector.broadcast %210 : vector<16x1xf32> to vector<16x32xf32>
    %212 = arith.mulf %207, %211 : vector<16x32xf32>
    %213 = vector.broadcast %191 : vector<1x32xf32> to vector<16x32xf32>
    %214 = arith.mulf %212, %213 : vector<16x32xf32>
    %215 = vector.broadcast %192 : vector<1x32xf32> to vector<16x32xf32>
    %216 = arith.addf %214, %215 : vector<16x32xf32>
    %c0_68 = arith.constant 0 : index
    %c0_69 = arith.constant 0 : index
    %c0_70 = arith.constant 0 : index
    %217 = vector.load %arg11[%c0_68, %c0_69, %c0_70] : memref<2x32x64xbf16, #tpu.memory_space<vmem>>, vector<1x32x64xbf16>
    %218 = vector.shape_cast %217 : vector<1x32x64xbf16> to vector<32x64xbf16>
    %c0_71 = arith.constant 0 : index
    %c0_72 = arith.constant 0 : index
    %c0_73 = arith.constant 0 : index
    %219 = vector.load %arg12[%c0_71, %c0_72, %c0_73] : memref<2x1x64xf32, #tpu.memory_space<vmem>>, vector<1x1x64xf32>
    %220 = vector.shape_cast %219 : vector<1x1x64xf32> to vector<1x64xf32>
    %221 = arith.truncf %216 : vector<16x32xf32> to vector<16x32xbf16>
    %cst_74 = arith.constant dense<0.000000e+00> : vector<16x64xf32>
    %222 = tpu.matmul %221, %218, %cst_74 {dimension_numbers = #tpu.dot_dimension_numbers<[1], [0], [0], [1], [0, 0, 1, 1], [], []>} : vector<16x32xbf16>, vector<32x64xbf16>, vector<16x64xf32> -> vector<16x64xf32>
    %223 = vector.broadcast %220 : vector<1x64xf32> to vector<16x64xf32>
    %224 = arith.addf %222, %223 : vector<16x64xf32>
    %cst_75 = arith.constant 1.702000e+00 : f32
    %225 = vector.broadcast %cst_75 : f32 to vector<16x64xf32>
    %226 = arith.mulf %225, %224 : vector<16x64xf32>
    %227 = arith.negf %226 : vector<16x64xf32>
    %228 = math.exp %227 : vector<16x64xf32>
    %cst_76 = arith.constant 1.000000e+00 : f32
    %229 = vector.broadcast %cst_76 : f32 to vector<16x64xf32>
    %230 = arith.addf %229, %228 : vector<16x64xf32>
    %231 = arith.divf %229, %230 : vector<16x64xf32>
    %232 = arith.mulf %224, %231 : vector<16x64xf32>
    %c0_77 = arith.constant 0 : index
    %c0_78 = arith.constant 0 : index
    %c0_79 = arith.constant 0 : index
    %233 = vector.load %arg13[%c0_77, %c0_78, %c0_79] : memref<2x64x32xbf16, #tpu.memory_space<vmem>>, vector<1x64x32xbf16>
    %234 = vector.shape_cast %233 : vector<1x64x32xbf16> to vector<64x32xbf16>
    %c0_80 = arith.constant 0 : index
    %c0_81 = arith.constant 0 : index
    %c0_82 = arith.constant 0 : index
    %235 = vector.load %arg14[%c0_80, %c0_81, %c0_82] : memref<2x1x32xf32, #tpu.memory_space<vmem>>, vector<1x1x32xf32>
    %236 = vector.shape_cast %235 : vector<1x1x32xf32> to vector<1x32xf32>
    %237 = arith.truncf %232 : vector<16x64xf32> to vector<16x64xbf16>
    %cst_83 = arith.constant dense<0.000000e+00> : vector<16x32xf32>
    %238 = tpu.matmul %237, %234, %cst_83 {dimension_numbers = #tpu.dot_dimension_numbers<[1], [0], [0], [1], [0, 0, 1, 1], [], []>} : vector<16x64xbf16>, vector<64x32xbf16>, vector<16x32xf32> -> vector<16x32xf32>
    %239 = vector.broadcast %236 : vector<1x32xf32> to vector<16x32xf32>
    %240 = arith.addf %238, %239 : vector<16x32xf32>
    %241 = arith.addf %240, %188 : vector<16x32xf32>
    %c1_84 = arith.constant 1 : index
    %c0_85 = arith.constant 0 : index
    %c0_86 = arith.constant 0 : index
    %242 = vector.load %arg5[%c1_84, %c0_85, %c0_86] : memref<2x2x32xf32, #tpu.memory_space<vmem>>, vector<1x2x32xf32>
    %243 = vector.shape_cast %242 : vector<1x2x32xf32> to vector<2x32xf32>
    %244 = vector.extract_strided_slice %243 {offsets = [0, 0], sizes = [1, 32], strides = [1, 1]} : vector<2x32xf32> to vector<1x32xf32>
    %245 = vector.extract_strided_slice %243 {offsets = [1, 0], sizes = [1, 32], strides = [1, 1]} : vector<2x32xf32> to vector<1x32xf32>
    %cst_87 = arith.constant dense<0.000000e+00> : vector<16xf32>
    %246 = vector.multi_reduction <add>, %241, %cst_87 [1] : vector<16x32xf32> to vector<16xf32>
    %247 = vector.shape_cast %246 : vector<16xf32> to vector<16x1xf32>
    %cst_88 = arith.constant 3.200000e+01 : f32
    %248 = vector.broadcast %cst_88 : f32 to vector<16x1xf32>
    %249 = arith.divf %247, %248 : vector<16x1xf32>
    %250 = arith.mulf %241, %241 : vector<16x32xf32>
    %cst_89 = arith.constant dense<0.000000e+00> : vector<16xf32>
    %251 = vector.multi_reduction <add>, %250, %cst_89 [1] : vector<16x32xf32> to vector<16xf32>
    %252 = vector.shape_cast %251 : vector<16xf32> to vector<16x1xf32>
    %cst_90 = arith.constant 3.200000e+01 : f32
    %253 = vector.broadcast %cst_90 : f32 to vector<16x1xf32>
    %254 = arith.divf %252, %253 : vector<16x1xf32>
    %255 = arith.mulf %249, %249 : vector<16x1xf32>
    %256 = arith.subf %254, %255 : vector<16x1xf32>
    %cst_91 = arith.constant 0.000000e+00 : f32
    %257 = vector.broadcast %cst_91 : f32 to vector<16x1xf32>
    %258 = arith.maximumf %256, %257 : vector<16x1xf32>
    %259 = vector.broadcast %249 : vector<16x1xf32> to vector<16x32xf32>
    %260 = arith.subf %241, %259 : vector<16x32xf32>
    %cst_92 = arith.constant 9.99999974E-6 : f32
    %261 = vector.broadcast %cst_92 : f32 to vector<16x1xf32>
    %262 = arith.addf %258, %261 : vector<16x1xf32>
    %263 = math.rsqrt %262 : vector<16x1xf32>
    %264 = vector.broadcast %263 : vector<16x1xf32> to vector<16x32xf32>
    %265 = arith.mulf %260, %264 : vector<16x32xf32>
    %266 = vector.broadcast %244 : vector<1x32xf32> to vector<16x32xf32>
    %267 = arith.mulf %265, %266 : vector<16x32xf32>
    %268 = vector.broadcast %245 : vector<1x32xf32> to vector<16x32xf32>
    %269 = arith.addf %267, %268 : vector<16x32xf32>
    %c1_93 = arith.constant 1 : index
    %c0_94 = arith.constant 0 : index
    %c0_95 = arith.constant 0 : index
    %270 = vector.load %arg6[%c1_93, %c0_94, %c0_95] : memref<2x32x96xbf16, #tpu.memory_space<vmem>>, vector<1x32x96xbf16>
    %271 = vector.shape_cast %270 : vector<1x32x96xbf16> to vector<32x96xbf16>
    %c1_96 = arith.constant 1 : index
    %c0_97 = arith.constant 0 : index
    %c0_98 = arith.constant 0 : index
    %272 = vector.load %arg7[%c1_96, %c0_97, %c0_98] : memref<2x1x96xf32, #tpu.memory_space<vmem>>, vector<1x1x96xf32>
    %273 = vector.shape_cast %272 : vector<1x1x96xf32> to vector<1x96xf32>
    %274 = arith.truncf %269 : vector<16x32xf32> to vector<16x32xbf16>
    %cst_99 = arith.constant dense<0.000000e+00> : vector<16x96xf32>
    %275 = tpu.matmul %274, %271, %cst_99 {dimension_numbers = #tpu.dot_dimension_numbers<[1], [0], [0], [1], [0, 0, 1, 1], [], []>} : vector<16x32xbf16>, vector<32x96xbf16>, vector<16x96xf32> -> vector<16x96xf32>
    %276 = vector.broadcast %273 : vector<1x96xf32> to vector<16x96xf32>
    %277 = arith.addf %275, %276 : vector<16x96xf32>
    %278 = vector.shape_cast %277 : vector<16x96xf32> to vector<2x8x96xf32>
    %c1_100 = arith.constant 1 : index
    %c0_101 = arith.constant 0 : index
    %c0_102 = arith.constant 0 : index
    %279 = vector.load %arg8[%c1_100, %c0_101, %c0_102] : memref<2x32x32xbf16, #tpu.memory_space<vmem>>, vector<1x32x32xbf16>
    %280 = vector.shape_cast %279 : vector<1x32x32xbf16> to vector<32x32xbf16>
    %281 = vector.extract_strided_slice %278 {offsets = [0, 0, 0], sizes = [2, 8, 8], strides = [1, 1, 1]} : vector<2x8x96xf32> to vector<2x8x8xf32>
    %282 = arith.truncf %281 : vector<2x8x8xf32> to vector<2x8x8xbf16>
    %283 = vector.extract_strided_slice %278 {offsets = [0, 0, 32], sizes = [2, 8, 8], strides = [1, 1, 1]} : vector<2x8x96xf32> to vector<2x8x8xf32>
    %284 = arith.truncf %283 : vector<2x8x8xf32> to vector<2x8x8xbf16>
    %285 = vector.extract_strided_slice %278 {offsets = [0, 0, 64], sizes = [2, 8, 8], strides = [1, 1, 1]} : vector<2x8x96xf32> to vector<2x8x8xf32>
    %286 = arith.truncf %285 : vector<2x8x8xf32> to vector<2x8x8xbf16>
    "tpu.trace_start"() <{level = 10 : i32, message = "bqd,bkd->bqk"}> : () -> ()
    %cst_103 = arith.constant dense<0.000000e+00> : vector<2x8x8xf32>
    %287 = tpu.matmul %282, %284, %cst_103 {dimension_numbers = #tpu.dot_dimension_numbers<[2], [2], [1], [1], [0, 0, 0, 1, 1, 1], [0], [0]>} : vector<2x8x8xbf16>, vector<2x8x8xbf16>, vector<2x8x8xf32> -> vector<2x8x8xf32>
    "tpu.trace_stop"() : () -> ()
    %288 = vector.shape_cast %37 : vector<1x8xf32> to vector<1x1x8xf32>
    %289 = vector.broadcast %288 : vector<1x1x8xf32> to vector<2x8x8xf32>
    %290 = arith.addf %287, %289 : vector<2x8x8xf32>
    %cst_104 = arith.constant dense<0xFF800000> : vector<2x8xf32>
    %291 = vector.multi_reduction <maximumf>, %290, %cst_104 [2] : vector<2x8x8xf32> to vector<2x8xf32>
    %292 = vector.shape_cast %291 : vector<2x8xf32> to vector<2x8x1xf32>
    %293 = vector.broadcast %292 : vector<2x8x1xf32> to vector<2x8x8xf32>
    %294 = arith.subf %290, %293 : vector<2x8x8xf32>
    %295 = math.exp %294 : vector<2x8x8xf32>
    %cst_105 = arith.constant dense<0.000000e+00> : vector<2x8xf32>
    %296 = vector.multi_reduction <add>, %295, %cst_105 [2] : vector<2x8x8xf32> to vector<2x8xf32>
    %297 = vector.shape_cast %296 : vector<2x8xf32> to vector<2x8x1xf32>
    %298 = tpu.reciprocal %297 {approx = true} : vector<2x8x1xf32> -> vector<2x8x1xf32>
    %299 = vector.broadcast %298 : vector<2x8x1xf32> to vector<2x8x8xf32>
    %300 = arith.mulf %295, %299 : vector<2x8x8xf32>
    %301 = arith.truncf %300 : vector<2x8x8xf32> to vector<2x8x8xbf16>
    "tpu.trace_start"() <{level = 10 : i32, message = "bqk,bkd->bqd"}> : () -> ()
    %cst_106 = arith.constant dense<0.000000e+00> : vector<2x8x8xf32>
    %302 = tpu.matmul %301, %286, %cst_106 {dimension_numbers = #tpu.dot_dimension_numbers<[2], [1], [1], [2], [0, 0, 0, 1, 1, 2], [0], [0]>} : vector<2x8x8xbf16>, vector<2x8x8xbf16>, vector<2x8x8xf32> -> vector<2x8x8xf32>
    "tpu.trace_stop"() : () -> ()
    %303 = vector.shape_cast %302 : vector<2x8x8xf32> to vector<16x8xf32>
    %304 = arith.truncf %303 : vector<16x8xf32> to vector<16x8xbf16>
    %305 = vector.extract_strided_slice %280 {offsets = [0, 0], sizes = [8, 32], strides = [1, 1]} : vector<32x32xbf16> to vector<8x32xbf16>
    %cst_107 = arith.constant dense<0.000000e+00> : vector<16x32xf32>
    %306 = tpu.matmul %304, %305, %cst_107 {dimension_numbers = #tpu.dot_dimension_numbers<[1], [0], [0], [1], [0, 0, 1, 1], [], []>} : vector<16x8xbf16>, vector<8x32xbf16>, vector<16x32xf32> -> vector<16x32xf32>
    %307 = vector.extract_strided_slice %278 {offsets = [0, 0, 8], sizes = [2, 8, 8], strides = [1, 1, 1]} : vector<2x8x96xf32> to vector<2x8x8xf32>
    %308 = arith.truncf %307 : vector<2x8x8xf32> to vector<2x8x8xbf16>
    %309 = vector.extract_strided_slice %278 {offsets = [0, 0, 40], sizes = [2, 8, 8], strides = [1, 1, 1]} : vector<2x8x96xf32> to vector<2x8x8xf32>
    %310 = arith.truncf %309 : vector<2x8x8xf32> to vector<2x8x8xbf16>
    %311 = vector.extract_strided_slice %278 {offsets = [0, 0, 72], sizes = [2, 8, 8], strides = [1, 1, 1]} : vector<2x8x96xf32> to vector<2x8x8xf32>
    %312 = arith.truncf %311 : vector<2x8x8xf32> to vector<2x8x8xbf16>
    "tpu.trace_start"() <{level = 10 : i32, message = "bqd,bkd->bqk"}> : () -> ()
    %cst_108 = arith.constant dense<0.000000e+00> : vector<2x8x8xf32>
    %313 = tpu.matmul %308, %310, %cst_108 {dimension_numbers = #tpu.dot_dimension_numbers<[2], [2], [1], [1], [0, 0, 0, 1, 1, 1], [0], [0]>} : vector<2x8x8xbf16>, vector<2x8x8xbf16>, vector<2x8x8xf32> -> vector<2x8x8xf32>
    "tpu.trace_stop"() : () -> ()
    %314 = vector.shape_cast %37 : vector<1x8xf32> to vector<1x1x8xf32>
    %315 = vector.broadcast %314 : vector<1x1x8xf32> to vector<2x8x8xf32>
    %316 = arith.addf %313, %315 : vector<2x8x8xf32>
    %cst_109 = arith.constant dense<0xFF800000> : vector<2x8xf32>
    %317 = vector.multi_reduction <maximumf>, %316, %cst_109 [2] : vector<2x8x8xf32> to vector<2x8xf32>
    %318 = vector.shape_cast %317 : vector<2x8xf32> to vector<2x8x1xf32>
    %319 = vector.broadcast %318 : vector<2x8x1xf32> to vector<2x8x8xf32>
    %320 = arith.subf %316, %319 : vector<2x8x8xf32>
    %321 = math.exp %320 : vector<2x8x8xf32>
    %cst_110 = arith.constant dense<0.000000e+00> : vector<2x8xf32>
    %322 = vector.multi_reduction <add>, %321, %cst_110 [2] : vector<2x8x8xf32> to vector<2x8xf32>
    %323 = vector.shape_cast %322 : vector<2x8xf32> to vector<2x8x1xf32>
    %324 = tpu.reciprocal %323 {approx = true} : vector<2x8x1xf32> -> vector<2x8x1xf32>
    %325 = vector.broadcast %324 : vector<2x8x1xf32> to vector<2x8x8xf32>
    %326 = arith.mulf %321, %325 : vector<2x8x8xf32>
    %327 = arith.truncf %326 : vector<2x8x8xf32> to vector<2x8x8xbf16>
    "tpu.trace_start"() <{level = 10 : i32, message = "bqk,bkd->bqd"}> : () -> ()
    %cst_111 = arith.constant dense<0.000000e+00> : vector<2x8x8xf32>
    %328 = tpu.matmul %327, %312, %cst_111 {dimension_numbers = #tpu.dot_dimension_numbers<[2], [1], [1], [2], [0, 0, 0, 1, 1, 2], [0], [0]>} : vector<2x8x8xbf16>, vector<2x8x8xbf16>, vector<2x8x8xf32> -> vector<2x8x8xf32>
    "tpu.trace_stop"() : () -> ()
    %329 = vector.shape_cast %328 : vector<2x8x8xf32> to vector<16x8xf32>
    %330 = arith.truncf %329 : vector<16x8xf32> to vector<16x8xbf16>
    %331 = vector.extract_strided_slice %280 {offsets = [8, 0], sizes = [8, 32], strides = [1, 1]} : vector<32x32xbf16> to vector<8x32xbf16>
    %cst_112 = arith.constant dense<0.000000e+00> : vector<16x32xf32>
    %332 = tpu.matmul %330, %331, %cst_112 {dimension_numbers = #tpu.dot_dimension_numbers<[1], [0], [0], [1], [0, 0, 1, 1], [], []>} : vector<16x8xbf16>, vector<8x32xbf16>, vector<16x32xf32> -> vector<16x32xf32>
    %333 = arith.addf %306, %332 : vector<16x32xf32>
    %334 = vector.extract_strided_slice %278 {offsets = [0, 0, 16], sizes = [2, 8, 8], strides = [1, 1, 1]} : vector<2x8x96xf32> to vector<2x8x8xf32>
    %335 = arith.truncf %334 : vector<2x8x8xf32> to vector<2x8x8xbf16>
    %336 = vector.extract_strided_slice %278 {offsets = [0, 0, 48], sizes = [2, 8, 8], strides = [1, 1, 1]} : vector<2x8x96xf32> to vector<2x8x8xf32>
    %337 = arith.truncf %336 : vector<2x8x8xf32> to vector<2x8x8xbf16>
    %338 = vector.extract_strided_slice %278 {offsets = [0, 0, 80], sizes = [2, 8, 8], strides = [1, 1, 1]} : vector<2x8x96xf32> to vector<2x8x8xf32>
    %339 = arith.truncf %338 : vector<2x8x8xf32> to vector<2x8x8xbf16>
    "tpu.trace_start"() <{level = 10 : i32, message = "bqd,bkd->bqk"}> : () -> ()
    %cst_113 = arith.constant dense<0.000000e+00> : vector<2x8x8xf32>
    %340 = tpu.matmul %335, %337, %cst_113 {dimension_numbers = #tpu.dot_dimension_numbers<[2], [2], [1], [1], [0, 0, 0, 1, 1, 1], [0], [0]>} : vector<2x8x8xbf16>, vector<2x8x8xbf16>, vector<2x8x8xf32> -> vector<2x8x8xf32>
    "tpu.trace_stop"() : () -> ()
    %341 = vector.shape_cast %37 : vector<1x8xf32> to vector<1x1x8xf32>
    %342 = vector.broadcast %341 : vector<1x1x8xf32> to vector<2x8x8xf32>
    %343 = arith.addf %340, %342 : vector<2x8x8xf32>
    %cst_114 = arith.constant dense<0xFF800000> : vector<2x8xf32>
    %344 = vector.multi_reduction <maximumf>, %343, %cst_114 [2] : vector<2x8x8xf32> to vector<2x8xf32>
    %345 = vector.shape_cast %344 : vector<2x8xf32> to vector<2x8x1xf32>
    %346 = vector.broadcast %345 : vector<2x8x1xf32> to vector<2x8x8xf32>
    %347 = arith.subf %343, %346 : vector<2x8x8xf32>
    %348 = math.exp %347 : vector<2x8x8xf32>
    %cst_115 = arith.constant dense<0.000000e+00> : vector<2x8xf32>
    %349 = vector.multi_reduction <add>, %348, %cst_115 [2] : vector<2x8x8xf32> to vector<2x8xf32>
    %350 = vector.shape_cast %349 : vector<2x8xf32> to vector<2x8x1xf32>
    %351 = tpu.reciprocal %350 {approx = true} : vector<2x8x1xf32> -> vector<2x8x1xf32>
    %352 = vector.broadcast %351 : vector<2x8x1xf32> to vector<2x8x8xf32>
    %353 = arith.mulf %348, %352 : vector<2x8x8xf32>
    %354 = arith.truncf %353 : vector<2x8x8xf32> to vector<2x8x8xbf16>
    "tpu.trace_start"() <{level = 10 : i32, message = "bqk,bkd->bqd"}> : () -> ()
    %cst_116 = arith.constant dense<0.000000e+00> : vector<2x8x8xf32>
    %355 = tpu.matmul %354, %339, %cst_116 {dimension_numbers = #tpu.dot_dimension_numbers<[2], [1], [1], [2], [0, 0, 0, 1, 1, 2], [0], [0]>} : vector<2x8x8xbf16>, vector<2x8x8xbf16>, vector<2x8x8xf32> -> vector<2x8x8xf32>
    "tpu.trace_stop"() : () -> ()
    %356 = vector.shape_cast %355 : vector<2x8x8xf32> to vector<16x8xf32>
    %357 = arith.truncf %356 : vector<16x8xf32> to vector<16x8xbf16>
    %358 = vector.extract_strided_slice %280 {offsets = [16, 0], sizes = [8, 32], strides = [1, 1]} : vector<32x32xbf16> to vector<8x32xbf16>
    %cst_117 = arith.constant dense<0.000000e+00> : vector<16x32xf32>
    %359 = tpu.matmul %357, %358, %cst_117 {dimension_numbers = #tpu.dot_dimension_numbers<[1], [0], [0], [1], [0, 0, 1, 1], [], []>} : vector<16x8xbf16>, vector<8x32xbf16>, vector<16x32xf32> -> vector<16x32xf32>
    %360 = arith.addf %333, %359 : vector<16x32xf32>
    %361 = vector.extract_strided_slice %278 {offsets = [0, 0, 24], sizes = [2, 8, 8], strides = [1, 1, 1]} : vector<2x8x96xf32> to vector<2x8x8xf32>
    %362 = arith.truncf %361 : vector<2x8x8xf32> to vector<2x8x8xbf16>
    %363 = vector.extract_strided_slice %278 {offsets = [0, 0, 56], sizes = [2, 8, 8], strides = [1, 1, 1]} : vector<2x8x96xf32> to vector<2x8x8xf32>
    %364 = arith.truncf %363 : vector<2x8x8xf32> to vector<2x8x8xbf16>
    %365 = vector.extract_strided_slice %278 {offsets = [0, 0, 88], sizes = [2, 8, 8], strides = [1, 1, 1]} : vector<2x8x96xf32> to vector<2x8x8xf32>
    %366 = arith.truncf %365 : vector<2x8x8xf32> to vector<2x8x8xbf16>
    "tpu.trace_start"() <{level = 10 : i32, message = "bqd,bkd->bqk"}> : () -> ()
    %cst_118 = arith.constant dense<0.000000e+00> : vector<2x8x8xf32>
    %367 = tpu.matmul %362, %364, %cst_118 {dimension_numbers = #tpu.dot_dimension_numbers<[2], [2], [1], [1], [0, 0, 0, 1, 1, 1], [0], [0]>} : vector<2x8x8xbf16>, vector<2x8x8xbf16>, vector<2x8x8xf32> -> vector<2x8x8xf32>
    "tpu.trace_stop"() : () -> ()
    %368 = vector.shape_cast %37 : vector<1x8xf32> to vector<1x1x8xf32>
    %369 = vector.broadcast %368 : vector<1x1x8xf32> to vector<2x8x8xf32>
    %370 = arith.addf %367, %369 : vector<2x8x8xf32>
    %cst_119 = arith.constant dense<0xFF800000> : vector<2x8xf32>
    %371 = vector.multi_reduction <maximumf>, %370, %cst_119 [2] : vector<2x8x8xf32> to vector<2x8xf32>
    %372 = vector.shape_cast %371 : vector<2x8xf32> to vector<2x8x1xf32>
    %373 = vector.broadcast %372 : vector<2x8x1xf32> to vector<2x8x8xf32>
    %374 = arith.subf %370, %373 : vector<2x8x8xf32>
    %375 = math.exp %374 : vector<2x8x8xf32>
    %cst_120 = arith.constant dense<0.000000e+00> : vector<2x8xf32>
    %376 = vector.multi_reduction <add>, %375, %cst_120 [2] : vector<2x8x8xf32> to vector<2x8xf32>
    %377 = vector.shape_cast %376 : vector<2x8xf32> to vector<2x8x1xf32>
    %378 = tpu.reciprocal %377 {approx = true} : vector<2x8x1xf32> -> vector<2x8x1xf32>
    %379 = vector.broadcast %378 : vector<2x8x1xf32> to vector<2x8x8xf32>
    %380 = arith.mulf %375, %379 : vector<2x8x8xf32>
    %381 = arith.truncf %380 : vector<2x8x8xf32> to vector<2x8x8xbf16>
    "tpu.trace_start"() <{level = 10 : i32, message = "bqk,bkd->bqd"}> : () -> ()
    %cst_121 = arith.constant dense<0.000000e+00> : vector<2x8x8xf32>
    %382 = tpu.matmul %381, %366, %cst_121 {dimension_numbers = #tpu.dot_dimension_numbers<[2], [1], [1], [2], [0, 0, 0, 1, 1, 2], [0], [0]>} : vector<2x8x8xbf16>, vector<2x8x8xbf16>, vector<2x8x8xf32> -> vector<2x8x8xf32>
    "tpu.trace_stop"() : () -> ()
    %383 = vector.shape_cast %382 : vector<2x8x8xf32> to vector<16x8xf32>
    %384 = arith.truncf %383 : vector<16x8xf32> to vector<16x8xbf16>
    %385 = vector.extract_strided_slice %280 {offsets = [24, 0], sizes = [8, 32], strides = [1, 1]} : vector<32x32xbf16> to vector<8x32xbf16>
    %cst_122 = arith.constant dense<0.000000e+00> : vector<16x32xf32>
    %386 = tpu.matmul %384, %385, %cst_122 {dimension_numbers = #tpu.dot_dimension_numbers<[1], [0], [0], [1], [0, 0, 1, 1], [], []>} : vector<16x8xbf16>, vector<8x32xbf16>, vector<16x32xf32> -> vector<16x32xf32>
    %387 = arith.addf %360, %386 : vector<16x32xf32>
    %c1_123 = arith.constant 1 : index
    %c0_124 = arith.constant 0 : index
    %c0_125 = arith.constant 0 : index
    %388 = vector.load %arg9[%c1_123, %c0_124, %c0_125] : memref<2x1x32xf32, #tpu.memory_space<vmem>>, vector<1x1x32xf32>
    %389 = vector.shape_cast %388 : vector<1x1x32xf32> to vector<1x32xf32>
    %390 = vector.broadcast %389 : vector<1x32xf32> to vector<16x32xf32>
    %391 = arith.addf %387, %390 : vector<16x32xf32>
    %392 = arith.addf %391, %241 : vector<16x32xf32>
    %c1_126 = arith.constant 1 : index
    %c0_127 = arith.constant 0 : index
    %c0_128 = arith.constant 0 : index
    %393 = vector.load %arg10[%c1_126, %c0_127, %c0_128] : memref<2x2x32xf32, #tpu.memory_space<vmem>>, vector<1x2x32xf32>
    %394 = vector.shape_cast %393 : vector<1x2x32xf32> to vector<2x32xf32>
    %395 = vector.extract_strided_slice %394 {offsets = [0, 0], sizes = [1, 32], strides = [1, 1]} : vector<2x32xf32> to vector<1x32xf32>
    %396 = vector.extract_strided_slice %394 {offsets = [1, 0], sizes = [1, 32], strides = [1, 1]} : vector<2x32xf32> to vector<1x32xf32>
    %cst_129 = arith.constant dense<0.000000e+00> : vector<16xf32>
    %397 = vector.multi_reduction <add>, %392, %cst_129 [1] : vector<16x32xf32> to vector<16xf32>
    %398 = vector.shape_cast %397 : vector<16xf32> to vector<16x1xf32>
    %cst_130 = arith.constant 3.200000e+01 : f32
    %399 = vector.broadcast %cst_130 : f32 to vector<16x1xf32>
    %400 = arith.divf %398, %399 : vector<16x1xf32>
    %401 = arith.mulf %392, %392 : vector<16x32xf32>
    %cst_131 = arith.constant dense<0.000000e+00> : vector<16xf32>
    %402 = vector.multi_reduction <add>, %401, %cst_131 [1] : vector<16x32xf32> to vector<16xf32>
    %403 = vector.shape_cast %402 : vector<16xf32> to vector<16x1xf32>
    %cst_132 = arith.constant 3.200000e+01 : f32
    %404 = vector.broadcast %cst_132 : f32 to vector<16x1xf32>
    %405 = arith.divf %403, %404 : vector<16x1xf32>
    %406 = arith.mulf %400, %400 : vector<16x1xf32>
    %407 = arith.subf %405, %406 : vector<16x1xf32>
    %cst_133 = arith.constant 0.000000e+00 : f32
    %408 = vector.broadcast %cst_133 : f32 to vector<16x1xf32>
    %409 = arith.maximumf %407, %408 : vector<16x1xf32>
    %410 = vector.broadcast %400 : vector<16x1xf32> to vector<16x32xf32>
    %411 = arith.subf %392, %410 : vector<16x32xf32>
    %cst_134 = arith.constant 9.99999974E-6 : f32
    %412 = vector.broadcast %cst_134 : f32 to vector<16x1xf32>
    %413 = arith.addf %409, %412 : vector<16x1xf32>
    %414 = math.rsqrt %413 : vector<16x1xf32>
    %415 = vector.broadcast %414 : vector<16x1xf32> to vector<16x32xf32>
    %416 = arith.mulf %411, %415 : vector<16x32xf32>
    %417 = vector.broadcast %395 : vector<1x32xf32> to vector<16x32xf32>
    %418 = arith.mulf %416, %417 : vector<16x32xf32>
    %419 = vector.broadcast %396 : vector<1x32xf32> to vector<16x32xf32>
    %420 = arith.addf %418, %419 : vector<16x32xf32>
    %c1_135 = arith.constant 1 : index
    %c0_136 = arith.constant 0 : index
    %c0_137 = arith.constant 0 : index
    %421 = vector.load %arg11[%c1_135, %c0_136, %c0_137] : memref<2x32x64xbf16, #tpu.memory_space<vmem>>, vector<1x32x64xbf16>
    %422 = vector.shape_cast %421 : vector<1x32x64xbf16> to vector<32x64xbf16>
    %c1_138 = arith.constant 1 : index
    %c0_139 = arith.constant 0 : index
    %c0_140 = arith.constant 0 : index
    %423 = vector.load %arg12[%c1_138, %c0_139, %c0_140] : memref<2x1x64xf32, #tpu.memory_space<vmem>>, vector<1x1x64xf32>
    %424 = vector.shape_cast %423 : vector<1x1x64xf32> to vector<1x64xf32>
    %425 = arith.truncf %420 : vector<16x32xf32> to vector<16x32xbf16>
    %cst_141 = arith.constant dense<0.000000e+00> : vector<16x64xf32>
    %426 = tpu.matmul %425, %422, %cst_141 {dimension_numbers = #tpu.dot_dimension_numbers<[1], [0], [0], [1], [0, 0, 1, 1], [], []>} : vector<16x32xbf16>, vector<32x64xbf16>, vector<16x64xf32> -> vector<16x64xf32>
    %427 = vector.broadcast %424 : vector<1x64xf32> to vector<16x64xf32>
    %428 = arith.addf %426, %427 : vector<16x64xf32>
    %cst_142 = arith.constant 1.702000e+00 : f32
    %429 = vector.broadcast %cst_142 : f32 to vector<16x64xf32>
    %430 = arith.mulf %429, %428 : vector<16x64xf32>
    %431 = arith.negf %430 : vector<16x64xf32>
    %432 = math.exp %431 : vector<16x64xf32>
    %cst_143 = arith.constant 1.000000e+00 : f32
    %433 = vector.broadcast %cst_143 : f32 to vector<16x64xf32>
    %434 = arith.addf %433, %432 : vector<16x64xf32>
    %435 = arith.divf %433, %434 : vector<16x64xf32>
    %436 = arith.mulf %428, %435 : vector<16x64xf32>
    %c1_144 = arith.constant 1 : index
    %c0_145 = arith.constant 0 : index
    %c0_146 = arith.constant 0 : index
    %437 = vector.load %arg13[%c1_144, %c0_145, %c0_146] : memref<2x64x32xbf16, #tpu.memory_space<vmem>>, vector<1x64x32xbf16>
    %438 = vector.shape_cast %437 : vector<1x64x32xbf16> to vector<64x32xbf16>
    %c1_147 = arith.constant 1 : index
    %c0_148 = arith.constant 0 : index
    %c0_149 = arith.constant 0 : index
    %439 = vector.load %arg14[%c1_147, %c0_148, %c0_149] : memref<2x1x32xf32, #tpu.memory_space<vmem>>, vector<1x1x32xf32>
    %440 = vector.shape_cast %439 : vector<1x1x32xf32> to vector<1x32xf32>
    %441 = arith.truncf %436 : vector<16x64xf32> to vector<16x64xbf16>
    %cst_150 = arith.constant dense<0.000000e+00> : vector<16x32xf32>
    %442 = tpu.matmul %441, %438, %cst_150 {dimension_numbers = #tpu.dot_dimension_numbers<[1], [0], [0], [1], [0, 0, 1, 1], [], []>} : vector<16x64xbf16>, vector<64x32xbf16>, vector<16x32xf32> -> vector<16x32xf32>
    %443 = vector.broadcast %440 : vector<1x32xf32> to vector<16x32xf32>
    %444 = arith.addf %442, %443 : vector<16x32xf32>
    %445 = arith.addf %444, %392 : vector<16x32xf32>
    %446 = vector.shape_cast %445 : vector<16x32xf32> to vector<2x8x32xf32>
    %447 = vector.extract_strided_slice %446 {offsets = [0, 0, 0], sizes = [2, 1, 32], strides = [1, 1, 1]} : vector<2x8x32xf32> to vector<2x1x32xf32>
    %448 = vector.shape_cast %447 : vector<2x1x32xf32> to vector<2x32xf32>
    %c0_151 = arith.constant 0 : index
    %c0_152 = arith.constant 0 : index
    %449 = vector.load %arg15[%c0_151, %c0_152] : memref<2x32xf32, #tpu.memory_space<vmem>>, vector<1x32xf32>
    %c1_153 = arith.constant 1 : index
    %c0_154 = arith.constant 0 : index
    %450 = vector.load %arg15[%c1_153, %c0_154] : memref<2x32xf32, #tpu.memory_space<vmem>>, vector<1x32xf32>
    %cst_155 = arith.constant dense<0.000000e+00> : vector<2xf32>
    %451 = vector.multi_reduction <add>, %448, %cst_155 [1] : vector<2x32xf32> to vector<2xf32>
    %452 = vector.shape_cast %451 : vector<2xf32> to vector<2x1xf32>
    %cst_156 = arith.constant 3.200000e+01 : f32
    %453 = vector.broadcast %cst_156 : f32 to vector<2x1xf32>
    %454 = arith.divf %452, %453 : vector<2x1xf32>
    %455 = arith.mulf %448, %448 : vector<2x32xf32>
    %cst_157 = arith.constant dense<0.000000e+00> : vector<2xf32>
    %456 = vector.multi_reduction <add>, %455, %cst_157 [1] : vector<2x32xf32> to vector<2xf32>
    %457 = vector.shape_cast %456 : vector<2xf32> to vector<2x1xf32>
    %cst_158 = arith.constant 3.200000e+01 : f32
    %458 = vector.broadcast %cst_158 : f32 to vector<2x1xf32>
    %459 = arith.divf %457, %458 : vector<2x1xf32>
    %460 = arith.mulf %454, %454 : vector<2x1xf32>
    %461 = arith.subf %459, %460 : vector<2x1xf32>
    %cst_159 = arith.constant 0.000000e+00 : f32
    %462 = vector.broadcast %cst_159 : f32 to vector<2x1xf32>
    %463 = arith.maximumf %461, %462 : vector<2x1xf32>
    %464 = vector.broadcast %454 : vector<2x1xf32> to vector<2x32xf32>
    %465 = arith.subf %448, %464 : vector<2x32xf32>
    %cst_160 = arith.constant 9.99999974E-6 : f32
    %466 = vector.broadcast %cst_160 : f32 to vector<2x1xf32>
    %467 = arith.addf %463, %466 : vector<2x1xf32>
    %468 = math.rsqrt %467 : vector<2x1xf32>
    %469 = vector.broadcast %468 : vector<2x1xf32> to vector<2x32xf32>
    %470 = arith.mulf %465, %469 : vector<2x32xf32>
    %471 = vector.broadcast %449 : vector<1x32xf32> to vector<2x32xf32>
    %472 = arith.mulf %470, %471 : vector<2x32xf32>
    %473 = vector.broadcast %450 : vector<1x32xf32> to vector<2x32xf32>
    %474 = arith.addf %472, %473 : vector<2x32xf32>
    %475 = arith.truncf %474 : vector<2x32xf32> to vector<2x32xbf16>
    %c0_161 = arith.constant 0 : index
    %c0_162 = arith.constant 0 : index
    %476 = vector.load %arg16[%c0_161, %c0_162] : memref<32x16xbf16, #tpu.memory_space<vmem>>, vector<32x16xbf16>
    %cst_163 = arith.constant dense<0.000000e+00> : vector<2x16xf32>
    %477 = tpu.matmul %475, %476, %cst_163 {dimension_numbers = #tpu.dot_dimension_numbers<[1], [0], [0], [1], [0, 0, 1, 1], [], []>} : vector<2x32xbf16>, vector<32x16xbf16>, vector<2x16xf32> -> vector<2x16xf32>
    %c0_164 = arith.constant 0 : index
    %c0_165 = arith.constant 0 : index
    %478 = vector.load %arg17[%c0_164, %c0_165] : memref<1x16xf32, #tpu.memory_space<vmem>>, vector<1x16xf32>
    %479 = vector.broadcast %478 : vector<1x16xf32> to vector<2x16xf32>
    %480 = arith.addf %477, %479 : vector<2x16xf32>
    %c0_166 = arith.constant 0 : index
    %c0_167 = arith.constant 0 : index
    %481 = vector.load %arg18[%c0_166, %c0_167] : memref<2x16xf32, #tpu.memory_space<vmem>>, vector<2x16xf32>
    tpu.vector_store %arg18[%c0_166, %c0_167], %480 {strides = array<i32>} : memref<2x16xf32, #tpu.memory_space<vmem>>, vector<2x16xf32>,
    return
  }
  func.func @transform_0(%arg0: i32) -> (i32, i32, i32) {
    %c0_i32 = arith.constant 0 : i32
    %c0_i32_0 = arith.constant 0 : i32
    %c0_i32_1 = arith.constant 0 : i32
    return %arg0, %c0_i32, %c0_i32_0 : i32, i32, i32
  }
  func.func @transform_1(%arg0: i32) -> (i32, i32) {
    %c0_i32 = arith.constant 0 : i32
    %c0_i32_0 = arith.constant 0 : i32
    %c0_i32_1 = arith.constant 0 : i32
    return %c0_i32, %c0_i32_0 : i32, i32
  }
  func.func @transform_2(%arg0: i32) -> (i32, i32) {
    %c0_i32 = arith.constant 0 : i32
    %c0_i32_0 = arith.constant 0 : i32
    %c0_i32_1 = arith.constant 0 : i32
    return %c0_i32, %c0_i32_0 : i32, i32
  }
  func.func @transform_3(%arg0: i32) -> (i32, i32) {
    %c0_i32 = arith.constant 0 : i32
    %c0_i32_0 = arith.constant 0 : i32
    %c0_i32_1 = arith.constant 0 : i32
    return %c0_i32, %c0_i32_0 : i32, i32
  }
  func.func @transform_4(%arg0: i32) -> (i32, i32, i32) {
    %c0_i32 = arith.constant 0 : i32
    %c0_i32_0 = arith.constant 0 : i32
    %c0_i32_1 = arith.constant 0 : i32
    %c0_i32_2 = arith.constant 0 : i32
    return %c0_i32, %c0_i32_0, %c0_i32_1 : i32, i32, i32
  }
  func.func @transform_5(%arg0: i32) -> (i32, i32, i32) {
    %c0_i32 = arith.constant 0 : i32
    %c0_i32_0 = arith.constant 0 : i32
    %c0_i32_1 = arith.constant 0 : i32
    %c0_i32_2 = arith.constant 0 : i32
    return %c0_i32, %c0_i32_0, %c0_i32_1 : i32, i32, i32
  }
  func.func @transform_6(%arg0: i32) -> (i32, i32, i32) {
    %c0_i32 = arith.constant 0 : i32
    %c0_i32_0 = arith.constant 0 : i32
    %c0_i32_1 = arith.constant 0 : i32
    %c0_i32_2 = arith.constant 0 : i32
    return %c0_i32, %c0_i32_0, %c0_i32_1 : i32, i32, i32
  }
  func.func @transform_7(%arg0: i32) -> (i32, i32, i32) {
    %c0_i32 = arith.constant 0 : i32
    %c0_i32_0 = arith.constant 0 : i32
    %c0_i32_1 = arith.constant 0 : i32
    %c0_i32_2 = arith.constant 0 : i32
    return %c0_i32, %c0_i32_0, %c0_i32_1 : i32, i32, i32
  }
  func.func @transform_8(%arg0: i32) -> (i32, i32, i32) {
    %c0_i32 = arith.constant 0 : i32
    %c0_i32_0 = arith.constant 0 : i32
    %c0_i32_1 = arith.constant 0 : i32
    %c0_i32_2 = arith.constant 0 : i32
    return %c0_i32, %c0_i32_0, %c0_i32_1 : i32, i32, i32
  }
  func.func @transform_9(%arg0: i32) -> (i32, i32, i32) {
    %c0_i32 = arith.constant 0 : i32
    %c0_i32_0 = arith.constant 0 : i32
    %c0_i32_1 = arith.constant 0 : i32
    %c0_i32_2 = arith.constant 0 : i32
    return %c0_i32, %c0_i32_0, %c0_i32_1 : i32, i32, i32
  }
  func.func @transform_10(%arg0: i32) -> (i32, i32, i32) {
    %c0_i32 = arith.constant 0 : i32
    %c0_i32_0 = arith.constant 0 : i32
    %c0_i32_1 = arith.constant 0 : i32
    %c0_i32_2 = arith.constant 0 : i32
    return %c0_i32, %c0_i32_0, %c0_i32_1 : i32, i32, i32
  }
  func.func @transform_11(%arg0: i32) -> (i32, i32, i32) {
    %c0_i32 = arith.constant 0 : i32
    %c0_i32_0 = arith.constant 0 : i32
    %c0_i32_1 = arith.constant 0 : i32
    %c0_i32_2 = arith.constant 0 : i32
    return %c0_i32, %c0_i32_0, %c0_i32_1 : i32, i32, i32
  }
  func.func @transform_12(%arg0: i32) -> (i32, i32, i32) {
    %c0_i32 = arith.constant 0 : i32
    %c0_i32_0 = arith.constant 0 : i32
    %c0_i32_1 = arith.constant 0 : i32
    %c0_i32_2 = arith.constant 0 : i32
    return %c0_i32, %c0_i32_0, %c0_i32_1 : i32, i32, i32
  }
  func.func @transform_13(%arg0: i32) -> (i32, i32, i32) {
    %c0_i32 = arith.constant 0 : i32
    %c0_i32_0 = arith.constant 0 : i32
    %c0_i32_1 = arith.constant 0 : i32
    %c0_i32_2 = arith.constant 0 : i32
    return %c0_i32, %c0_i32_0, %c0_i32_1 : i32, i32, i32
  }
  func.func @transform_14(%arg0: i32) -> (i32, i32) {
    %c0_i32 = arith.constant 0 : i32
    %c0_i32_0 = arith.constant 0 : i32
    %c0_i32_1 = arith.constant 0 : i32
    return %c0_i32, %c0_i32_0 : i32, i32
  }
  func.func @transform_15(%arg0: i32) -> (i32, i32) {
    %c0_i32 = arith.constant 0 : i32
    %c0_i32_0 = arith.constant 0 : i32
    %c0_i32_1 = arith.constant 0 : i32
    return %c0_i32, %c0_i32_0 : i32, i32
  }
  func.func @transform_16(%arg0: i32) -> (i32, i32) {
    %c0_i32 = arith.constant 0 : i32
    %c0_i32_0 = arith.constant 0 : i32
    %c0_i32_1 = arith.constant 0 : i32
    return %c0_i32, %c0_i32_0 : i32, i32
  }
  func.func @transform_17(%arg0: i32) -> (i32, i32) {
    %c0_i32 = arith.constant 0 : i32
    %c0_i32_0 = arith.constant 0 : i32
    return %arg0, %c0_i32 : i32, i32
  }
}

</mosaic_0001>

<llo_original>
// kernel: i2v_encoder_forward.1
$region0: #{i2v_encoder_forward.1}
  #allocation0 [shape = 'u32[]', space=smem, size = 0x4, offset = 0x4, fixed_abs, tag = 'smem constant byte address 0x4 - core index']
  #allocation1 [shape = 'u32[144,128]{1,0:T(1,128)}', space=vmem, size = 0x12000, scoped, tag = 'internal scratch']
  %s0 = inlined_call_operand.vmem [shape: bf16[2,8,192], index: 0, kind: input, shape index: {}]
  %s1 = inlined_call_operand.vmem [shape: bf16[192,32], index: 1, kind: input, shape index: {}]
  %s2 = inlined_call_operand.vmem [shape: f32[16,32], index: 2, kind: input, shape index: {}]
  %s3 = inlined_call_operand.vmem [shape: f32[2,32], index: 3, kind: input, shape index: {}]
  %s4 = inlined_call_operand.vmem [shape: f32[2,2,32], index: 4, kind: input, shape index: {}]
  %s5 = inlined_call_operand.vmem [shape: bf16[2,32,96], index: 5, kind: input, shape index: {}]
  %s6 = inlined_call_operand.vmem [shape: f32[2,1,96], index: 6, kind: input, shape index: {}]
  %s7 = inlined_call_operand.vmem [shape: bf16[2,32,32], index: 7, kind: input, shape index: {}]
  %s8 = inlined_call_operand.vmem [shape: f32[2,1,32], index: 8, kind: input, shape index: {}]
  %s9 = inlined_call_operand.vmem [shape: f32[2,2,32], index: 9, kind: input, shape index: {}]
  %s10 = inlined_call_operand.vmem [shape: bf16[2,32,64], index: 10, kind: input, shape index: {}]
  %s11 = inlined_call_operand.vmem [shape: f32[2,1,64], index: 11, kind: input, shape index: {}]
  %s12 = inlined_call_operand.vmem [shape: bf16[2,64,32], index: 12, kind: input, shape index: {}]
  %s13 = inlined_call_operand.vmem [shape: f32[2,1,32], index: 13, kind: input, shape index: {}]
  %s14 = inlined_call_operand.vmem [shape: f32[2,32], index: 14, kind: input, shape index: {}]
  %s15 = inlined_call_operand.vmem [shape: bf16[32,16], index: 15, kind: input, shape index: {}]
  %s16 = inlined_call_operand.vmem [shape: f32[1,16], index: 16, kind: input, shape index: {}]
  %s17 = inlined_call_operand.hbm [shape: f32[2,16], index: 17, kind: output, shape index: {}]
  %s18 = sld [smem:[#allocation0]]
  $region78: #{i2v_encoder_forward.1} parent=0
    _
  %s20 = ssub.s32 1, %s18
  %s21 = scalar_select 0, %s20, %s18
  $region1: #{i2v_encoder_forward.1} parent=0
    #allocation2 [shape = 'u8[1024]{0}', space=vmem, size = 0x400, scoped, tag = 'output window, operand 0, single buffered']
    #allocation3 [shape = 's32[1]{0}', space=sflag, size = 0x4, scoped, tag = 'scoped memory for i2v_encoder_forward.1']
    %22 = vsyncpa [#allocation3], 0
    // Predicated region
    $region2: #{i2v_encoder_forward.1} parent=1 // pred_check
      _
    $region3: #{i2v_encoder_forward.1} parent=1 // pred_check_branch
      %24 = sbr.rel (0) target = $region5
    $region4: #{i2v_encoder_forward.1} parent=1 // pred_region
      _
    $region5: #{i2v_encoder_forward.1} parent=1 // pred_fallthru
      _
    // Predicated region
    $region6: #{i2v_encoder_forward.1} parent=1 // pred_check
      _
    $region7: #{i2v_encoder_forward.1} parent=1 // pred_check_branch
      %26 = sbr.rel (0) target = $region9
    $region8: #{i2v_encoder_forward.1} parent=1 // pred_region
      _
    $region9: #{i2v_encoder_forward.1} parent=1 // pred_fallthru
      _
    // Predicated region
    $region10: #{i2v_encoder_forward.1} parent=1 // pred_check
      _
    $region11: #{i2v_encoder_forward.1} parent=1 // pred_check_branch
      %28 = sbr.rel (0) target = $region13
    $region12: #{i2v_encoder_forward.1} parent=1 // pred_region
      _
    $region13: #{i2v_encoder_forward.1} parent=1 // pred_fallthru
      _
    // Predicated region
    $region14: #{i2v_encoder_forward.1} parent=1 // pred_check
      _
    $region15: #{i2v_encoder_forward.1} parent=1 // pred_check_branch
      %30 = sbr.rel (0) target = $region17
    $region16: #{i2v_encoder_forward.1} parent=1 // pred_region
      _
    $region17: #{i2v_encoder_forward.1} parent=1 // pred_fallthru
      _
    // Predicated region
    $region18: #{i2v_encoder_forward.1} parent=1 // pred_check
      _
    $region19: #{i2v_encoder_forward.1} parent=1 // pred_check_branch
      %32 = sbr.rel (0) target = $region21
    $region20: #{i2v_encoder_forward.1} parent=1 // pred_region
      _
    $region21: #{i2v_encoder_forward.1} parent=1 // pred_fallthru
      _
    // Predicated region
    $region22: #{i2v_encoder_forward.1} parent=1 // pred_check
      _
    $region23: #{i2v_encoder_forward.1} parent=1 // pred_check_branch
      %34 = sbr.rel (0) target = $region25
    $region24: #{i2v_encoder_forward.1} parent=1 // pred_region
      _
    $region25: #{i2v_encoder_forward.1} parent=1 // pred_fallthru
      _
    // Predicated region
    $region26: #{i2v_encoder_forward.1} parent=1 // pred_check
      _
    $region27: #{i2v_encoder_forward.1} parent=1 // pred_check_branch
      %36 = sbr.rel (0) target = $region29
    $region28: #{i2v_encoder_forward.1} parent=1 // pred_region
      _
    $region29: #{i2v_encoder_forward.1} parent=1 // pred_fallthru
      _
    // Predicated region
    $region30: #{i2v_encoder_forward.1} parent=1 // pred_check
      _
    $region31: #{i2v_encoder_forward.1} parent=1 // pred_check_branch
      %38 = sbr.rel (0) target = $region33
    $region32: #{i2v_encoder_forward.1} parent=1 // pred_region
      _
    $region33: #{i2v_encoder_forward.1} parent=1 // pred_fallthru
      _
    // Predicated region
    $region34: #{i2v_encoder_forward.1} parent=1 // pred_check
      _
    $region35: #{i2v_encoder_forward.1} parent=1 // pred_check_branch
      %40 = sbr.rel (0) target = $region37
    $region36: #{i2v_encoder_forward.1} parent=1 // pred_region
      _
    $region37: #{i2v_encoder_forward.1} parent=1 // pred_fallthru
      _
    // Predicated region
    $region38: #{i2v_encoder_forward.1} parent=1 // pred_check
      _
    $region39: #{i2v_encoder_forward.1} parent=1 // pred_check_branch
      %42 = sbr.rel (0) target = $region41
    $region40: #{i2v_encoder_forward.1} parent=1 // pred_region
      _
    $region41: #{i2v_encoder_forward.1} parent=1 // pred_fallthru
      _
    // Predicated region
    $region42: #{i2v_encoder_forward.1} parent=1 // pred_check
      _
    $region43: #{i2v_encoder_forward.1} parent=1 // pred_check_branch
      %44 = sbr.rel (0) target = $region45
    $region44: #{i2v_encoder_forward.1} parent=1 // pred_region
      _
    $region45: #{i2v_encoder_forward.1} parent=1 // pred_fallthru
      _
    // Predicated region
    $region46: #{i2v_encoder_forward.1} parent=1 // pred_check
      _
    $region47: #{i2v_encoder_forward.1} parent=1 // pred_check_branch
      %46 = sbr.rel (0) target = $region49
    $region48: #{i2v_encoder_forward.1} parent=1 // pred_region
      _
    $region49: #{i2v_encoder_forward.1} parent=1 // pred_fallthru
      _
    // Predicated region
    $region50: #{i2v_encoder_forward.1} parent=1 // pred_check
      _
    $region51: #{i2v_encoder_forward.1} parent=1 // pred_check_branch
      %48 = sbr.rel (0) target = $region53
    $region52: #{i2v_encoder_forward.1} parent=1 // pred_region
      _
    $region53: #{i2v_encoder_forward.1} parent=1 // pred_fallthru
      _
    // Predicated region
    $region54: #{i2v_encoder_forward.1} parent=1 // pred_check
      _
    $region55: #{i2v_encoder_forward.1} parent=1 // pred_check_branch
      %50 = sbr.rel (0) target = $region57
    $region56: #{i2v_encoder_forward.1} parent=1 // pred_region
      _
    $region57: #{i2v_encoder_forward.1} parent=1 // pred_fallthru
      _
    // Predicated region
    $region58: #{i2v_encoder_forward.1} parent=1 // pred_check
      _
    $region59: #{i2v_encoder_forward.1} parent=1 // pred_check_branch
      %52 = sbr.rel (0) target = $region61
    $region60: #{i2v_encoder_forward.1} parent=1 // pred_region
      _
    $region61: #{i2v_encoder_forward.1} parent=1 // pred_fallthru
      _
    // Predicated region
    $region62: #{i2v_encoder_forward.1} parent=1 // pred_check
      _
    $region63: #{i2v_encoder_forward.1} parent=1 // pred_check_branch
      %54 = sbr.rel (0) target = $region65
    $region64: #{i2v_encoder_forward.1} parent=1 // pred_region
      _
    $region65: #{i2v_encoder_forward.1} parent=1 // pred_fallthru
      _
    // Predicated region
    $region66: #{i2v_encoder_forward.1} parent=1 // pred_check
      _
    $region67: #{i2v_encoder_forward.1} parent=1 // pred_check_branch
      %56 = sbr.rel (0) target = $region69
    $region68: #{i2v_encoder_forward.1} parent=1 // pred_region
      _
    $region69: #{i2v_encoder_forward.1} parent=1 // pred_fallthru
      _
    %v58 = vld [vmem:[%s0] sm:$0xff]
    %v59 = vld [vmem:[%s0 + $0x8] sm:$0xff]
    %v60 = vld [vmem:[%s1] sm:$0xf]
    %v61 = vld [vmem:[%s1 + $0x4] sm:$0xf]
    %v62 = vld [vmem:[%s1 + $0x8] sm:$0xf]
    %v63 = vld [vmem:[%s1 + $0xc] sm:$0xf]
    %v64 = vld [vmem:[%s1 + $0x10] sm:$0xf]
    %v65 = vld [vmem:[%s1 + $0x14] sm:$0xf]
    %v66 = vld [vmem:[%s1 + $0x18] sm:$0xf]
    %v67 = vld [vmem:[%s1 + $0x1c] sm:$0xf]
    %v68 = vld [vmem:[%s1 + $0x20] sm:$0xf]
    %v69 = vld [vmem:[%s1 + $0x24] sm:$0xf]
    %v70 = vld [vmem:[%s1 + $0x28] sm:$0xf]
    %v71 = vld [vmem:[%s1 + $0x2c] sm:$0xf]
    %v72 = vld [vmem:[%s1 + $0x30] sm:$0xf]
    %v73 = vld [vmem:[%s1 + $0x34] sm:$0xf]
    %v74 = vld [vmem:[%s1 + $0x38] sm:$0xf]
    %v75 = vld [vmem:[%s1 + $0x3c] sm:$0xf]
    %v76 = vld [vmem:[%s1 + $0x40] sm:$0xf]
    %v77 = vld [vmem:[%s1 + $0x44] sm:$0xf]
    %v78 = vld [vmem:[%s1 + $0x48] sm:$0xf]
    %v79 = vld [vmem:[%s1 + $0x4c] sm:$0xf]
    %v80 = vld [vmem:[%s1 + $0x50] sm:$0xf]
    %v81 = vld [vmem:[%s1 + $0x54] sm:$0xf]
    %v82 = vld [vmem:[%s1 + $0x58] sm:$0xf]
    %v83 = vld [vmem:[%s1 + $0x5c] sm:$0xf]
    %v84 = vld [vmem:[%s2] sm:$0xff]
    %v85 = vld [vmem:[%s2 + $0x8] sm:$0xff]
    %v88 = vunpack.c.l.b16 %v58
    %v89 = vunpack.c.h.b16 %v58
    %v90 = vunpack.c.l.b16 %v59
    %v91 = vunpack.c.h.b16 %v59
    %v92 = vpack.c.b16 %v90, %v88
    %v93 = vpack.c.b16 %v91, %v89
    %v119 = vunpack.c.l.b16 %v60
    %v120 = vunpack.c.l.b16 %v61
    %v121 = vunpack.c.l.b16 %v62
    %v122 = vunpack.c.l.b16 %v63
    %v123 = vunpack.c.l.b16 %v64
    %v124 = vunpack.c.l.b16 %v65
    %v125 = vunpack.c.l.b16 %v66
    %v126 = vunpack.c.l.b16 %v67
    %v127 = vunpack.c.l.b16 %v68
    %v128 = vunpack.c.l.b16 %v69
    %v129 = vunpack.c.l.b16 %v70
    %v130 = vunpack.c.l.b16 %v71
    %v131 = vunpack.c.l.b16 %v72
    %v132 = vunpack.c.l.b16 %v73
    %v133 = vunpack.c.l.b16 %v74
    %v134 = vunpack.c.l.b16 %v75
    %v135 = vunpack.c.l.b16 %v76
    %v136 = vunpack.c.l.b16 %v77
    %v137 = vunpack.c.l.b16 %v78
    %v138 = vunpack.c.l.b16 %v79
    %v139 = vunpack.c.l.b16 %v80
    %v140 = vunpack.c.l.b16 %v81
    %v141 = vunpack.c.l.b16 %v82
    %v142 = vunpack.c.l.b16 %v83
    %v143 = vpack.c.b16 %v120, %v119
    %v144 = vpack.c.b16 %v122, %v121
    %v145 = vpack.c.b16 %v124, %v123
    %v146 = vpack.c.b16 %v126, %v125
    %v147 = vpack.c.b16 %v128, %v127
    %v148 = vpack.c.b16 %v130, %v129
    %v149 = vpack.c.b16 %v132, %v131
    %v150 = vpack.c.b16 %v134, %v133
    %v151 = vpack.c.b16 %v136, %v135
    %v152 = vpack.c.b16 %v138, %v137
    %v153 = vpack.c.b16 %v140, %v139
    %v154 = vpack.c.b16 %v142, %v141
    %vm167 = vcmask 523264
    %v169 = vsel %vm167, %v93, 0
    %171 = vmatprep.subr.bf16.mxu0 0
    %172 = vmatpush1.bf16.msra.mxu0 %v150
    %173 = vmatprep.subr.bf16.mxu0 0
    %174 = vmatpush1.bf16.msra.mxu0 %v149
    %175 = vmatprep.subr.bf16.mxu0 0
    %176 = vmatpush1.bf16.msra.mxu0 %v148
    %177 = vmatprep.subr.bf16.mxu0 0
    %178 = vmatpush1.bf16.msra.mxu0 %v147
    %179 = vmatprep.subr.bf16.mxu0 0
    %180 = vmatpush1.bf16.msra.mxu0 %v146
    %181 = vmatprep.subr.bf16.mxu0 0
    %182 = vmatpush1.bf16.msra.mxu0 %v145
    %183 = vmatprep.subr.bf16.mxu0 0
    %184 = vmatpush1.bf16.msra.mxu0 %v144
    %185 = vmatprep.subr.bf16.mxu0 0
    %186 = vmatpush1.bf16.msra.mxu0 %v143
    %187 = vmatprep.subr.bf16.mxu0 0
    %188 = vmatpush2.bf16.msra.mxu0 0
    %189 = vmatprep.subr.bf16.mxu0 0
    %190 = vmatpush2.bf16.msra.mxu0 0
    %191 = vmatprep.subr.bf16.mxu0 0
    %192 = vmatpush2.bf16.msra.mxu0 0
    %193 = vmatprep.subr.bf16.mxu0 0
    %194 = vmatpush2.bf16.msra.mxu0 0
    %195 = vmatprep.subr.bf16.mxu0 0
    %196 = vmatpush2.bf16.msra.mxu0 %v154
    %197 = vmatprep.subr.bf16.mxu0 0
    %198 = vmatpush2.bf16.msra.mxu0 %v153
    %199 = vmatprep.subr.bf16.mxu0 0
    %200 = vmatpush2.bf16.msra.mxu0 %v152
    %201 = vmatprep.subr.bf16.mxu0 0
    %202 = vmatpush2.bf16.msra.mxu0 %v151
    %203 = vmatprep.mubr.bf16.mxu0 %v169
    %204 = vmatmul.mubr.bf16.gmra.mxu0 %v92
    %v205 = vpop.f32.mrf.mxu0
    %v206 = vadd.f32 %v84, %v205
    %v207 = vpop.f32.mrf.mxu0
    %v208 = vpop.f32.mrf.mxu0
    %v209 = vadd.f32 %v85, %v208
    %v210 = vpop.f32.mrf.mxu0
    %211 = vdwg.mxu0
    %v212 = vld [vmem:[%s3] sm:$0x1]
    %v213 = vld [vmem:[%s3 + $0x1] sm:$0x1]
    %vm214 = vcmask 261120
    %v215 = vsel %vm214, %v206, 0.0
    %216 = vadd.xlane.f32.xlu0 %v215
    %v217 = vpop.xlane.xlu0 %216
    %v218 = vsel %vm214, %v209, 0.0
    %219 = vadd.xlane.f32.xlu0 %v218
    %v220 = vpop.xlane.xlu0 %219
    %v221 = vrcp.pop 32.0
    %v222 = vmul.f32 %v217, %v221
    %v223 = vmul.f32 %v220, %v221
    %v224 = vmul.f32 %v206, %v206
    %v225 = vmul.f32 %v209, %v209
    %v226 = vsel %vm214, %v224, 0.0
    %227 = vadd.xlane.f32.xlu0 %v226
    %v228 = vpop.xlane.xlu0 %227
    %v229 = vsel %vm214, %v225, 0.0
    %230 = vadd.xlane.f32.xlu0 %v229
    %v231 = vpop.xlane.xlu0 %230
    %v232 = vmul.f32 %v228, %v221
    %v233 = vmul.f32 %v231, %v221
    %v234 = vmul.f32 %v222, %v222
    %v235 = vmul.f32 %v223, %v223
    %v236 = vsub.f32 %v232, %v234
    %v237 = vsub.f32 %v233, %v235
    %v238 = vmax.f32 %v236, 0.0
    %v239 = vmax.f32 %v237, 0.0
    %v240 = vsub.f32 %v206, %v222
    %v241 = vsub.f32 %v209, %v223
    %v242 = vadd.f32 %v238, 1e-05
    %v243 = vadd.f32 %v239, 1e-05
    %v244 = vrsqrt.pop %v242
    %v245 = vrsqrt.pop %v243
    %v246 = vmul.f32 %v240, %v244
    %v247 = vmul.f32 %v241, %v245
    %v248 = vlaneseq
    %v249 = vshrl.u32 %v248, 7
    %v250 = vsub.s32 0, %v249
    %v251 = vrot.slane %v212, %v250
    %v252 = vmul.f32 %v246, %v251
    %v253 = vmul.f32 %v247, %v251
    %v254 = vlaneseq
    %v255 = vshrl.u32 %v254, 7
    %v256 = vsub.s32 0, %v255
    %v257 = vrot.slane %v213, %v256
    %v258 = vadd.f32 %v252, %v257
    %v259 = vadd.f32 %v253, %v257
    %v260 = vlaneseq
    %v261 = vand.u32 %v260, 127
    %vm262 = vcmp.lt.s32.totalorder %v261, 5
    %v263 = vsel %vm262, 0.0, -1e+30
    %v264 = vld [vmem:[%s4] sm:$0x3]
    %v265 = vsel %vm214, %v258, 0.0
    %266 = vadd.xlane.f32.xlu0 %v265
    %v267 = vpop.xlane.xlu0 %266
    %v268 = vsel %vm214, %v259, 0.0
    %269 = vadd.xlane.f32.xlu0 %v268
    %v270 = vpop.xlane.xlu0 %269
    %v271 = vmul.f32 %v267, %v221
    %v272 = vmul.f32 %v270, %v221
    %v273 = vmul.f32 %v258, %v258
    %v274 = vmul.f32 %v259, %v259
    %v275 = vsel %vm214, %v273, 0.0
    %276 = vadd.xlane.f32.xlu0 %v275
    %v277 = vpop.xlane.xlu0 %276
    %v278 = vsel %vm214, %v274, 0.0
    %279 = vadd.xlane.f32.xlu0 %v278
    %v280 = vpop.xlane.xlu0 %279
    %v281 = vmul.f32 %v277, %v221
    %v282 = vmul.f32 %v280, %v221
    %v283 = vmul.f32 %v271, %v271
    %v284 = vmul.f32 %v272, %v272
    %v285 = vsub.f32 %v281, %v283
    %v286 = vsub.f32 %v282, %v284
    %v287 = vmax.f32 %v285, 0.0
    %v288 = vmax.f32 %v286, 0.0
    %v289 = vsub.f32 %v258, %v271
    %v290 = vsub.f32 %v259, %v272
    %v291 = vadd.f32 %v287, 1e-05
    %v292 = vadd.f32 %v288, 1e-05
    %v293 = vrsqrt.pop %v291
    %v294 = vrsqrt.pop %v292
    %v295 = vmul.f32 %v289, %v293
    %v296 = vmul.f32 %v290, %v294
    %v297 = vlaneseq
    %v298 = vshrl.u32 %v297, 7
    %v299 = vsub.s32 0, %v298
    %v300 = vrot.slane %v264, %v299
    %v301 = vmul.f32 %v295, %v300
    %v302 = vmul.f32 %v296, %v300
    %v303 = vlaneseq
    %v304 = vshrl.u32 %v303, 7
    %v305 = vsub.s32 1, %v304
    %v306 = vrot.slane %v264, %v305
    %v307 = vadd.f32 %v301, %v306
    %v308 = vadd.f32 %v302, %v306
    %v309 = vld [vmem:[%s5] sm:$0xf]
    %v310 = vld [vmem:[%s5 + $0x4] sm:$0xf]
    %v311 = vld [vmem:[%s5 + $0x8] sm:$0xf]
    %v312 = vld [vmem:[%s5 + $0xc] sm:$0xf]
    %v313 = vld [vmem:[%s6] sm:$0x1]
    %v314 = vpack.c.bf16 %v308, %v307
    %v316 = vlaneseq
    %v317 = vshrl.u32 %v316, 7
    %v318 = vsub.s32 0, %v317
    %v319 = vrot.slane %v313, %v318
    %v325 = vunpack.c.l.b16 %v309
    %v326 = vunpack.c.l.b16 %v310
    %v327 = vunpack.c.l.b16 %v311
    %v328 = vunpack.c.l.b16 %v312
    %v329 = vpack.c.b16 %v326, %v325
    %v330 = vpack.c.b16 %v328, %v327
    %v334 = vsel %vm214, %v314, 0
    %336 = vmatprep.subr.bf16.mxu0 0
    %337 = vmatpush1.bf16.msra.mxu0 0
    %338 = vmatprep.subr.bf16.mxu0 0
    %339 = vmatpush1.bf16.msra.mxu0 0
    %340 = vmatprep.subr.bf16.mxu0 0
    %341 = vmatpush1.bf16.msra.mxu0 0
    %342 = vmatprep.subr.bf16.mxu0 0
    %343 = vmatpush1.bf16.msra.mxu0 0
    %344 = vmatprep.subr.bf16.mxu0 0
    %345 = vmatpush1.bf16.msra.mxu0 0
    %346 = vmatprep.subr.bf16.mxu0 0
    %347 = vmatpush1.bf16.msra.mxu0 0
    %348 = vmatprep.subr.bf16.mxu0 0
    %349 = vmatpush1.bf16.msra.mxu0 %v330
    %350 = vmatprep.subr.bf16.mxu0 0
    %351 = vmatpush1.bf16.msra.mxu0 %v329
    %352 = vmatprep.subr.bf16.mxu0 0
    %353 = vmatpush2.bf16.msra.mxu0 0
    %354 = vmatprep.subr.bf16.mxu0 0
    %355 = vmatpush2.bf16.msra.mxu0 0
    %356 = vmatprep.subr.bf16.mxu0 0
    %357 = vmatpush2.bf16.msra.mxu0 0
    %358 = vmatprep.subr.bf16.mxu0 0
    %359 = vmatpush2.bf16.msra.mxu0 0
    %360 = vmatprep.subr.bf16.mxu0 0
    %361 = vmatpush2.bf16.msra.mxu0 0
    %362 = vmatprep.subr.bf16.mxu0 0
    %363 = vmatpush2.bf16.msra.mxu0 0
    %364 = vmatprep.subr.bf16.mxu0 0
    %365 = vmatpush2.bf16.msra.mxu0 0
    %366 = vmatprep.subr.bf16.mxu0 0
    %367 = vmatpush2.bf16.msra.mxu0 0
    %368 = vmatprep.mubr.bf16.mxu0 0
    %369 = vmatmul.mubr.bf16.gmra.mxu0 %v334
    %v370 = vpop.f32.mrf.mxu0
    %v371 = vadd.f32 %v319, %v370
    %v372 = vpop.f32.mrf.mxu0
    %v373 = vpop.f32.mrf.mxu0
    %v374 = vadd.f32 %v319, %v373
    %v375 = vpop.f32.mrf.mxu0
    %376 = vdwg.mxu0
    %v377 = vld [vmem:[%s7] sm:$0xf]
    %v378 = vld [vmem:[%s7 + $0x4] sm:$0xf]
    %v379 = vld [vmem:[%s7 + $0x8] sm:$0xf]
    %v380 = vld [vmem:[%s7 + $0xc] sm:$0xf]
    %v381 = vpack.c.bf16 %v371, %v371
    %v382 = vpack.c.bf16 %v374, %v374
    %384 = vrot.lane.b32.xlu0 %v381, 96
    %v385 = vpop.permute.xlu0 %384
    %vm386 = vcmask 64512
    %v388 = vsel %vm386, %v381, 0
    %v391 = vsel %vm386, %v385, 0
    %393 = vmatprep.subr.bf16.mxu0 0
    %394 = vmatpush1.bf16.xpose.msra.mxu0 0
    %395 = vmatprep.subr.bf16.mxu0 0
    %396 = vmatpush1.bf16.xpose.msra.mxu0 0
    %397 = vmatprep.subr.bf16.mxu0 0
    %398 = vmatpush1.bf16.xpose.msra.mxu0 0
    %399 = vmatprep.subr.bf16.mxu0 0
    %400 = vmatpush1.bf16.xpose.msra.mxu0 0
    %401 = vmatprep.subr.bf16.mxu0 0
    %402 = vmatpush1.bf16.xpose.msra.mxu0 0
    %403 = vmatprep.subr.bf16.mxu0 0
    %404 = vmatpush1.bf16.xpose.msra.mxu0 0
    %405 = vmatprep.subr.bf16.mxu0 0
    %406 = vmatpush1.bf16.xpose.msra.mxu0 0
    %407 = vmatprep.subr.bf16.mxu0 0
    %408 = vmatpush1.bf16.xpose.msra.mxu0 %v391
    %409 = vmatprep.subr.bf16.mxu0 0
    %410 = vmatpush2.bf16.xpose.msra.mxu0 0
    %411 = vmatprep.subr.bf16.mxu0 0
    %412 = vmatpush2.bf16.xpose.msra.mxu0 0
    %413 = vmatprep.subr.bf16.mxu0 0
    %414 = vmatpush2.bf16.xpose.msra.mxu0 0
    %415 = vmatprep.subr.bf16.mxu0 0
    %416 = vmatpush2.bf16.xpose.msra.mxu0 0
    %417 = vmatprep.subr.bf16.mxu0 0
    %418 = vmatpush2.bf16.xpose.msra.mxu0 0
    %419 = vmatprep.subr.bf16.mxu0 0
    %420 = vmatpush2.bf16.xpose.msra.mxu0 0
    %421 = vmatprep.subr.bf16.mxu0 0
    %422 = vmatpush2.bf16.xpose.msra.mxu0 0
    %423 = vmatprep.subr.bf16.mxu0 0
    %424 = vmatpush2.bf16.xpose.msra.mxu0 0
    %425 = vmatprep.mubr.bf16.mxu0 0
    %426 = vmatmul.mubr.bf16.gmra.mxu0 %v388
    %v427 = vpop.f32.mrf.mxu0
    %v428 = vadd.f32 %v263, %v427
    %v429 = vpop.f32.mrf.mxu0
    %v430 = vpop.f32.mrf.mxu0
    %v431 = vpop.f32.mrf.mxu0
    %432 = vdwg.mxu0
    %434 = vrot.lane.b32.xlu0 %v382, 96
    %v435 = vpop.permute.xlu0 %434
    %v437 = vsel %vm386, %v382, 0
    %v440 = vsel %vm386, %v435, 0
    %442 = vmatprep.subr.bf16.mxu0 0
    %443 = vmatpush1.bf16.xpose.msra.mxu0 0
    %444 = vmatprep.subr.bf16.mxu0 0
    %445 = vmatpush1.bf16.xpose.msra.mxu0 0
    %446 = vmatprep.subr.bf16.mxu0 0
    %447 = vmatpush1.bf16.xpose.msra.mxu0 0
    %448 = vmatprep.subr.bf16.mxu0 0
    %449 = vmatpush1.bf16.xpose.msra.mxu0 0
    %450 = vmatprep.subr.bf16.mxu0 0
    %451 = vmatpush1.bf16.xpose.msra.mxu0 0
    %452 = vmatprep.subr.bf16.mxu0 0
    %453 = vmatpush1.bf16.xpose.msra.mxu0 0
    %454 = vmatprep.subr.bf16.mxu0 0
    %455 = vmatpush1.bf16.xpose.msra.mxu0 0
    %456 = vmatprep.subr.bf16.mxu0 0
    %457 = vmatpush1.bf16.xpose.msra.mxu0 %v440
    %458 = vmatprep.subr.bf16.mxu0 0
    %459 = vmatpush2.bf16.xpose.msra.mxu0 0
    %460 = vmatprep.subr.bf16.mxu0 0
    %461 = vmatpush2.bf16.xpose.msra.mxu0 0
    %462 = vmatprep.subr.bf16.mxu0 0
    %463 = vmatpush2.bf16.xpose.msra.mxu0 0
    %464 = vmatprep.subr.bf16.mxu0 0
    %465 = vmatpush2.bf16.xpose.msra.mxu0 0
    %466 = vmatprep.subr.bf16.mxu0 0
    %467 = vmatpush2.bf16.xpose.msra.mxu0 0
    %468 = vmatprep.subr.bf16.mxu0 0
    %469 = vmatpush2.bf16.xpose.msra.mxu0 0
    %470 = vmatprep.subr.bf16.mxu0 0
    %471 = vmatpush2.bf16.xpose.msra.mxu0 0
    %472 = vmatprep.subr.bf16.mxu0 0
    %473 = vmatpush2.bf16.xpose.msra.mxu0 0
    %474 = vmatprep.mubr.bf16.mxu0 0
    %475 = vmatmul.mubr.bf16.gmra.mxu0 %v437
    %v476 = vpop.f32.mrf.mxu0
    %v477 = vadd.f32 %v263, %v476
    %v478 = vpop.f32.mrf.mxu0
    %v479 = vpop.f32.mrf.mxu0
    %v480 = vpop.f32.mrf.mxu0
    %481 = vdwg.mxu0
    %v482 = vsel %vm386, %v428, -inf
    %483 = vmax.xlane.f32.xlu0 %v482
    %v484 = vpop.xlane.xlu0 %483
    %v485 = vsel %vm386, %v477, -inf
    %486 = vmax.xlane.f32.xlu0 %v485
    %v487 = vpop.xlane.xlu0 %486
    %v488 = vsub.f32 %v428, %v484
    %v489 = vsub.f32 %v477, %v487
    %v490 = vmul.f32 %v488, 1.442695
    %v491 = vpow.pop %v490
    %v492 = vmul.f32 %v489, 1.442695
    %v493 = vpow.pop %v492
    %v494 = vsel %vm386, %v491, 0.0
    %495 = vadd.xlane.f32.xlu0 %v494
    %v496 = vpop.xlane.xlu0 %495
    %v497 = vsel %vm386, %v493, 0.0
    %498 = vadd.xlane.f32.xlu0 %v497
    %v499 = vpop.xlane.xlu0 %498
    %v500 = vrcp.pop %v496
    %v501 = vrcp.pop %v499
    %v502 = vmul.f32 %v491, %v500
    %v503 = vmul.f32 %v493, %v501
    %v504 = vpack.c.bf16 %v502, %v502
    %v505 = vpack.c.bf16 %v503, %v503
    %506 = vrot.lane.b32.xlu0 %v381, 64
    %v507 = vpop.permute.xlu0 %506
    %v509 = vsel %vm386, %v504, 0
    %vm511 = vcmask 1043456
    %v513 = vsel %vm511, %v507, 0
    %515 = vmatprep.subr.bf16.mxu0 0
    %516 = vmatpush1.bf16.msra.mxu0 0
    %517 = vmatprep.subr.bf16.mxu0 0
    %518 = vmatpush1.bf16.msra.mxu0 0
    %519 = vmatprep.subr.bf16.mxu0 0
    %520 = vmatpush1.bf16.msra.mxu0 0
    %521 = vmatprep.subr.bf16.mxu0 0
    %522 = vmatpush1.bf16.msra.mxu0 0
    %523 = vmatprep.subr.bf16.mxu0 0
    %524 = vmatpush1.bf16.msra.mxu0 0
    %525 = vmatprep.subr.bf16.mxu0 0
    %526 = vmatpush1.bf16.msra.mxu0 0
    %527 = vmatprep.subr.bf16.mxu0 0
    %528 = vmatpush1.bf16.msra.mxu0 0
    %529 = vmatprep.subr.bf16.mxu0 0
    %530 = vmatpush1.bf16.msra.mxu0 %v513
    %531 = vmatprep.subr.bf16.mxu0 0
    %532 = vmatpush2.bf16.msra.mxu0 0
    %533 = vmatprep.subr.bf16.mxu0 0
    %534 = vmatpush2.bf16.msra.mxu0 0
    %535 = vmatprep.subr.bf16.mxu0 0
    %536 = vmatpush2.bf16.msra.mxu0 0
    %537 = vmatprep.subr.bf16.mxu0 0
    %538 = vmatpush2.bf16.msra.mxu0 0
    %539 = vmatprep.subr.bf16.mxu0 0
    %540 = vmatpush2.bf16.msra.mxu0 0
    %541 = vmatprep.subr.bf16.mxu0 0
    %542 = vmatpush2.bf16.msra.mxu0 0
    %543 = vmatprep.subr.bf16.mxu0 0
    %544 = vmatpush2.bf16.msra.mxu0 0
    %545 = vmatprep.subr.bf16.mxu0 0
    %546 = vmatpush2.bf16.msra.mxu0 0
    %547 = vmatprep.mubr.bf16.mxu0 0
    %548 = vmatmul.mubr.bf16.gmra.mxu0 %v509
    %v549 = vpop.f32.mrf.mxu0
    %v550 = vadd.f32 0.0, %v549
    %v551 = vpop.f32.mrf.mxu0
    %v552 = vpop.f32.mrf.mxu0
    %v553 = vpop.f32.mrf.mxu0
    %554 = vdwg.mxu0
    %555 = vrot.lane.b32.xlu0 %v382, 64
    %v556 = vpop.permute.xlu0 %555
    %v558 = vsel %vm386, %v505, 0
    %v561 = vsel %vm511, %v556, 0
    %563 = vmatprep.subr.bf16.mxu0 0
    %564 = vmatpush1.bf16.msra.mxu0 0
    %565 = vmatprep.subr.bf16.mxu0 0
    %566 = vmatpush1.bf16.msra.mxu0 0
    %567 = vmatprep.subr.bf16.mxu0 0
    %568 = vmatpush1.bf16.msra.mxu0 0
    %569 = vmatprep.subr.bf16.mxu0 0
    %570 = vmatpush1.bf16.msra.mxu0 0
    %571 = vmatprep.subr.bf16.mxu0 0
    %572 = vmatpush1.bf16.msra.mxu0 0
    %573 = vmatprep.subr.bf16.mxu0 0
    %574 = vmatpush1.bf16.msra.mxu0 0
    %575 = vmatprep.subr.bf16.mxu0 0
    %576 = vmatpush1.bf16.msra.mxu0 0
    %577 = vmatprep.subr.bf16.mxu0 0
    %578 = vmatpush1.bf16.msra.mxu0 %v561
    %579 = vmatprep.subr.bf16.mxu0 0
    %580 = vmatpush2.bf16.msra.mxu0 0
    %581 = vmatprep.subr.bf16.mxu0 0
    %582 = vmatpush2.bf16.msra.mxu0 0
    %583 = vmatprep.subr.bf16.mxu0 0
    %584 = vmatpush2.bf16.msra.mxu0 0
    %585 = vmatprep.subr.bf16.mxu0 0
    %586 = vmatpush2.bf16.msra.mxu0 0
    %587 = vmatprep.subr.bf16.mxu0 0
    %588 = vmatpush2.bf16.msra.mxu0 0
    %589 = vmatprep.subr.bf16.mxu0 0
    %590 = vmatpush2.bf16.msra.mxu0 0
    %591 = vmatprep.subr.bf16.mxu0 0
    %592 = vmatpush2.bf16.msra.mxu0 0
    %593 = vmatprep.subr.bf16.mxu0 0
    %594 = vmatpush2.bf16.msra.mxu0 0
    %595 = vmatprep.mubr.bf16.mxu0 0
    %596 = vmatmul.mubr.bf16.gmra.mxu0 %v558
    %v597 = vpop.f32.mrf.mxu0
    %v598 = vadd.f32 0.0, %v597
    %v599 = vpop.f32.mrf.mxu0
    %v600 = vpop.f32.mrf.mxu0
    %v601 = vpop.f32.mrf.mxu0
    %602 = vdwg.mxu0
    %v603 = vpack.c.bf16 %v598, %v550
    %604 = vrot.lane.b32.xlu0 %v381, 120
    %v605 = vpop.permute.xlu0 %604
    %606 = vrot.lane.b32.xlu0 %v381, 88
    %v607 = vpop.permute.xlu0 %606
    %v609 = vsel %vm386, %v605, 0
    %v612 = vsel %vm386, %v607, 0
    %614 = vmatprep.subr.bf16.mxu0 0
    %615 = vmatpush1.bf16.xpose.msra.mxu0 0
    %616 = vmatprep.subr.bf16.mxu0 0
    %617 = vmatpush1.bf16.xpose.msra.mxu0 0
    %618 = vmatprep.subr.bf16.mxu0 0
    %619 = vmatpush1.bf16.xpose.msra.mxu0 0
    %620 = vmatprep.subr.bf16.mxu0 0
    %621 = vmatpush1.bf16.xpose.msra.mxu0 0
    %622 = vmatprep.subr.bf16.mxu0 0
    %623 = vmatpush1.bf16.xpose.msra.mxu0 0
    %624 = vmatprep.subr.bf16.mxu0 0
    %625 = vmatpush1.bf16.xpose.msra.mxu0 0
    %626 = vmatprep.subr.bf16.mxu0 0
    %627 = vmatpush1.bf16.xpose.msra.mxu0 0
    %628 = vmatprep.subr.bf16.mxu0 0
    %629 = vmatpush1.bf16.xpose.msra.mxu0 %v612
    %630 = vmatprep.subr.bf16.mxu0 0
    %631 = vmatpush2.bf16.xpose.msra.mxu0 0
    %632 = vmatprep.subr.bf16.mxu0 0
    %633 = vmatpush2.bf16.xpose.msra.mxu0 0
    %634 = vmatprep.subr.bf16.mxu0 0
    %635 = vmatpush2.bf16.xpose.msra.mxu0 0
    %636 = vmatprep.subr.bf16.mxu0 0
    %637 = vmatpush2.bf16.xpose.msra.mxu0 0
    %638 = vmatprep.subr.bf16.mxu0 0
    %639 = vmatpush2.bf16.xpose.msra.mxu0 0
    %640 = vmatprep.subr.bf16.mxu0 0
    %641 = vmatpush2.bf16.xpose.msra.mxu0 0
    %642 = vmatprep.subr.bf16.mxu0 0
    %643 = vmatpush2.bf16.xpose.msra.mxu0 0
    %644 = vmatprep.subr.bf16.mxu0 0
    %645 = vmatpush2.bf16.xpose.msra.mxu0 0
    %646 = vmatprep.mubr.bf16.mxu0 0
    %647 = vmatmul.mubr.bf16.gmra.mxu0 %v609
    %v648 = vpop.f32.mrf.mxu0
    %v649 = vadd.f32 %v263, %v648
    %v650 = vpop.f32.mrf.mxu0
    %v651 = vpop.f32.mrf.mxu0
    %v652 = vpop.f32.mrf.mxu0
    %653 = vdwg.mxu0
    %654 = vrot.lane.b32.xlu0 %v382, 120
    %v655 = vpop.permute.xlu0 %654
    %656 = vrot.lane.b32.xlu0 %v382, 88
    %v657 = vpop.permute.xlu0 %656
    %v659 = vsel %vm386, %v655, 0
    %v662 = vsel %vm386, %v657, 0
    %664 = vmatprep.subr.bf16.mxu0 0
    %665 = vmatpush1.bf16.xpose.msra.mxu0 0
    %666 = vmatprep.subr.bf16.mxu0 0
    %667 = vmatpush1.bf16.xpose.msra.mxu0 0
    %668 = vmatprep.subr.bf16.mxu0 0
    %669 = vmatpush1.bf16.xpose.msra.mxu0 0
    %670 = vmatprep.subr.bf16.mxu0 0
    %671 = vmatpush1.bf16.xpose.msra.mxu0 0
    %672 = vmatprep.subr.bf16.mxu0 0
    %673 = vmatpush1.bf16.xpose.msra.mxu0 0
    %674 = vmatprep.subr.bf16.mxu0 0
    %675 = vmatpush1.bf16.xpose.msra.mxu0 0
    %676 = vmatprep.subr.bf16.mxu0 0
    %677 = vmatpush1.bf16.xpose.msra.mxu0 0
    %678 = vmatprep.subr.bf16.mxu0 0
    %679 = vmatpush1.bf16.xpose.msra.mxu0 %v662
    %680 = vmatprep.subr.bf16.mxu0 0
    %681 = vmatpush2.bf16.xpose.msra.mxu0 0
    %682 = vmatprep.subr.bf16.mxu0 0
    %683 = vmatpush2.bf16.xpose.msra.mxu0 0
    %684 = vmatprep.subr.bf16.mxu0 0
    %685 = vmatpush2.bf16.xpose.msra.mxu0 0
    %686 = vmatprep.subr.bf16.mxu0 0
    %687 = vmatpush2.bf16.xpose.msra.mxu0 0
    %688 = vmatprep.subr.bf16.mxu0 0
    %689 = vmatpush2.bf16.xpose.msra.mxu0 0
    %690 = vmatprep.subr.bf16.mxu0 0
    %691 = vmatpush2.bf16.xpose.msra.mxu0 0
    %692 = vmatprep.subr.bf16.mxu0 0
    %693 = vmatpush2.bf16.xpose.msra.mxu0 0
    %694 = vmatprep.subr.bf16.mxu0 0
    %695 = vmatpush2.bf16.xpose.msra.mxu0 0
    %696 = vmatprep.mubr.bf16.mxu0 0
    %697 = vmatmul.mubr.bf16.gmra.mxu0 %v659
    %v698 = vpop.f32.mrf.mxu0
    %v699 = vadd.f32 %v263, %v698
    %v700 = vpop.f32.mrf.mxu0
    %v701 = vpop.f32.mrf.mxu0
    %v702 = vpop.f32.mrf.mxu0
    %703 = vdwg.mxu0
    %v704 = vsel %vm386, %v649, -inf
    %705 = vmax.xlane.f32.xlu0 %v704
    %v706 = vpop.xlane.xlu0 %705
    %v707 = vsel %vm386, %v699, -inf
    %708 = vmax.xlane.f32.xlu0 %v707
    %v709 = vpop.xlane.xlu0 %708
    %v710 = vsub.f32 %v649, %v706
    %v711 = vsub.f32 %v699, %v709
    %v712 = vmul.f32 %v710, 1.442695
    %v713 = vpow.pop %v712
    %v714 = vmul.f32 %v711, 1.442695
    %v715 = vpow.pop %v714
    %v716 = vsel %vm386, %v713, 0.0
    %717 = vadd.xlane.f32.xlu0 %v716
    %v718 = vpop.xlane.xlu0 %717
    %v719 = vsel %vm386, %v715, 0.0
    %720 = vadd.xlane.f32.xlu0 %v719
    %v721 = vpop.xlane.xlu0 %720
    %v722 = vrcp.pop %v718
    %v723 = vrcp.pop %v721
    %v724 = vmul.f32 %v713, %v722
    %v725 = vmul.f32 %v715, %v723
    %v726 = vpack.c.bf16 %v724, %v724
    %v727 = vpack.c.bf16 %v725, %v725
    %728 = vrot.lane.b32.xlu0 %v381, 56
    %v729 = vpop.permute.xlu0 %728
    %v731 = vsel %vm386, %v726, 0
    %v734 = vsel %vm511, %v729, 0
    %736 = vmatprep.subr.bf16.mxu0 0
    %737 = vmatpush1.bf16.msra.mxu0 0
    %738 = vmatprep.subr.bf16.mxu0 0
    %739 = vmatpush1.bf16.msra.mxu0 0
    %740 = vmatprep.subr.bf16.mxu0 0
    %741 = vmatpush1.bf16.msra.mxu0 0
    %742 = vmatprep.subr.bf16.mxu0 0
    %743 = vmatpush1.bf16.msra.mxu0 0
    %744 = vmatprep.subr.bf16.mxu0 0
    %745 = vmatpush1.bf16.msra.mxu0 0
    %746 = vmatprep.subr.bf16.mxu0 0
    %747 = vmatpush1.bf16.msra.mxu0 0
    %748 = vmatprep.subr.bf16.mxu0 0
    %749 = vmatpush1.bf16.msra.mxu0 0
    %750 = vmatprep.subr.bf16.mxu0 0
    %751 = vmatpush1.bf16.msra.mxu0 %v734
    %752 = vmatprep.subr.bf16.mxu0 0
    %753 = vmatpush2.bf16.msra.mxu0 0
    %754 = vmatprep.subr.bf16.mxu0 0
    %755 = vmatpush2.bf16.msra.mxu0 0
    %756 = vmatprep.subr.bf16.mxu0 0
    %757 = vmatpush2.bf16.msra.mxu0 0
    %758 = vmatprep.subr.bf16.mxu0 0
    %759 = vmatpush2.bf16.msra.mxu0 0
    %760 = vmatprep.subr.bf16.mxu0 0
    %761 = vmatpush2.bf16.msra.mxu0 0
    %762 = vmatprep.subr.bf16.mxu0 0
    %763 = vmatpush2.bf16.msra.mxu0 0
    %764 = vmatprep.subr.bf16.mxu0 0
    %765 = vmatpush2.bf16.msra.mxu0 0
    %766 = vmatprep.subr.bf16.mxu0 0
    %767 = vmatpush2.bf16.msra.mxu0 0
    %768 = vmatprep.mubr.bf16.mxu0 0
    %769 = vmatmul.mubr.bf16.gmra.mxu0 %v731
    %v770 = vpop.f32.mrf.mxu0
    %v771 = vadd.f32 0.0, %v770
    %v772 = vpop.f32.mrf.mxu0
    %v773 = vpop.f32.mrf.mxu0
    %v774 = vpop.f32.mrf.mxu0
    %775 = vdwg.mxu0
    %776 = vrot.lane.b32.xlu0 %v382, 56
    %v777 = vpop.permute.xlu0 %776
    %v779 = vsel %vm386, %v727, 0
    %v782 = vsel %vm511, %v777, 0
    %784 = vmatprep.subr.bf16.mxu0 0
    %785 = vmatpush1.bf16.msra.mxu0 0
    %786 = vmatprep.subr.bf16.mxu0 0
    %787 = vmatpush1.bf16.msra.mxu0 0
    %788 = vmatprep.subr.bf16.mxu0 0
    %789 = vmatpush1.bf16.msra.mxu0 0
    %790 = vmatprep.subr.bf16.mxu0 0
    %791 = vmatpush1.bf16.msra.mxu0 0
    %792 = vmatprep.subr.bf16.mxu0 0
    %793 = vmatpush1.bf16.msra.mxu0 0
    %794 = vmatprep.subr.bf16.mxu0 0
    %795 = vmatpush1.bf16.msra.mxu0 0
    %796 = vmatprep.subr.bf16.mxu0 0
    %797 = vmatpush1.bf16.msra.mxu0 0
    %798 = vmatprep.subr.bf16.mxu0 0
    %799 = vmatpush1.bf16.msra.mxu0 %v782
    %800 = vmatprep.subr.bf16.mxu0 0
    %801 = vmatpush2.bf16.msra.mxu0 0
    %802 = vmatprep.subr.bf16.mxu0 0
    %803 = vmatpush2.bf16.msra.mxu0 0
    %804 = vmatprep.subr.bf16.mxu0 0
    %805 = vmatpush2.bf16.msra.mxu0 0
    %806 = vmatprep.subr.bf16.mxu0 0
    %807 = vmatpush2.bf16.msra.mxu0 0
    %808 = vmatprep.subr.bf16.mxu0 0
    %809 = vmatpush2.bf16.msra.mxu0 0
    %810 = vmatprep.subr.bf16.mxu0 0
    %811 = vmatpush2.bf16.msra.mxu0 0
    %812 = vmatprep.subr.bf16.mxu0 0
    %813 = vmatpush2.bf16.msra.mxu0 0
    %814 = vmatprep.subr.bf16.mxu0 0
    %815 = vmatpush2.bf16.msra.mxu0 0
    %816 = vmatprep.mubr.bf16.mxu0 0
    %817 = vmatmul.mubr.bf16.gmra.mxu0 %v779
    %v818 = vpop.f32.mrf.mxu0
    %v819 = vadd.f32 0.0, %v818
    %v820 = vpop.f32.mrf.mxu0
    %v821 = vpop.f32.mrf.mxu0
    %v822 = vpop.f32.mrf.mxu0
    %823 = vdwg.mxu0
    %v824 = vpack.c.bf16 %v819, %v771
    %v826 = vsel %vm386, %v824, 0
    %v829 = vsel %vm511, %v378, 0
    %831 = vmatprep.subr.bf16.mxu0 0
    %832 = vmatpush1.bf16.msra.mxu0 0
    %833 = vmatprep.subr.bf16.mxu0 0
    %834 = vmatpush1.bf16.msra.mxu0 0
    %835 = vmatprep.subr.bf16.mxu0 0
    %836 = vmatpush1.bf16.msra.mxu0 0
    %837 = vmatprep.subr.bf16.mxu0 0
    %838 = vmatpush1.bf16.msra.mxu0 0
    %839 = vmatprep.subr.bf16.mxu0 0
    %840 = vmatpush1.bf16.msra.mxu0 0
    %841 = vmatprep.subr.bf16.mxu0 0
    %842 = vmatpush1.bf16.msra.mxu0 0
    %843 = vmatprep.subr.bf16.mxu0 0
    %844 = vmatpush1.bf16.msra.mxu0 0
    %845 = vmatprep.subr.bf16.mxu0 0
    %846 = vmatpush1.bf16.msra.mxu0 %v829
    %847 = vmatprep.subr.bf16.mxu0 0
    %848 = vmatpush2.bf16.msra.mxu0 0
    %849 = vmatprep.subr.bf16.mxu0 0
    %850 = vmatpush2.bf16.msra.mxu0 0
    %851 = vmatprep.subr.bf16.mxu0 0
    %852 = vmatpush2.bf16.msra.mxu0 0
    %853 = vmatprep.subr.bf16.mxu0 0
    %854 = vmatpush2.bf16.msra.mxu0 0
    %855 = vmatprep.subr.bf16.mxu0 0
    %856 = vmatpush2.bf16.msra.mxu0 0
    %857 = vmatprep.subr.bf16.mxu0 0
    %858 = vmatpush2.bf16.msra.mxu0 0
    %859 = vmatprep.subr.bf16.mxu0 0
    %860 = vmatpush2.bf16.msra.mxu0 0
    %861 = vmatprep.subr.bf16.mxu0 0
    %862 = vmatpush2.bf16.msra.mxu0 0
    %863 = vmatprep.mubr.bf16.mxu0 0
    %864 = vmatmul.mubr.bf16.gmra.mxu0 %v826
    %v865 = vpop.f32.mrf.mxu0
    %v866 = vadd.f32 0.0, %v865
    %v867 = vpop.f32.mrf.mxu0
    %v868 = vpop.f32.mrf.mxu0
    %v869 = vadd.f32 0.0, %v868
    %v870 = vpop.f32.mrf.mxu0
    %871 = vdwg.mxu0
    %v873 = vsel %vm386, %v603, 0
    %v876 = vsel %vm511, %v377, 0
    %878 = vmatprep.subr.bf16.mxu0 0
    %879 = vmatpush1.bf16.msra.mxu0 0
    %880 = vmatprep.subr.bf16.mxu0 0
    %881 = vmatpush1.bf16.msra.mxu0 0
    %882 = vmatprep.subr.bf16.mxu0 0
    %883 = vmatpush1.bf16.msra.mxu0 0
    %884 = vmatprep.subr.bf16.mxu0 0
    %885 = vmatpush1.bf16.msra.mxu0 0
    %886 = vmatprep.subr.bf16.mxu0 0
    %887 = vmatpush1.bf16.msra.mxu0 0
    %888 = vmatprep.subr.bf16.mxu0 0
    %889 = vmatpush1.bf16.msra.mxu0 0
    %890 = vmatprep.subr.bf16.mxu0 0
    %891 = vmatpush1.bf16.msra.mxu0 0
    %892 = vmatprep.subr.bf16.mxu0 0
    %893 = vmatpush1.bf16.msra.mxu0 %v876
    %894 = vmatprep.subr.bf16.mxu0 0
    %895 = vmatpush2.bf16.msra.mxu0 0
    %896 = vmatprep.subr.bf16.mxu0 0
    %897 = vmatpush2.bf16.msra.mxu0 0
    %898 = vmatprep.subr.bf16.mxu0 0
    %899 = vmatpush2.bf16.msra.mxu0 0
    %900 = vmatprep.subr.bf16.mxu0 0
    %901 = vmatpush2.bf16.msra.mxu0 0
    %902 = vmatprep.subr.bf16.mxu0 0
    %903 = vmatpush2.bf16.msra.mxu0 0
    %904 = vmatprep.subr.bf16.mxu0 0
    %905 = vmatpush2.bf16.msra.mxu0 0
    %906 = vmatprep.subr.bf16.mxu0 0
    %907 = vmatpush2.bf16.msra.mxu0 0
    %908 = vmatprep.subr.bf16.mxu0 0
    %909 = vmatpush2.bf16.msra.mxu0 0
    %910 = vmatprep.mubr.bf16.mxu0 0
    %911 = vmatmul.mubr.bf16.gmra.mxu0 %v873
    %v912 = vpop.f32.mrf.mxu0
    %v913 = vadd.f32 %v866, %v912
    %v914 = vpop.f32.mrf.mxu0
    %v915 = vpop.f32.mrf.mxu0
    %v916 = vadd.f32 %v869, %v915
    %v917 = vpop.f32.mrf.mxu0
    %918 = vdwg.mxu0
    %919 = vrot.lane.b32.xlu0 %v381, 112
    %v920 = vpop.permute.xlu0 %919
    %921 = vrot.lane.b32.xlu0 %v381, 80
    %v922 = vpop.permute.xlu0 %921
    %v924 = vsel %vm386, %v920, 0
    %v927 = vsel %vm386, %v922, 0
    %929 = vmatprep.subr.bf16.mxu0 0
    %930 = vmatpush1.bf16.xpose.msra.mxu0 0
    %931 = vmatprep.subr.bf16.mxu0 0
    %932 = vmatpush1.bf16.xpose.msra.mxu0 0
    %933 = vmatprep.subr.bf16.mxu0 0
    %934 = vmatpush1.bf16.xpose.msra.mxu0 0
    %935 = vmatprep.subr.bf16.mxu0 0
    %936 = vmatpush1.bf16.xpose.msra.mxu0 0
    %937 = vmatprep.subr.bf16.mxu0 0
    %938 = vmatpush1.bf16.xpose.msra.mxu0 0
    %939 = vmatprep.subr.bf16.mxu0 0
    %940 = vmatpush1.bf16.xpose.msra.mxu0 0
    %941 = vmatprep.subr.bf16.mxu0 0
    %942 = vmatpush1.bf16.xpose.msra.mxu0 0
    %943 = vmatprep.subr.bf16.mxu0 0
    %944 = vmatpush1.bf16.xpose.msra.mxu0 %v927
    %945 = vmatprep.subr.bf16.mxu0 0
    %946 = vmatpush2.bf16.xpose.msra.mxu0 0
    %947 = vmatprep.subr.bf16.mxu0 0
    %948 = vmatpush2.bf16.xpose.msra.mxu0 0
    %949 = vmatprep.subr.bf16.mxu0 0
    %950 = vmatpush2.bf16.xpose.msra.mxu0 0
    %951 = vmatprep.subr.bf16.mxu0 0
    %952 = vmatpush2.bf16.xpose.msra.mxu0 0
    %953 = vmatprep.subr.bf16.mxu0 0
    %954 = vmatpush2.bf16.xpose.msra.mxu0 0
    %955 = vmatprep.subr.bf16.mxu0 0
    %956 = vmatpush2.bf16.xpose.msra.mxu0 0
    %957 = vmatprep.subr.bf16.mxu0 0
    %958 = vmatpush2.bf16.xpose.msra.mxu0 0
    %959 = vmatprep.subr.bf16.mxu0 0
    %960 = vmatpush2.bf16.xpose.msra.mxu0 0
    %961 = vmatprep.mubr.bf16.mxu0 0
    %962 = vmatmul.mubr.bf16.gmra.mxu0 %v924
    %v963 = vpop.f32.mrf.mxu0
    %v964 = vadd.f32 %v263, %v963
    %v965 = vpop.f32.mrf.mxu0
    %v966 = vpop.f32.mrf.mxu0
    %v967 = vpop.f32.mrf.mxu0
    %968 = vdwg.mxu0
    %969 = vrot.lane.b32.xlu0 %v382, 112
    %v970 = vpop.permute.xlu0 %969
    %971 = vrot.lane.b32.xlu0 %v382, 80
    %v972 = vpop.permute.xlu0 %971
    %v974 = vsel %vm386, %v970, 0
    %v977 = vsel %vm386, %v972, 0
    %979 = vmatprep.subr.bf16.mxu0 0
    %980 = vmatpush1.bf16.xpose.msra.mxu0 0
    %981 = vmatprep.subr.bf16.mxu0 0
    %982 = vmatpush1.bf16.xpose.msra.mxu0 0
    %983 = vmatprep.subr.bf16.mxu0 0
    %984 = vmatpush1.bf16.xpose.msra.mxu0 0
    %985 = vmatprep.subr.bf16.mxu0 0
    %986 = vmatpush1.bf16.xpose.msra.mxu0 0
    %987 = vmatprep.subr.bf16.mxu0 0
    %988 = vmatpush1.bf16.xpose.msra.mxu0 0
    %989 = vmatprep.subr.bf16.mxu0 0
    %990 = vmatpush1.bf16.xpose.msra.mxu0 0
    %991 = vmatprep.subr.bf16.mxu0 0
    %992 = vmatpush1.bf16.xpose.msra.mxu0 0
    %993 = vmatprep.subr.bf16.mxu0 0
    %994 = vmatpush1.bf16.xpose.msra.mxu0 %v977
    %995 = vmatprep.subr.bf16.mxu0 0
    %996 = vmatpush2.bf16.xpose.msra.mxu0 0
    %997 = vmatprep.subr.bf16.mxu0 0
    %998 = vmatpush2.bf16.xpose.msra.mxu0 0
    %999 = vmatprep.subr.bf16.mxu0 0
    %1000 = vmatpush2.bf16.xpose.msra.mxu0 0
    %1001 = vmatprep.subr.bf16.mxu0 0
    %1002 = vmatpush2.bf16.xpose.msra.mxu0 0
    %1003 = vmatprep.subr.bf16.mxu0 0
    %1004 = vmatpush2.bf16.xpose.msra.mxu0 0
    %1005 = vmatprep.subr.bf16.mxu0 0
    %1006 = vmatpush2.bf16.xpose.msra.mxu0 0
    %1007 = vmatprep.subr.bf16.mxu0 0
    %1008 = vmatpush2.bf16.xpose.msra.mxu0 0
    %1009 = vmatprep.subr.bf16.mxu0 0
    %1010 = vmatpush2.bf16.xpose.msra.mxu0 0
    %1011 = vmatprep.mubr.bf16.mxu0 0
    %1012 = vmatmul.mubr.bf16.gmra.mxu0 %v974
    %v1013 = vpop.f32.mrf.mxu0
    %v1014 = vadd.f32 %v263, %v1013
    %v1015 = vpop.f32.mrf.mxu0
    %v1016 = vpop.f32.mrf.mxu0
    %v1017 = vpop.f32.mrf.mxu0
    %1018 = vdwg.mxu0
    %v1019 = vsel %vm386, %v964, -inf
    %1020 = vmax.xlane.f32.xlu0 %v1019
    %v1021 = vpop.xlane.xlu0 %1020
    %v1022 = vsel %vm386, %v1014, -inf
    %1023 = vmax.xlane.f32.xlu0 %v1022
    %v1024 = vpop.xlane.xlu0 %1023
    %v1025 = vsub.f32 %v964, %v1021
    %v1026 = vsub.f32 %v1014, %v1024
    %v1027 = vmul.f32 %v1025, 1.442695
    %v1028 = vpow.pop %v1027
    %v1029 = vmul.f32 %v1026, 1.442695
    %v1030 = vpow.pop %v1029
    %v1031 = vsel %vm386, %v1028, 0.0
    %1032 = vadd.xlane.f32.xlu0 %v1031
    %v1033 = vpop.xlane.xlu0 %1032
    %v1034 = vsel %vm386, %v1030, 0.0
    %1035 = vadd.xlane.f32.xlu0 %v1034
    %v1036 = vpop.xlane.xlu0 %1035
    %v1037 = vrcp.pop %v1033
    %v1038 = vrcp.pop %v1036
    %v1039 = vmul.f32 %v1028, %v1037
    %v1040 = vmul.f32 %v1030, %v1038
    %v1041 = vpack.c.bf16 %v1039, %v1039
    %v1042 = vpack.c.bf16 %v1040, %v1040
    %1043 = vrot.lane.b32.xlu0 %v381, 48
    %v1044 = vpop.permute.xlu0 %1043
    %v1046 = vsel %vm386, %v1041, 0
    %v1049 = vsel %vm511, %v1044, 0
    %1051 = vmatprep.subr.bf16.mxu0 0
    %1052 = vmatpush1.bf16.msra.mxu0 0
    %1053 = vmatprep.subr.bf16.mxu0 0
    %1054 = vmatpush1.bf16.msra.mxu0 0
    %1055 = vmatprep.subr.bf16.mxu0 0
    %1056 = vmatpush1.bf16.msra.mxu0 0
    %1057 = vmatprep.subr.bf16.mxu0 0
    %1058 = vmatpush1.bf16.msra.mxu0 0
    %1059 = vmatprep.subr.bf16.mxu0 0
    %1060 = vmatpush1.bf16.msra.mxu0 0
    %1061 = vmatprep.subr.bf16.mxu0 0
    %1062 = vmatpush1.bf16.msra.mxu0 0
    %1063 = vmatprep.subr.bf16.mxu0 0
    %1064 = vmatpush1.bf16.msra.mxu0 0
    %1065 = vmatprep.subr.bf16.mxu0 0
    %1066 = vmatpush1.bf16.msra.mxu0 %v1049
    %1067 = vmatprep.subr.bf16.mxu0 0
    %1068 = vmatpush2.bf16.msra.mxu0 0
    %1069 = vmatprep.subr.bf16.mxu0 0
    %1070 = vmatpush2.bf16.msra.mxu0 0
    %1071 = vmatprep.subr.bf16.mxu0 0
    %1072 = vmatpush2.bf16.msra.mxu0 0
    %1073 = vmatprep.subr.bf16.mxu0 0
    %1074 = vmatpush2.bf16.msra.mxu0 0
    %1075 = vmatprep.subr.bf16.mxu0 0
    %1076 = vmatpush2.bf16.msra.mxu0 0
    %1077 = vmatprep.subr.bf16.mxu0 0
    %1078 = vmatpush2.bf16.msra.mxu0 0
    %1079 = vmatprep.subr.bf16.mxu0 0
    %1080 = vmatpush2.bf16.msra.mxu0 0
    %1081 = vmatprep.subr.bf16.mxu0 0
    %1082 = vmatpush2.bf16.msra.mxu0 0
    %1083 = vmatprep.mubr.bf16.mxu0 0
    %1084 = vmatmul.mubr.bf16.gmra.mxu0 %v1046
    %v1085 = vpop.f32.mrf.mxu0
    %v1086 = vadd.f32 0.0, %v1085
    %v1087 = vpop.f32.mrf.mxu0
    %v1088 = vpop.f32.mrf.mxu0
    %v1089 = vpop.f32.mrf.mxu0
    %1090 = vdwg.mxu0
    %1091 = vrot.lane.b32.xlu0 %v382, 48
    %v1092 = vpop.permute.xlu0 %1091
    %v1094 = vsel %vm386, %v1042, 0
    %v1097 = vsel %vm511, %v1092, 0
    %1099 = vmatprep.subr.bf16.mxu0 0
    %1100 = vmatpush1.bf16.msra.mxu0 0
    %1101 = vmatprep.subr.bf16.mxu0 0
    %1102 = vmatpush1.bf16.msra.mxu0 0
    %1103 = vmatprep.subr.bf16.mxu0 0
    %1104 = vmatpush1.bf16.msra.mxu0 0
    %1105 = vmatprep.subr.bf16.mxu0 0
    %1106 = vmatpush1.bf16.msra.mxu0 0
    %1107 = vmatprep.subr.bf16.mxu0 0
    %1108 = vmatpush1.bf16.msra.mxu0 0
    %1109 = vmatprep.subr.bf16.mxu0 0
    %1110 = vmatpush1.bf16.msra.mxu0 0
    %1111 = vmatprep.subr.bf16.mxu0 0
    %1112 = vmatpush1.bf16.msra.mxu0 0
    %1113 = vmatprep.subr.bf16.mxu0 0
    %1114 = vmatpush1.bf16.msra.mxu0 %v1097
    %1115 = vmatprep.subr.bf16.mxu0 0
    %1116 = vmatpush2.bf16.msra.mxu0 0
    %1117 = vmatprep.subr.bf16.mxu0 0
    %1118 = vmatpush2.bf16.msra.mxu0 0
    %1119 = vmatprep.subr.bf16.mxu0 0
    %1120 = vmatpush2.bf16.msra.mxu0 0
    %1121 = vmatprep.subr.bf16.mxu0 0
    %1122 = vmatpush2.bf16.msra.mxu0 0
    %1123 = vmatprep.subr.bf16.mxu0 0
    %1124 = vmatpush2.bf16.msra.mxu0 0
    %1125 = vmatprep.subr.bf16.mxu0 0
    %1126 = vmatpush2.bf16.msra.mxu0 0
    %1127 = vmatprep.subr.bf16.mxu0 0
    %1128 = vmatpush2.bf16.msra.mxu0 0
    %1129 = vmatprep.subr.bf16.mxu0 0
    %1130 = vmatpush2.bf16.msra.mxu0 0
    %1131 = vmatprep.mubr.bf16.mxu0 0
    %1132 = vmatmul.mubr.bf16.gmra.mxu0 %v1094
    %v1133 = vpop.f32.mrf.mxu0
    %v1134 = vadd.f32 0.0, %v1133
    %v1135 = vpop.f32.mrf.mxu0
    %v1136 = vpop.f32.mrf.mxu0
    %v1137 = vpop.f32.mrf.mxu0
    %1138 = vdwg.mxu0
    %v1139 = vpack.c.bf16 %v1134, %v1086
    %v1141 = vsel %vm386, %v1139, 0
    %v1144 = vsel %vm511, %v379, 0
    %1146 = vmatprep.subr.bf16.mxu0 0
    %1147 = vmatpush1.bf16.msra.mxu0 0
    %1148 = vmatprep.subr.bf16.mxu0 0
    %1149 = vmatpush1.bf16.msra.mxu0 0
    %1150 = vmatprep.subr.bf16.mxu0 0
    %1151 = vmatpush1.bf16.msra.mxu0 0
    %1152 = vmatprep.subr.bf16.mxu0 0
    %1153 = vmatpush1.bf16.msra.mxu0 0
    %1154 = vmatprep.subr.bf16.mxu0 0
    %1155 = vmatpush1.bf16.msra.mxu0 0
    %1156 = vmatprep.subr.bf16.mxu0 0
    %1157 = vmatpush1.bf16.msra.mxu0 0
    %1158 = vmatprep.subr.bf16.mxu0 0
    %1159 = vmatpush1.bf16.msra.mxu0 0
    %1160 = vmatprep.subr.bf16.mxu0 0
    %1161 = vmatpush1.bf16.msra.mxu0 %v1144
    %1162 = vmatprep.subr.bf16.mxu0 0
    %1163 = vmatpush2.bf16.msra.mxu0 0
    %1164 = vmatprep.subr.bf16.mxu0 0
    %1165 = vmatpush2.bf16.msra.mxu0 0
    %1166 = vmatprep.subr.bf16.mxu0 0
    %1167 = vmatpush2.bf16.msra.mxu0 0
    %1168 = vmatprep.subr.bf16.mxu0 0
    %1169 = vmatpush2.bf16.msra.mxu0 0
    %1170 = vmatprep.subr.bf16.mxu0 0
    %1171 = vmatpush2.bf16.msra.mxu0 0
    %1172 = vmatprep.subr.bf16.mxu0 0
    %1173 = vmatpush2.bf16.msra.mxu0 0
    %1174 = vmatprep.subr.bf16.mxu0 0
    %1175 = vmatpush2.bf16.msra.mxu0 0
    %1176 = vmatprep.subr.bf16.mxu0 0
    %1177 = vmatpush2.bf16.msra.mxu0 0
    %1178 = vmatprep.mubr.bf16.mxu0 0
    %1179 = vmatmul.mubr.bf16.gmra.mxu0 %v1141
    %v1180 = vpop.f32.mrf.mxu0
    %v1181 = vadd.f32 0.0, %v1180
    %v1182 = vpop.f32.mrf.mxu0
    %v1183 = vpop.f32.mrf.mxu0
    %v1184 = vadd.f32 0.0, %v1183
    %v1185 = vpop.f32.mrf.mxu0
    %1186 = vdwg.mxu0
    %v1187 = vadd.f32 %v913, %v1181
    %v1188 = vadd.f32 %v916, %v1184
    %1189 = vrot.lane.b32.xlu0 %v381, 104
    %v1190 = vpop.permute.xlu0 %1189
    %1191 = vrot.lane.b32.xlu0 %v381, 72
    %v1192 = vpop.permute.xlu0 %1191
    %v1194 = vsel %vm386, %v1190, 0
    %v1197 = vsel %vm386, %v1192, 0
    %1199 = vmatprep.subr.bf16.mxu0 0
    %1200 = vmatpush1.bf16.xpose.msra.mxu0 0
    %1201 = vmatprep.subr.bf16.mxu0 0
    %1202 = vmatpush1.bf16.xpose.msra.mxu0 0
    %1203 = vmatprep.subr.bf16.mxu0 0
    %1204 = vmatpush1.bf16.xpose.msra.mxu0 0
    %1205 = vmatprep.subr.bf16.mxu0 0
    %1206 = vmatpush1.bf16.xpose.msra.mxu0 0
    %1207 = vmatprep.subr.bf16.mxu0 0
    %1208 = vmatpush1.bf16.xpose.msra.mxu0 0
    %1209 = vmatprep.subr.bf16.mxu0 0
    %1210 = vmatpush1.bf16.xpose.msra.mxu0 0
    %1211 = vmatprep.subr.bf16.mxu0 0
    %1212 = vmatpush1.bf16.xpose.msra.mxu0 0
    %1213 = vmatprep.subr.bf16.mxu0 0
    %1214 = vmatpush1.bf16.xpose.msra.mxu0 %v1197
    %1215 = vmatprep.subr.bf16.mxu0 0
    %1216 = vmatpush2.bf16.xpose.msra.mxu0 0
    %1217 = vmatprep.subr.bf16.mxu0 0
    %1218 = vmatpush2.bf16.xpose.msra.mxu0 0
    %1219 = vmatprep.subr.bf16.mxu0 0
    %1220 = vmatpush2.bf16.xpose.msra.mxu0 0
    %1221 = vmatprep.subr.bf16.mxu0 0
    %1222 = vmatpush2.bf16.xpose.msra.mxu0 0
    %1223 = vmatprep.subr.bf16.mxu0 0
    %1224 = vmatpush2.bf16.xpose.msra.mxu0 0
    %1225 = vmatprep.subr.bf16.mxu0 0
    %1226 = vmatpush2.bf16.xpose.msra.mxu0 0
    %1227 = vmatprep.subr.bf16.mxu0 0
    %1228 = vmatpush2.bf16.xpose.msra.mxu0 0
    %1229 = vmatprep.subr.bf16.mxu0 0
    %1230 = vmatpush2.bf16.xpose.msra.mxu0 0
    %1231 = vmatprep.mubr.bf16.mxu0 0
    %1232 = vmatmul.mubr.bf16.gmra.mxu0 %v1194
    %v1233 = vpop.f32.mrf.mxu0
    %v1234 = vadd.f32 %v263, %v1233
    %v1235 = vpop.f32.mrf.mxu0
    %v1236 = vpop.f32.mrf.mxu0
    %v1237 = vpop.f32.mrf.mxu0
    %1238 = vdwg.mxu0
    %1239 = vrot.lane.b32.xlu0 %v382, 104
    %v1240 = vpop.permute.xlu0 %1239
    %1241 = vrot.lane.b32.xlu0 %v382, 72
    %v1242 = vpop.permute.xlu0 %1241
    %v1244 = vsel %vm386, %v1240, 0
    %v1247 = vsel %vm386, %v1242, 0
    %1249 = vmatprep.subr.bf16.mxu0 0
    %1250 = vmatpush1.bf16.xpose.msra.mxu0 0
    %1251 = vmatprep.subr.bf16.mxu0 0
    %1252 = vmatpush1.bf16.xpose.msra.mxu0 0
    %1253 = vmatprep.subr.bf16.mxu0 0
    %1254 = vmatpush1.bf16.xpose.msra.mxu0 0
    %1255 = vmatprep.subr.bf16.mxu0 0
    %1256 = vmatpush1.bf16.xpose.msra.mxu0 0
    %1257 = vmatprep.subr.bf16.mxu0 0
    %1258 = vmatpush1.bf16.xpose.msra.mxu0 0
    %1259 = vmatprep.subr.bf16.mxu0 0
    %1260 = vmatpush1.bf16.xpose.msra.mxu0 0
    %1261 = vmatprep.subr.bf16.mxu0 0
    %1262 = vmatpush1.bf16.xpose.msra.mxu0 0
    %1263 = vmatprep.subr.bf16.mxu0 0
    %1264 = vmatpush1.bf16.xpose.msra.mxu0 %v1247
    %1265 = vmatprep.subr.bf16.mxu0 0
    %1266 = vmatpush2.bf16.xpose.msra.mxu0 0
    %1267 = vmatprep.subr.bf16.mxu0 0
    %1268 = vmatpush2.bf16.xpose.msra.mxu0 0
    %1269 = vmatprep.subr.bf16.mxu0 0
    %1270 = vmatpush2.bf16.xpose.msra.mxu0 0
    %1271 = vmatprep.subr.bf16.mxu0 0
    %1272 = vmatpush2.bf16.xpose.msra.mxu0 0
    %1273 = vmatprep.subr.bf16.mxu0 0
    %1274 = vmatpush2.bf16.xpose.msra.mxu0 0
    %1275 = vmatprep.subr.bf16.mxu0 0
    %1276 = vmatpush2.bf16.xpose.msra.mxu0 0
    %1277 = vmatprep.subr.bf16.mxu0 0
    %1278 = vmatpush2.bf16.xpose.msra.mxu0 0
    %1279 = vmatprep.subr.bf16.mxu0 0
    %1280 = vmatpush2.bf16.xpose.msra.mxu0 0
    %1281 = vmatprep.mubr.bf16.mxu0 0
    %1282 = vmatmul.mubr.bf16.gmra.mxu0 %v1244
    %v1283 = vpop.f32.mrf.mxu0
    %v1284 = vadd.f32 %v263, %v1283
    %v1285 = vpop.f32.mrf.mxu0
    %v1286 = vpop.f32.mrf.mxu0
    %v1287 = vpop.f32.mrf.mxu0
    %1288 = vdwg.mxu0
    %v1289 = vsel %vm386, %v1234, -inf
    %1290 = vmax.xlane.f32.xlu0 %v1289
    %v1291 = vpop.xlane.xlu0 %1290
    %v1292 = vsel %vm386, %v1284, -inf
    %1293 = vmax.xlane.f32.xlu0 %v1292
    %v1294 = vpop.xlane.xlu0 %1293
    %v1295 = vsub.f32 %v1234, %v1291
    %v1296 = vsub.f32 %v1284, %v1294
    %v1297 = vmul.f32 %v1295, 1.442695
    %v1298 = vpow.pop %v1297
    %v1299 = vmul.f32 %v1296, 1.442695
    %v1300 = vpow.pop %v1299
    %v1301 = vsel %vm386, %v1298, 0.0
    %1302 = vadd.xlane.f32.xlu0 %v1301
    %v1303 = vpop.xlane.xlu0 %1302
    %v1304 = vsel %vm386, %v1300, 0.0
    %1305 = vadd.xlane.f32.xlu0 %v1304
    %v1306 = vpop.xlane.xlu0 %1305
    %v1307 = vrcp.pop %v1303
    %v1308 = vrcp.pop %v1306
    %v1309 = vmul.f32 %v1298, %v1307
    %v1310 = vmul.f32 %v1300, %v1308
    %v1311 = vpack.c.bf16 %v1309, %v1309
    %v1312 = vpack.c.bf16 %v1310, %v1310
    %1313 = vrot.lane.b32.xlu0 %v381, 40
    %v1314 = vpop.permute.xlu0 %1313
    %v1316 = vsel %vm386, %v1311, 0
    %v1319 = vsel %vm511, %v1314, 0
    %1321 = vmatprep.subr.bf16.mxu0 0
    %1322 = vmatpush1.bf16.msra.mxu0 0
    %1323 = vmatprep.subr.bf16.mxu0 0
    %1324 = vmatpush1.bf16.msra.mxu0 0
    %1325 = vmatprep.subr.bf16.mxu0 0
    %1326 = vmatpush1.bf16.msra.mxu0 0
    %1327 = vmatprep.subr.bf16.mxu0 0
    %1328 = vmatpush1.bf16.msra.mxu0 0
    %1329 = vmatprep.subr.bf16.mxu0 0
    %1330 = vmatpush1.bf16.msra.mxu0 0
    %1331 = vmatprep.subr.bf16.mxu0 0
    %1332 = vmatpush1.bf16.msra.mxu0 0
    %1333 = vmatprep.subr.bf16.mxu0 0
    %1334 = vmatpush1.bf16.msra.mxu0 0
    %1335 = vmatprep.subr.bf16.mxu0 0
    %1336 = vmatpush1.bf16.msra.mxu0 %v1319
    %1337 = vmatprep.subr.bf16.mxu0 0
    %1338 = vmatpush2.bf16.msra.mxu0 0
    %1339 = vmatprep.subr.bf16.mxu0 0
    %1340 = vmatpush2.bf16.msra.mxu0 0
    %1341 = vmatprep.subr.bf16.mxu0 0
    %1342 = vmatpush2.bf16.msra.mxu0 0
    %1343 = vmatprep.subr.bf16.mxu0 0
    %1344 = vmatpush2.bf16.msra.mxu0 0
    %1345 = vmatprep.subr.bf16.mxu0 0
    %1346 = vmatpush2.bf16.msra.mxu0 0
    %1347 = vmatprep.subr.bf16.mxu0 0
    %1348 = vmatpush2.bf16.msra.mxu0 0
    %1349 = vmatprep.subr.bf16.mxu0 0
    %1350 = vmatpush2.bf16.msra.mxu0 0
    %1351 = vmatprep.subr.bf16.mxu0 0
    %1352 = vmatpush2.bf16.msra.mxu0 0
    %1353 = vmatprep.mubr.bf16.mxu0 0
    %1354 = vmatmul.mubr.bf16.gmra.mxu0 %v1316
    %v1355 = vpop.f32.mrf.mxu0
    %v1356 = vadd.f32 0.0, %v1355
    %v1357 = vpop.f32.mrf.mxu0
    %v1358 = vpop.f32.mrf.mxu0
    %v1359 = vpop.f32.mrf.mxu0
    %1360 = vdwg.mxu0
    %1361 = vrot.lane.b32.xlu0 %v382, 40
    %v1362 = vpop.permute.xlu0 %1361
    %v1364 = vsel %vm386, %v1312, 0
    %v1367 = vsel %vm511, %v1362, 0
    %1369 = vmatprep.subr.bf16.mxu0 0
    %1370 = vmatpush1.bf16.msra.mxu0 0
    %1371 = vmatprep.subr.bf16.mxu0 0
    %1372 = vmatpush1.bf16.msra.mxu0 0
    %1373 = vmatprep.subr.bf16.mxu0 0
    %1374 = vmatpush1.bf16.msra.mxu0 0
    %1375 = vmatprep.subr.bf16.mxu0 0
    %1376 = vmatpush1.bf16.msra.mxu0 0
    %1377 = vmatprep.subr.bf16.mxu0 0
    %1378 = vmatpush1.bf16.msra.mxu0 0
    %1379 = vmatprep.subr.bf16.mxu0 0
    %1380 = vmatpush1.bf16.msra.mxu0 0
    %1381 = vmatprep.subr.bf16.mxu0 0
    %1382 = vmatpush1.bf16.msra.mxu0 0
    %1383 = vmatprep.subr.bf16.mxu0 0
    %1384 = vmatpush1.bf16.msra.mxu0 %v1367
    %1385 = vmatprep.subr.bf16.mxu0 0
    %1386 = vmatpush2.bf16.msra.mxu0 0
    %1387 = vmatprep.subr.bf16.mxu0 0
    %1388 = vmatpush2.bf16.msra.mxu0 0
    %1389 = vmatprep.subr.bf16.mxu0 0
    %1390 = vmatpush2.bf16.msra.mxu0 0
    %1391 = vmatprep.subr.bf16.mxu0 0
    %1392 = vmatpush2.bf16.msra.mxu0 0
    %1393 = vmatprep.subr.bf16.mxu0 0
    %1394 = vmatpush2.bf16.msra.mxu0 0
    %1395 = vmatprep.subr.bf16.mxu0 0
    %1396 = vmatpush2.bf16.msra.mxu0 0
    %1397 = vmatprep.subr.bf16.mxu0 0
    %1398 = vmatpush2.bf16.msra.mxu0 0
    %1399 = vmatprep.subr.bf16.mxu0 0
    %1400 = vmatpush2.bf16.msra.mxu0 0
    %1401 = vmatprep.mubr.bf16.mxu0 0
    %1402 = vmatmul.mubr.bf16.gmra.mxu0 %v1364
    %v1403 = vpop.f32.mrf.mxu0
    %v1404 = vadd.f32 0.0, %v1403
    %v1405 = vpop.f32.mrf.mxu0
    %v1406 = vpop.f32.mrf.mxu0
    %v1407 = vpop.f32.mrf.mxu0
    %1408 = vdwg.mxu0
    %v1409 = vpack.c.bf16 %v1404, %v1356
    %v1411 = vsel %vm386, %v1409, 0
    %v1414 = vsel %vm511, %v380, 0
    %1416 = vmatprep.subr.bf16.mxu0 0
    %1417 = vmatpush1.bf16.msra.mxu0 0
    %1418 = vmatprep.subr.bf16.mxu0 0
    %1419 = vmatpush1.bf16.msra.mxu0 0
    %1420 = vmatprep.subr.bf16.mxu0 0
    %1421 = vmatpush1.bf16.msra.mxu0 0
    %1422 = vmatprep.subr.bf16.mxu0 0
    %1423 = vmatpush1.bf16.msra.mxu0 0
    %1424 = vmatprep.subr.bf16.mxu0 0
    %1425 = vmatpush1.bf16.msra.mxu0 0
    %1426 = vmatprep.subr.bf16.mxu0 0
    %1427 = vmatpush1.bf16.msra.mxu0 0
    %1428 = vmatprep.subr.bf16.mxu0 0
    %1429 = vmatpush1.bf16.msra.mxu0 0
    %1430 = vmatprep.subr.bf16.mxu0 0
    %1431 = vmatpush1.bf16.msra.mxu0 %v1414
    %1432 = vmatprep.subr.bf16.mxu0 0
    %1433 = vmatpush2.bf16.msra.mxu0 0
    %1434 = vmatprep.subr.bf16.mxu0 0
    %1435 = vmatpush2.bf16.msra.mxu0 0
    %1436 = vmatprep.subr.bf16.mxu0 0
    %1437 = vmatpush2.bf16.msra.mxu0 0
    %1438 = vmatprep.subr.bf16.mxu0 0
    %1439 = vmatpush2.bf16.msra.mxu0 0
    %1440 = vmatprep.subr.bf16.mxu0 0
    %1441 = vmatpush2.bf16.msra.mxu0 0
    %1442 = vmatprep.subr.bf16.mxu0 0
    %1443 = vmatpush2.bf16.msra.mxu0 0
    %1444 = vmatprep.subr.bf16.mxu0 0
    %1445 = vmatpush2.bf16.msra.mxu0 0
    %1446 = vmatprep.subr.bf16.mxu0 0
    %1447 = vmatpush2.bf16.msra.mxu0 0
    %1448 = vmatprep.mubr.bf16.mxu0 0
    %1449 = vmatmul.mubr.bf16.gmra.mxu0 %v1411
    %v1450 = vpop.f32.mrf.mxu0
    %v1451 = vadd.f32 0.0, %v1450
    %v1452 = vpop.f32.mrf.mxu0
    %v1453 = vpop.f32.mrf.mxu0
    %v1454 = vadd.f32 0.0, %v1453
    %v1455 = vpop.f32.mrf.mxu0
    %1456 = vdwg.mxu0
    %v1457 = vadd.f32 %v1187, %v1451
    %v1458 = vadd.f32 %v1188, %v1454
    %v1459 = vld [vmem:[%s8] sm:$0x1]
    %v1461 = vlaneseq
    %v1462 = vshrl.u32 %v1461, 7
    %v1463 = vsub.s32 0, %v1462
    %v1464 = vrot.slane %v1459, %v1463
    %v1466 = vadd.f32 %v1457, %v1464
    %v1467 = vadd.f32 %v1458, %v1464
    %v1468 = vadd.f32 %v1466, %v258
    %v1469 = vadd.f32 %v1467, %v259
    %v1470 = vld [vmem:[%s9] sm:$0x3]
    %v1471 = vsel %vm214, %v1468, 0.0
    %1472 = vadd.xlane.f32.xlu0 %v1471
    %v1473 = vpop.xlane.xlu0 %1472
    %v1474 = vsel %vm214, %v1469, 0.0
    %1475 = vadd.xlane.f32.xlu0 %v1474
    %v1476 = vpop.xlane.xlu0 %1475
    %v1477 = vmul.f32 %v1473, %v221
    %v1478 = vmul.f32 %v1476, %v221
    %v1479 = vmul.f32 %v1468, %v1468
    %v1480 = vmul.f32 %v1469, %v1469
    %v1481 = vsel %vm214, %v1479, 0.0
    %1482 = vadd.xlane.f32.xlu0 %v1481
    %v1483 = vpop.xlane.xlu0 %1482
    %v1484 = vsel %vm214, %v1480, 0.0
    %1485 = vadd.xlane.f32.xlu0 %v1484
    %v1486 = vpop.xlane.xlu0 %1485
    %v1487 = vmul.f32 %v1483, %v221
    %v1488 = vmul.f32 %v1486, %v221
    %v1489 = vmul.f32 %v1477, %v1477
    %v1490 = vmul.f32 %v1478, %v1478
    %v1491 = vsub.f32 %v1487, %v1489
    %v1492 = vsub.f32 %v1488, %v1490
    %v1493 = vmax.f32 %v1491, 0.0
    %v1494 = vmax.f32 %v1492, 0.0
    %v1495 = vsub.f32 %v1468, %v1477
    %v1496 = vsub.f32 %v1469, %v1478
    %v1497 = vadd.f32 %v1493, 1e-05
    %v1498 = vadd.f32 %v1494, 1e-05
    %v1499 = vrsqrt.pop %v1497
    %v1500 = vrsqrt.pop %v1498
    %v1501 = vmul.f32 %v1495, %v1499
    %v1502 = vmul.f32 %v1496, %v1500
    %v1503 = vlaneseq
    %v1504 = vshrl.u32 %v1503, 7
    %v1505 = vsub.s32 0, %v1504
    %v1506 = vrot.slane %v1470, %v1505
    %v1507 = vmul.f32 %v1501, %v1506
    %v1508 = vmul.f32 %v1502, %v1506
    %v1509 = vlaneseq
    %v1510 = vshrl.u32 %v1509, 7
    %v1511 = vsub.s32 1, %v1510
    %v1512 = vrot.slane %v1470, %v1511
    %v1513 = vadd.f32 %v1507, %v1512
    %v1514 = vadd.f32 %v1508, %v1512
    %v1515 = vld [vmem:[%s10] sm:$0xf]
    %v1516 = vld [vmem:[%s10 + $0x4] sm:$0xf]
    %v1517 = vld [vmem:[%s10 + $0x8] sm:$0xf]
    %v1518 = vld [vmem:[%s10 + $0xc] sm:$0xf]
    %v1519 = vld [vmem:[%s11] sm:$0x1]
    %v1520 = vpack.c.bf16 %v1514, %v1513
    %v1522 = vlaneseq
    %v1523 = vshrl.u32 %v1522, 7
    %v1524 = vsub.s32 0, %v1523
    %v1525 = vrot.slane %v1519, %v1524
    %v1531 = vunpack.c.l.b16 %v1515
    %v1532 = vunpack.c.l.b16 %v1516
    %v1533 = vunpack.c.l.b16 %v1517
    %v1534 = vunpack.c.l.b16 %v1518
    %v1535 = vpack.c.b16 %v1532, %v1531
    %v1536 = vpack.c.b16 %v1534, %v1533
    %v1540 = vsel %vm214, %v1520, 0
    %1542 = vmatprep.subr.bf16.mxu0 0
    %1543 = vmatpush1.bf16.msra.mxu0 0
    %1544 = vmatprep.subr.bf16.mxu0 0
    %1545 = vmatpush1.bf16.msra.mxu0 0
    %1546 = vmatprep.subr.bf16.mxu0 0
    %1547 = vmatpush1.bf16.msra.mxu0 0
    %1548 = vmatprep.subr.bf16.mxu0 0
    %1549 = vmatpush1.bf16.msra.mxu0 0
    %1550 = vmatprep.subr.bf16.mxu0 0
    %1551 = vmatpush1.bf16.msra.mxu0 0
    %1552 = vmatprep.subr.bf16.mxu0 0
    %1553 = vmatpush1.bf16.msra.mxu0 0
    %1554 = vmatprep.subr.bf16.mxu0 0
    %1555 = vmatpush1.bf16.msra.mxu0 %v1536
    %1556 = vmatprep.subr.bf16.mxu0 0
    %1557 = vmatpush1.bf16.msra.mxu0 %v1535
    %1558 = vmatprep.subr.bf16.mxu0 0
    %1559 = vmatpush2.bf16.msra.mxu0 0
    %1560 = vmatprep.subr.bf16.mxu0 0
    %1561 = vmatpush2.bf16.msra.mxu0 0
    %1562 = vmatprep.subr.bf16.mxu0 0
    %1563 = vmatpush2.bf16.msra.mxu0 0
    %1564 = vmatprep.subr.bf16.mxu0 0
    %1565 = vmatpush2.bf16.msra.mxu0 0
    %1566 = vmatprep.subr.bf16.mxu0 0
    %1567 = vmatpush2.bf16.msra.mxu0 0
    %1568 = vmatprep.subr.bf16.mxu0 0
    %1569 = vmatpush2.bf16.msra.mxu0 0
    %1570 = vmatprep.subr.bf16.mxu0 0
    %1571 = vmatpush2.bf16.msra.mxu0 0
    %1572 = vmatprep.subr.bf16.mxu0 0
    %1573 = vmatpush2.bf16.msra.mxu0 0
    %1574 = vmatprep.mubr.bf16.mxu0 0
    %1575 = vmatmul.mubr.bf16.gmra.mxu0 %v1540
    %v1576 = vpop.f32.mrf.mxu0
    %v1577 = vadd.f32 %v1525, %v1576
    %v1578 = vpop.f32.mrf.mxu0
    %v1579 = vpop.f32.mrf.mxu0
    %v1580 = vadd.f32 %v1525, %v1579
    %v1581 = vpop.f32.mrf.mxu0
    %1582 = vdwg.mxu0
    %v1583 = vmul.f32 %v1577, 1.702
    %v1584 = vmul.f32 %v1580, 1.702
    %v1585 = vxor.u32 %v1583, 2147483648
    %v1586 = vxor.u32 %v1584, 2147483648
    %v1587 = vmul.f32 %v1585, 1.442695
    %v1588 = vpow.pop %v1587
    %v1589 = vmul.f32 %v1586, 1.442695
    %v1590 = vpow.pop %v1589
    %v1591 = vadd.f32 %v1588, 1.0
    %v1592 = vadd.f32 %v1590, 1.0
    %v1593 = vrcp.pop %v1591
    %v1594 = vmul.f32 1.0, %v1593
    %v1595 = vrcp.pop %v1592
    %v1596 = vmul.f32 1.0, %v1595
    %v1597 = vmul.f32 %v1577, %v1594
    %v1598 = vmul.f32 %v1580, %v1596
    %v1599 = vld [vmem:[%s12] sm:$0xf]
    %v1600 = vld [vmem:[%s12 + $0x4] sm:$0xf]
    %v1601 = vld [vmem:[%s12 + $0x8] sm:$0xf]
    %v1602 = vld [vmem:[%s12 + $0xc] sm:$0xf]
    %v1603 = vld [vmem:[%s12 + $0x10] sm:$0xf]
    %v1604 = vld [vmem:[%s12 + $0x14] sm:$0xf]
    %v1605 = vld [vmem:[%s12 + $0x18] sm:$0xf]
    %v1606 = vld [vmem:[%s12 + $0x1c] sm:$0xf]
    %v1607 = vld [vmem:[%s13] sm:$0x1]
    %v1608 = vpack.c.bf16 %v1598, %v1597
    %v1610 = vlaneseq
    %v1611 = vshrl.u32 %v1610, 7
    %v1612 = vsub.s32 0, %v1611
    %v1613 = vrot.slane %v1607, %v1612
    %v1623 = vunpack.c.l.b16 %v1599
    %v1624 = vunpack.c.l.b16 %v1600
    %v1625 = vunpack.c.l.b16 %v1601
    %v1626 = vunpack.c.l.b16 %v1602
    %v1627 = vunpack.c.l.b16 %v1603
    %v1628 = vunpack.c.l.b16 %v1604
    %v1629 = vunpack.c.l.b16 %v1605
    %v1630 = vunpack.c.l.b16 %v1606
    %v1631 = vpack.c.b16 %v1624, %v1623
    %v1632 = vpack.c.b16 %v1626, %v1625
    %v1633 = vpack.c.b16 %v1628, %v1627
    %v1634 = vpack.c.b16 %v1630, %v1629
    %v1640 = vsel %vm167, %v1608, 0
    %1642 = vmatprep.subr.bf16.mxu0 0
    %1643 = vmatpush1.bf16.msra.mxu0 0
    %1644 = vmatprep.subr.bf16.mxu0 0
    %1645 = vmatpush1.bf16.msra.mxu0 0
    %1646 = vmatprep.subr.bf16.mxu0 0
    %1647 = vmatpush1.bf16.msra.mxu0 0
    %1648 = vmatprep.subr.bf16.mxu0 0
    %1649 = vmatpush1.bf16.msra.mxu0 0
    %1650 = vmatprep.subr.bf16.mxu0 0
    %1651 = vmatpush1.bf16.msra.mxu0 %v1634
    %1652 = vmatprep.subr.bf16.mxu0 0
    %1653 = vmatpush1.bf16.msra.mxu0 %v1633
    %1654 = vmatprep.subr.bf16.mxu0 0
    %1655 = vmatpush1.bf16.msra.mxu0 %v1632
    %1656 = vmatprep.subr.bf16.mxu0 0
    %1657 = vmatpush1.bf16.msra.mxu0 %v1631
    %1658 = vmatprep.subr.bf16.mxu0 0
    %1659 = vmatpush2.bf16.msra.mxu0 0
    %1660 = vmatprep.subr.bf16.mxu0 0
    %1661 = vmatpush2.bf16.msra.mxu0 0
    %1662 = vmatprep.subr.bf16.mxu0 0
    %1663 = vmatpush2.bf16.msra.mxu0 0
    %1664 = vmatprep.subr.bf16.mxu0 0
    %1665 = vmatpush2.bf16.msra.mxu0 0
    %1666 = vmatprep.subr.bf16.mxu0 0
    %1667 = vmatpush2.bf16.msra.mxu0 0
    %1668 = vmatprep.subr.bf16.mxu0 0
    %1669 = vmatpush2.bf16.msra.mxu0 0
    %1670 = vmatprep.subr.bf16.mxu0 0
    %1671 = vmatpush2.bf16.msra.mxu0 0
    %1672 = vmatprep.subr.bf16.mxu0 0
    %1673 = vmatpush2.bf16.msra.mxu0 0
    %1674 = vmatprep.mubr.bf16.mxu0 0
    %1675 = vmatmul.mubr.bf16.gmra.mxu0 %v1640
    %v1676 = vpop.f32.mrf.mxu0
    %v1677 = vadd.f32 %v1613, %v1676
    %v1678 = vpop.f32.mrf.mxu0
    %v1679 = vpop.f32.mrf.mxu0
    %v1680 = vadd.f32 %v1613, %v1679
    %v1681 = vpop.f32.mrf.mxu0
    %1682 = vdwg.mxu0
    %v1683 = vadd.f32 %v1677, %v1468
    %v1684 = vadd.f32 %v1680, %v1469
    %s1685 = scalar_lea.vmem %s4, 2
    %v1686 = vld [vmem:[%s1685] sm:$0x3]
    %v1687 = vsel %vm214, %v1683, 0.0
    %1688 = vadd.xlane.f32.xlu0 %v1687
    %v1689 = vpop.xlane.xlu0 %1688
    %v1690 = vsel %vm214, %v1684, 0.0
    %1691 = vadd.xlane.f32.xlu0 %v1690
    %v1692 = vpop.xlane.xlu0 %1691
    %v1693 = vmul.f32 %v1689, %v221
    %v1694 = vmul.f32 %v1692, %v221
    %v1695 = vmul.f32 %v1683, %v1683
    %v1696 = vmul.f32 %v1684, %v1684
    %v1697 = vsel %vm214, %v1695, 0.0
    %1698 = vadd.xlane.f32.xlu0 %v1697
    %v1699 = vpop.xlane.xlu0 %1698
    %v1700 = vsel %vm214, %v1696, 0.0
    %1701 = vadd.xlane.f32.xlu0 %v1700
    %v1702 = vpop.xlane.xlu0 %1701
    %v1703 = vmul.f32 %v1699, %v221
    %v1704 = vmul.f32 %v1702, %v221
    %v1705 = vmul.f32 %v1693, %v1693
    %v1706 = vmul.f32 %v1694, %v1694
    %v1707 = vsub.f32 %v1703, %v1705
    %v1708 = vsub.f32 %v1704, %v1706
    %v1709 = vmax.f32 %v1707, 0.0
    %v1710 = vmax.f32 %v1708, 0.0
    %v1711 = vsub.f32 %v1683, %v1693
    %v1712 = vsub.f32 %v1684, %v1694
    %v1713 = vadd.f32 %v1709, 1e-05
    %v1714 = vadd.f32 %v1710, 1e-05
    %v1715 = vrsqrt.pop %v1713
    %v1716 = vrsqrt.pop %v1714
    %v1717 = vmul.f32 %v1711, %v1715
    %v1718 = vmul.f32 %v1712, %v1716
    %v1719 = vlaneseq
    %v1720 = vshrl.u32 %v1719, 7
    %v1721 = vsub.s32 0, %v1720
    %v1722 = vrot.slane %v1686, %v1721
    %v1723 = vmul.f32 %v1717, %v1722
    %v1724 = vmul.f32 %v1718, %v1722
    %v1725 = vlaneseq
    %v1726 = vshrl.u32 %v1725, 7
    %v1727 = vsub.s32 1, %v1726
    %v1728 = vrot.slane %v1686, %v1727
    %v1729 = vadd.f32 %v1723, %v1728
    %v1730 = vadd.f32 %v1724, %v1728
    %s1731 = scalar_lea.vmem %s5, 16
    %v1732 = vld [vmem:[%s1731] sm:$0xf]
    %v1733 = vld [vmem:[%s1731 + $0x4] sm:$0xf]
    %v1734 = vld [vmem:[%s1731 + $0x8] sm:$0xf]
    %v1735 = vld [vmem:[%s1731 + $0xc] sm:$0xf]
    %s1736 = scalar_lea.vmem %s6, 1
    %v1737 = vld [vmem:[%s1736] sm:$0x1]
    %v1738 = vpack.c.bf16 %v1730, %v1729
    %v1740 = vlaneseq
    %v1741 = vshrl.u32 %v1740, 7
    %v1742 = vsub.s32 0, %v1741
    %v1743 = vrot.slane %v1737, %v1742
    %v1749 = vunpack.c.l.b16 %v1732
    %v1750 = vunpack.c.l.b16 %v1733
    %v1751 = vunpack.c.l.b16 %v1734
    %v1752 = vunpack.c.l.b16 %v1735
    %v1753 = vpack.c.b16 %v1750, %v1749
    %v1754 = vpack.c.b16 %v1752, %v1751
    %v1758 = vsel %vm214, %v1738, 0
    %1760 = vmatprep.subr.bf16.mxu0 0
    %1761 = vmatpush1.bf16.msra.mxu0 0
    %1762 = vmatprep.subr.bf16.mxu0 0
    %1763 = vmatpush1.bf16.msra.mxu0 0
    %1764 = vmatprep.subr.bf16.mxu0 0
    %1765 = vmatpush1.bf16.msra.mxu0 0
    %1766 = vmatprep.subr.bf16.mxu0 0
    %1767 = vmatpush1.bf16.msra.mxu0 0
    %1768 = vmatprep.subr.bf16.mxu0 0
    %1769 = vmatpush1.bf16.msra.mxu0 0
    %1770 = vmatprep.subr.bf16.mxu0 0
    %1771 = vmatpush1.bf16.msra.mxu0 0
    %1772 = vmatprep.subr.bf16.mxu0 0
    %1773 = vmatpush1.bf16.msra.mxu0 %v1754
    %1774 = vmatprep.subr.bf16.mxu0 0
    %1775 = vmatpush1.bf16.msra.mxu0 %v1753
    %1776 = vmatprep.subr.bf16.mxu0 0
    %1777 = vmatpush2.bf16.msra.mxu0 0
    %1778 = vmatprep.subr.bf16.mxu0 0
    %1779 = vmatpush2.bf16.msra.mxu0 0
    %1780 = vmatprep.subr.bf16.mxu0 0
    %1781 = vmatpush2.bf16.msra.mxu0 0
    %1782 = vmatprep.subr.bf16.mxu0 0
    %1783 = vmatpush2.bf16.msra.mxu0 0
    %1784 = vmatprep.subr.bf16.mxu0 0
    %1785 = vmatpush2.bf16.msra.mxu0 0
    %1786 = vmatprep.subr.bf16.mxu0 0
    %1787 = vmatpush2.bf16.msra.mxu0 0
    %1788 = vmatprep.subr.bf16.mxu0 0
    %1789 = vmatpush2.bf16.msra.mxu0 0
    %1790 = vmatprep.subr.bf16.mxu0 0
    %1791 = vmatpush2.bf16.msra.mxu0 0
    %1792 = vmatprep.mubr.bf16.mxu0 0
    %1793 = vmatmul.mubr.bf16.gmra.mxu0 %v1758
    %v1794 = vpop.f32.mrf.mxu0
    %v1795 = vadd.f32 %v1743, %v1794
    %v1796 = vpop.f32.mrf.mxu0
    %v1797 = vpop.f32.mrf.mxu0
    %v1798 = vadd.f32 %v1743, %v1797
    %v1799 = vpop.f32.mrf.mxu0
    %1800 = vdwg.mxu0
    %s1801 = scalar_lea.vmem %s7, 16
    %v1802 = vld [vmem:[%s1801] sm:$0xf]
    %v1803 = vld [vmem:[%s1801 + $0x4] sm:$0xf]
    %v1804 = vld [vmem:[%s1801 + $0x8] sm:$0xf]
    %v1805 = vld [vmem:[%s1801 + $0xc] sm:$0xf]
    %v1806 = vpack.c.bf16 %v1795, %v1795
    %v1807 = vpack.c.bf16 %v1798, %v1798
    %1809 = vrot.lane.b32.xlu0 %v1806, 96
    %v1810 = vpop.permute.xlu0 %1809
    %v1812 = vsel %vm386, %v1806, 0
    %v1815 = vsel %vm386, %v1810, 0
    %1817 = vmatprep.subr.bf16.mxu0 0
    %1818 = vmatpush1.bf16.xpose.msra.mxu0 0
    %1819 = vmatprep.subr.bf16.mxu0 0
    %1820 = vmatpush1.bf16.xpose.msra.mxu0 0
    %1821 = vmatprep.subr.bf16.mxu0 0
    %1822 = vmatpush1.bf16.xpose.msra.mxu0 0
    %1823 = vmatprep.subr.bf16.mxu0 0
    %1824 = vmatpush1.bf16.xpose.msra.mxu0 0
    %1825 = vmatprep.subr.bf16.mxu0 0
    %1826 = vmatpush1.bf16.xpose.msra.mxu0 0
    %1827 = vmatprep.subr.bf16.mxu0 0
    %1828 = vmatpush1.bf16.xpose.msra.mxu0 0
    %1829 = vmatprep.subr.bf16.mxu0 0
    %1830 = vmatpush1.bf16.xpose.msra.mxu0 0
    %1831 = vmatprep.subr.bf16.mxu0 0
    %1832 = vmatpush1.bf16.xpose.msra.mxu0 %v1815
    %1833 = vmatprep.subr.bf16.mxu0 0
    %1834 = vmatpush2.bf16.xpose.msra.mxu0 0
    %1835 = vmatprep.subr.bf16.mxu0 0
    %1836 = vmatpush2.bf16.xpose.msra.mxu0 0
    %1837 = vmatprep.subr.bf16.mxu0 0
    %1838 = vmatpush2.bf16.xpose.msra.mxu0 0
    %1839 = vmatprep.subr.bf16.mxu0 0
    %1840 = vmatpush2.bf16.xpose.msra.mxu0 0
    %1841 = vmatprep.subr.bf16.mxu0 0
    %1842 = vmatpush2.bf16.xpose.msra.mxu0 0
    %1843 = vmatprep.subr.bf16.mxu0 0
    %1844 = vmatpush2.bf16.xpose.msra.mxu0 0
    %1845 = vmatprep.subr.bf16.mxu0 0
    %1846 = vmatpush2.bf16.xpose.msra.mxu0 0
    %1847 = vmatprep.subr.bf16.mxu0 0
    %1848 = vmatpush2.bf16.xpose.msra.mxu0 0
    %1849 = vmatprep.mubr.bf16.mxu0 0
    %1850 = vmatmul.mubr.bf16.gmra.mxu0 %v1812
    %v1851 = vpop.f32.mrf.mxu0
    %v1852 = vadd.f32 %v263, %v1851
    %v1853 = vpop.f32.mrf.mxu0
    %v1854 = vpop.f32.mrf.mxu0
    %v1855 = vpop.f32.mrf.mxu0
    %1856 = vdwg.mxu0
    %1858 = vrot.lane.b32.xlu0 %v1807, 96
    %v1859 = vpop.permute.xlu0 %1858
    %v1861 = vsel %vm386, %v1807, 0
    %v1864 = vsel %vm386, %v1859, 0
    %1866 = vmatprep.subr.bf16.mxu0 0
    %1867 = vmatpush1.bf16.xpose.msra.mxu0 0
    %1868 = vmatprep.subr.bf16.mxu0 0
    %1869 = vmatpush1.bf16.xpose.msra.mxu0 0
    %1870 = vmatprep.subr.bf16.mxu0 0
    %1871 = vmatpush1.bf16.xpose.msra.mxu0 0
    %1872 = vmatprep.subr.bf16.mxu0 0
    %1873 = vmatpush1.bf16.xpose.msra.mxu0 0
    %1874 = vmatprep.subr.bf16.mxu0 0
    %1875 = vmatpush1.bf16.xpose.msra.mxu0 0
    %1876 = vmatprep.subr.bf16.mxu0 0
    %1877 = vmatpush1.bf16.xpose.msra.mxu0 0
    %1878 = vmatprep.subr.bf16.mxu0 0
    %1879 = vmatpush1.bf16.xpose.msra.mxu0 0
    %1880 = vmatprep.subr.bf16.mxu0 0
    %1881 = vmatpush1.bf16.xpose.msra.mxu0 %v1864
    %1882 = vmatprep.subr.bf16.mxu0 0
    %1883 = vmatpush2.bf16.xpose.msra.mxu0 0
    %1884 = vmatprep.subr.bf16.mxu0 0
    %1885 = vmatpush2.bf16.xpose.msra.mxu0 0
    %1886 = vmatprep.subr.bf16.mxu0 0
    %1887 = vmatpush2.bf16.xpose.msra.mxu0 0
    %1888 = vmatprep.subr.bf16.mxu0 0
    %1889 = vmatpush2.bf16.xpose.msra.mxu0 0
    %1890 = vmatprep.subr.bf16.mxu0 0
    %1891 = vmatpush2.bf16.xpose.msra.mxu0 0
    %1892 = vmatprep.subr.bf16.mxu0 0
    %1893 = vmatpush2.bf16.xpose.msra.mxu0 0
    %1894 = vmatprep.subr.bf16.mxu0 0
    %1895 = vmatpush2.bf16.xpose.msra.mxu0 0
    %1896 = vmatprep.subr.bf16.mxu0 0
    %1897 = vmatpush2.bf16.xpose.msra.mxu0 0
    %1898 = vmatprep.mubr.bf16.mxu0 0
    %1899 = vmatmul.mubr.bf16.gmra.mxu0 %v1861
    %v1900 = vpop.f32.mrf.mxu0
    %v1901 = vadd.f32 %v263, %v1900
    %v1902 = vpop.f32.mrf.mxu0
    %v1903 = vpop.f32.mrf.mxu0
    %v1904 = vpop.f32.mrf.mxu0
    %1905 = vdwg.mxu0
    %v1906 = vsel %vm386, %v1852, -inf
    %1907 = vmax.xlane.f32.xlu0 %v1906
    %v1908 = vpop.xlane.xlu0 %1907
    %v1909 = vsel %vm386, %v1901, -inf
    %1910 = vmax.xlane.f32.xlu0 %v1909
    %v1911 = vpop.xlane.xlu0 %1910
    %v1912 = vsub.f32 %v1852, %v1908
    %v1913 = vsub.f32 %v1901, %v1911
    %v1914 = vmul.f32 %v1912, 1.442695
    %v1915 = vpow.pop %v1914
    %v1916 = vmul.f32 %v1913, 1.442695
    %v1917 = vpow.pop %v1916
    %v1918 = vsel %vm386, %v1915, 0.0
    %1919 = vadd.xlane.f32.xlu0 %v1918
    %v1920 = vpop.xlane.xlu0 %1919
    %v1921 = vsel %vm386, %v1917, 0.0
    %1922 = vadd.xlane.f32.xlu0 %v1921
    %v1923 = vpop.xlane.xlu0 %1922
    %v1924 = vrcp.pop %v1920
    %v1925 = vrcp.pop %v1923
    %v1926 = vmul.f32 %v1915, %v1924
    %v1927 = vmul.f32 %v1917, %v1925
    %v1928 = vpack.c.bf16 %v1926, %v1926
    %v1929 = vpack.c.bf16 %v1927, %v1927
    %1930 = vrot.lane.b32.xlu0 %v1806, 64
    %v1931 = vpop.permute.xlu0 %1930
    %v1933 = vsel %vm386, %v1928, 0
    %v1936 = vsel %vm511, %v1931, 0
    %1938 = vmatprep.subr.bf16.mxu0 0
    %1939 = vmatpush1.bf16.msra.mxu0 0
    %1940 = vmatprep.subr.bf16.mxu0 0
    %1941 = vmatpush1.bf16.msra.mxu0 0
    %1942 = vmatprep.subr.bf16.mxu0 0
    %1943 = vmatpush1.bf16.msra.mxu0 0
    %1944 = vmatprep.subr.bf16.mxu0 0
    %1945 = vmatpush1.bf16.msra.mxu0 0
    %1946 = vmatprep.subr.bf16.mxu0 0
    %1947 = vmatpush1.bf16.msra.mxu0 0
    %1948 = vmatprep.subr.bf16.mxu0 0
    %1949 = vmatpush1.bf16.msra.mxu0 0
    %1950 = vmatprep.subr.bf16.mxu0 0
    %1951 = vmatpush1.bf16.msra.mxu0 0
    %1952 = vmatprep.subr.bf16.mxu0 0
    %1953 = vmatpush1.bf16.msra.mxu0 %v1936
    %1954 = vmatprep.subr.bf16.mxu0 0
    %1955 = vmatpush2.bf16.msra.mxu0 0
    %1956 = vmatprep.subr.bf16.mxu0 0
    %1957 = vmatpush2.bf16.msra.mxu0 0
    %1958 = vmatprep.subr.bf16.mxu0 0
    %1959 = vmatpush2.bf16.msra.mxu0 0
    %1960 = vmatprep.subr.bf16.mxu0 0
    %1961 = vmatpush2.bf16.msra.mxu0 0
    %1962 = vmatprep.subr.bf16.mxu0 0
    %1963 = vmatpush2.bf16.msra.mxu0 0
    %1964 = vmatprep.subr.bf16.mxu0 0
    %1965 = vmatpush2.bf16.msra.mxu0 0
    %1966 = vmatprep.subr.bf16.mxu0 0
    %1967 = vmatpush2.bf16.msra.mxu0 0
    %1968 = vmatprep.subr.bf16.mxu0 0
    %1969 = vmatpush2.bf16.msra.mxu0 0
    %1970 = vmatprep.mubr.bf16.mxu0 0
    %1971 = vmatmul.mubr.bf16.gmra.mxu0 %v1933
    %v1972 = vpop.f32.mrf.mxu0
    %v1973 = vadd.f32 0.0, %v1972
    %v1974 = vpop.f32.mrf.mxu0
    %v1975 = vpop.f32.mrf.mxu0
    %v1976 = vpop.f32.mrf.mxu0
    %1977 = vdwg.mxu0
    %1978 = vrot.lane.b32.xlu0 %v1807, 64
    %v1979 = vpop.permute.xlu0 %1978
    %v1981 = vsel %vm386, %v1929, 0
    %v1984 = vsel %vm511, %v1979, 0
    %1986 = vmatprep.subr.bf16.mxu0 0
    %1987 = vmatpush1.bf16.msra.mxu0 0
    %1988 = vmatprep.subr.bf16.mxu0 0
    %1989 = vmatpush1.bf16.msra.mxu0 0
    %1990 = vmatprep.subr.bf16.mxu0 0
    %1991 = vmatpush1.bf16.msra.mxu0 0
    %1992 = vmatprep.subr.bf16.mxu0 0
    %1993 = vmatpush1.bf16.msra.mxu0 0
    %1994 = vmatprep.subr.bf16.mxu0 0
    %1995 = vmatpush1.bf16.msra.mxu0 0
    %1996 = vmatprep.subr.bf16.mxu0 0
    %1997 = vmatpush1.bf16.msra.mxu0 0
    %1998 = vmatprep.subr.bf16.mxu0 0
    %1999 = vmatpush1.bf16.msra.mxu0 0
    %2000 = vmatprep.subr.bf16.mxu0 0
    %2001 = vmatpush1.bf16.msra.mxu0 %v1984
    %2002 = vmatprep.subr.bf16.mxu0 0
    %2003 = vmatpush2.bf16.msra.mxu0 0
    %2004 = vmatprep.subr.bf16.mxu0 0
    %2005 = vmatpush2.bf16.msra.mxu0 0
    %2006 = vmatprep.subr.bf16.mxu0 0
    %2007 = vmatpush2.bf16.msra.mxu0 0
    %2008 = vmatprep.subr.bf16.mxu0 0
    %2009 = vmatpush2.bf16.msra.mxu0 0
    %2010 = vmatprep.subr.bf16.mxu0 0
    %2011 = vmatpush2.bf16.msra.mxu0 0
    %2012 = vmatprep.subr.bf16.mxu0 0
    %2013 = vmatpush2.bf16.msra.mxu0 0
    %2014 = vmatprep.subr.bf16.mxu0 0
    %2015 = vmatpush2.bf16.msra.mxu0 0
    %2016 = vmatprep.subr.bf16.mxu0 0
    %2017 = vmatpush2.bf16.msra.mxu0 0
    %2018 = vmatprep.mubr.bf16.mxu0 0
    %2019 = vmatmul.mubr.bf16.gmra.mxu0 %v1981
    %v2020 = vpop.f32.mrf.mxu0
    %v2021 = vadd.f32 0.0, %v2020
    %v2022 = vpop.f32.mrf.mxu0
    %v2023 = vpop.f32.mrf.mxu0
    %v2024 = vpop.f32.mrf.mxu0
    %2025 = vdwg.mxu0
    %v2026 = vpack.c.bf16 %v2021, %v1973
    %2027 = vrot.lane.b32.xlu0 %v1806, 120
    %v2028 = vpop.permute.xlu0 %2027
    %2029 = vrot.lane.b32.xlu0 %v1806, 88
    %v2030 = vpop.permute.xlu0 %2029
    %v2032 = vsel %vm386, %v2028, 0
    %v2035 = vsel %vm386, %v2030, 0
    %2037 = vmatprep.subr.bf16.mxu0 0
    %2038 = vmatpush1.bf16.xpose.msra.mxu0 0
    %2039 = vmatprep.subr.bf16.mxu0 0
    %2040 = vmatpush1.bf16.xpose.msra.mxu0 0
    %2041 = vmatprep.subr.bf16.mxu0 0
    %2042 = vmatpush1.bf16.xpose.msra.mxu0 0
    %2043 = vmatprep.subr.bf16.mxu0 0
    %2044 = vmatpush1.bf16.xpose.msra.mxu0 0
    %2045 = vmatprep.subr.bf16.mxu0 0
    %2046 = vmatpush1.bf16.xpose.msra.mxu0 0
    %2047 = vmatprep.subr.bf16.mxu0 0
    %2048 = vmatpush1.bf16.xpose.msra.mxu0 0
    %2049 = vmatprep.subr.bf16.mxu0 0
    %2050 = vmatpush1.bf16.xpose.msra.mxu0 0
    %2051 = vmatprep.subr.bf16.mxu0 0
    %2052 = vmatpush1.bf16.xpose.msra.mxu0 %v2035
    %2053 = vmatprep.subr.bf16.mxu0 0
    %2054 = vmatpush2.bf16.xpose.msra.mxu0 0
    %2055 = vmatprep.subr.bf16.mxu0 0
    %2056 = vmatpush2.bf16.xpose.msra.mxu0 0
    %2057 = vmatprep.subr.bf16.mxu0 0
    %2058 = vmatpush2.bf16.xpose.msra.mxu0 0
    %2059 = vmatprep.subr.bf16.mxu0 0
    %2060 = vmatpush2.bf16.xpose.msra.mxu0 0
    %2061 = vmatprep.subr.bf16.mxu0 0
    %2062 = vmatpush2.bf16.xpose.msra.mxu0 0
    %2063 = vmatprep.subr.bf16.mxu0 0
    %2064 = vmatpush2.bf16.xpose.msra.mxu0 0
    %2065 = vmatprep.subr.bf16.mxu0 0
    %2066 = vmatpush2.bf16.xpose.msra.mxu0 0
    %2067 = vmatprep.subr.bf16.mxu0 0
    %2068 = vmatpush2.bf16.xpose.msra.mxu0 0
    %2069 = vmatprep.mubr.bf16.mxu0 0
    %2070 = vmatmul.mubr.bf16.gmra.mxu0 %v2032
    %v2071 = vpop.f32.mrf.mxu0
    %v2072 = vadd.f32 %v263, %v2071
    %v2073 = vpop.f32.mrf.mxu0
    %v2074 = vpop.f32.mrf.mxu0
    %v2075 = vpop.f32.mrf.mxu0
    %2076 = vdwg.mxu0
    %2077 = vrot.lane.b32.xlu0 %v1807, 120
    %v2078 = vpop.permute.xlu0 %2077
    %2079 = vrot.lane.b32.xlu0 %v1807, 88
    %v2080 = vpop.permute.xlu0 %2079
    %v2082 = vsel %vm386, %v2078, 0
    %v2085 = vsel %vm386, %v2080, 0
    %2087 = vmatprep.subr.bf16.mxu0 0
    %2088 = vmatpush1.bf16.xpose.msra.mxu0 0
    %2089 = vmatprep.subr.bf16.mxu0 0
    %2090 = vmatpush1.bf16.xpose.msra.mxu0 0
    %2091 = vmatprep.subr.bf16.mxu0 0
    %2092 = vmatpush1.bf16.xpose.msra.mxu0 0
    %2093 = vmatprep.subr.bf16.mxu0 0
    %2094 = vmatpush1.bf16.xpose.msra.mxu0 0
    %2095 = vmatprep.subr.bf16.mxu0 0
    %2096 = vmatpush1.bf16.xpose.msra.mxu0 0
    %2097 = vmatprep.subr.bf16.mxu0 0
    %2098 = vmatpush1.bf16.xpose.msra.mxu0 0
    %2099 = vmatprep.subr.bf16.mxu0 0
    %2100 = vmatpush1.bf16.xpose.msra.mxu0 0
    %2101 = vmatprep.subr.bf16.mxu0 0
    %2102 = vmatpush1.bf16.xpose.msra.mxu0 %v2085
    %2103 = vmatprep.subr.bf16.mxu0 0
    %2104 = vmatpush2.bf16.xpose.msra.mxu0 0
    %2105 = vmatprep.subr.bf16.mxu0 0
    %2106 = vmatpush2.bf16.xpose.msra.mxu0 0
    %2107 = vmatprep.subr.bf16.mxu0 0
    %2108 = vmatpush2.bf16.xpose.msra.mxu0 0
    %2109 = vmatprep.subr.bf16.mxu0 0
    %2110 = vmatpush2.bf16.xpose.msra.mxu0 0
    %2111 = vmatprep.subr.bf16.mxu0 0
    %2112 = vmatpush2.bf16.xpose.msra.mxu0 0
    %2113 = vmatprep.subr.bf16.mxu0 0
    %2114 = vmatpush2.bf16.xpose.msra.mxu0 0
    %2115 = vmatprep.subr.bf16.mxu0 0
    %2116 = vmatpush2.bf16.xpose.msra.mxu0 0
    %2117 = vmatprep.subr.bf16.mxu0 0
    %2118 = vmatpush2.bf16.xpose.msra.mxu0 0
    %2119 = vmatprep.mubr.bf16.mxu0 0
    %2120 = vmatmul.mubr.bf16.gmra.mxu0 %v2082
    %v2121 = vpop.f32.mrf.mxu0
    %v2122 = vadd.f32 %v263, %v2121
    %v2123 = vpop.f32.mrf.mxu0
    %v2124 = vpop.f32.mrf.mxu0
    %v2125 = vpop.f32.mrf.mxu0
    %2126 = vdwg.mxu0
    %v2127 = vsel %vm386, %v2072, -inf
    %2128 = vmax.xlane.f32.xlu0 %v2127
    %v2129 = vpop.xlane.xlu0 %2128
    %v2130 = vsel %vm386, %v2122, -inf
    %2131 = vmax.xlane.f32.xlu0 %v2130
    %v2132 = vpop.xlane.xlu0 %2131
    %v2133 = vsub.f32 %v2072, %v2129
    %v2134 = vsub.f32 %v2122, %v2132
    %v2135 = vmul.f32 %v2133, 1.442695
    %v2136 = vpow.pop %v2135
    %v2137 = vmul.f32 %v2134, 1.442695
    %v2138 = vpow.pop %v2137
    %v2139 = vsel %vm386, %v2136, 0.0
    %2140 = vadd.xlane.f32.xlu0 %v2139
    %v2141 = vpop.xlane.xlu0 %2140
    %v2142 = vsel %vm386, %v2138, 0.0
    %2143 = vadd.xlane.f32.xlu0 %v2142
    %v2144 = vpop.xlane.xlu0 %2143
    %v2145 = vrcp.pop %v2141
    %v2146 = vrcp.pop %v2144
    %v2147 = vmul.f32 %v2136, %v2145
    %v2148 = vmul.f32 %v2138, %v2146
    %v2149 = vpack.c.bf16 %v2147, %v2147
    %v2150 = vpack.c.bf16 %v2148, %v2148
    %2151 = vrot.lane.b32.xlu0 %v1806, 56
    %v2152 = vpop.permute.xlu0 %2151
    %v2154 = vsel %vm386, %v2149, 0
    %v2157 = vsel %vm511, %v2152, 0
    %2159 = vmatprep.subr.bf16.mxu0 0
    %2160 = vmatpush1.bf16.msra.mxu0 0
    %2161 = vmatprep.subr.bf16.mxu0 0
    %2162 = vmatpush1.bf16.msra.mxu0 0
    %2163 = vmatprep.subr.bf16.mxu0 0
    %2164 = vmatpush1.bf16.msra.mxu0 0
    %2165 = vmatprep.subr.bf16.mxu0 0
    %2166 = vmatpush1.bf16.msra.mxu0 0
    %2167 = vmatprep.subr.bf16.mxu0 0
    %2168 = vmatpush1.bf16.msra.mxu0 0
    %2169 = vmatprep.subr.bf16.mxu0 0
    %2170 = vmatpush1.bf16.msra.mxu0 0
    %2171 = vmatprep.subr.bf16.mxu0 0
    %2172 = vmatpush1.bf16.msra.mxu0 0
    %2173 = vmatprep.subr.bf16.mxu0 0
    %2174 = vmatpush1.bf16.msra.mxu0 %v2157
    %2175 = vmatprep.subr.bf16.mxu0 0
    %2176 = vmatpush2.bf16.msra.mxu0 0
    %2177 = vmatprep.subr.bf16.mxu0 0
    %2178 = vmatpush2.bf16.msra.mxu0 0
    %2179 = vmatprep.subr.bf16.mxu0 0
    %2180 = vmatpush2.bf16.msra.mxu0 0
    %2181 = vmatprep.subr.bf16.mxu0 0
    %2182 = vmatpush2.bf16.msra.mxu0 0
    %2183 = vmatprep.subr.bf16.mxu0 0
    %2184 = vmatpush2.bf16.msra.mxu0 0
    %2185 = vmatprep.subr.bf16.mxu0 0
    %2186 = vmatpush2.bf16.msra.mxu0 0
    %2187 = vmatprep.subr.bf16.mxu0 0
    %2188 = vmatpush2.bf16.msra.mxu0 0
    %2189 = vmatprep.subr.bf16.mxu0 0
    %2190 = vmatpush2.bf16.msra.mxu0 0
    %2191 = vmatprep.mubr.bf16.mxu0 0
    %2192 = vmatmul.mubr.bf16.gmra.mxu0 %v2154
    %v2193 = vpop.f32.mrf.mxu0
    %v2194 = vadd.f32 0.0, %v2193
    %v2195 = vpop.f32.mrf.mxu0
    %v2196 = vpop.f32.mrf.mxu0
    %v2197 = vpop.f32.mrf.mxu0
    %2198 = vdwg.mxu0
    %2199 = vrot.lane.b32.xlu0 %v1807, 56
    %v2200 = vpop.permute.xlu0 %2199
    %v2202 = vsel %vm386, %v2150, 0
    %v2205 = vsel %vm511, %v2200, 0
    %2207 = vmatprep.subr.bf16.mxu0 0
    %2208 = vmatpush1.bf16.msra.mxu0 0
    %2209 = vmatprep.subr.bf16.mxu0 0
    %2210 = vmatpush1.bf16.msra.mxu0 0
    %2211 = vmatprep.subr.bf16.mxu0 0
    %2212 = vmatpush1.bf16.msra.mxu0 0
    %2213 = vmatprep.subr.bf16.mxu0 0
    %2214 = vmatpush1.bf16.msra.mxu0 0
    %2215 = vmatprep.subr.bf16.mxu0 0
    %2216 = vmatpush1.bf16.msra.mxu0 0
    %2217 = vmatprep.subr.bf16.mxu0 0
    %2218 = vmatpush1.bf16.msra.mxu0 0
    %2219 = vmatprep.subr.bf16.mxu0 0
    %2220 = vmatpush1.bf16.msra.mxu0 0
    %2221 = vmatprep.subr.bf16.mxu0 0
    %2222 = vmatpush1.bf16.msra.mxu0 %v2205
    %2223 = vmatprep.subr.bf16.mxu0 0
    %2224 = vmatpush2.bf16.msra.mxu0 0
    %2225 = vmatprep.subr.bf16.mxu0 0
    %2226 = vmatpush2.bf16.msra.mxu0 0
    %2227 = vmatprep.subr.bf16.mxu0 0
    %2228 = vmatpush2.bf16.msra.mxu0 0
    %2229 = vmatprep.subr.bf16.mxu0 0
    %2230 = vmatpush2.bf16.msra.mxu0 0
    %2231 = vmatprep.subr.bf16.mxu0 0
    %2232 = vmatpush2.bf16.msra.mxu0 0
    %2233 = vmatprep.subr.bf16.mxu0 0
    %2234 = vmatpush2.bf16.msra.mxu0 0
    %2235 = vmatprep.subr.bf16.mxu0 0
    %2236 = vmatpush2.bf16.msra.mxu0 0
    %2237 = vmatprep.subr.bf16.mxu0 0
    %2238 = vmatpush2.bf16.msra.mxu0 0
    %2239 = vmatprep.mubr.bf16.mxu0 0
    %2240 = vmatmul.mubr.bf16.gmra.mxu0 %v2202
    %v2241 = vpop.f32.mrf.mxu0
    %v2242 = vadd.f32 0.0, %v2241
    %v2243 = vpop.f32.mrf.mxu0
    %v2244 = vpop.f32.mrf.mxu0
    %v2245 = vpop.f32.mrf.mxu0
    %2246 = vdwg.mxu0
    %v2247 = vpack.c.bf16 %v2242, %v2194
    %v2249 = vsel %vm386, %v2247, 0
    %v2252 = vsel %vm511, %v1803, 0
    %2254 = vmatprep.subr.bf16.mxu0 0
    %2255 = vmatpush1.bf16.msra.mxu0 0
    %2256 = vmatprep.subr.bf16.mxu0 0
    %2257 = vmatpush1.bf16.msra.mxu0 0
    %2258 = vmatprep.subr.bf16.mxu0 0
    %2259 = vmatpush1.bf16.msra.mxu0 0
    %2260 = vmatprep.subr.bf16.mxu0 0
    %2261 = vmatpush1.bf16.msra.mxu0 0
    %2262 = vmatprep.subr.bf16.mxu0 0
    %2263 = vmatpush1.bf16.msra.mxu0 0
    %2264 = vmatprep.subr.bf16.mxu0 0
    %2265 = vmatpush1.bf16.msra.mxu0 0
    %2266 = vmatprep.subr.bf16.mxu0 0
    %2267 = vmatpush1.bf16.msra.mxu0 0
    %2268 = vmatprep.subr.bf16.mxu0 0
    %2269 = vmatpush1.bf16.msra.mxu0 %v2252
    %2270 = vmatprep.subr.bf16.mxu0 0
    %2271 = vmatpush2.bf16.msra.mxu0 0
    %2272 = vmatprep.subr.bf16.mxu0 0
    %2273 = vmatpush2.bf16.msra.mxu0 0
    %2274 = vmatprep.subr.bf16.mxu0 0
    %2275 = vmatpush2.bf16.msra.mxu0 0
    %2276 = vmatprep.subr.bf16.mxu0 0
    %2277 = vmatpush2.bf16.msra.mxu0 0
    %2278 = vmatprep.subr.bf16.mxu0 0
    %2279 = vmatpush2.bf16.msra.mxu0 0
    %2280 = vmatprep.subr.bf16.mxu0 0
    %2281 = vmatpush2.bf16.msra.mxu0 0
    %2282 = vmatprep.subr.bf16.mxu0 0
    %2283 = vmatpush2.bf16.msra.mxu0 0
    %2284 = vmatprep.subr.bf16.mxu0 0
    %2285 = vmatpush2.bf16.msra.mxu0 0
    %2286 = vmatprep.mubr.bf16.mxu0 0
    %2287 = vmatmul.mubr.bf16.gmra.mxu0 %v2249
    %v2288 = vpop.f32.mrf.mxu0
    %v2289 = vadd.f32 0.0, %v2288
    %v2290 = vpop.f32.mrf.mxu0
    %v2291 = vpop.f32.mrf.mxu0
    %v2292 = vadd.f32 0.0, %v2291
    %v2293 = vpop.f32.mrf.mxu0
    %2294 = vdwg.mxu0
    %v2296 = vsel %vm386, %v2026, 0
    %v2299 = vsel %vm511, %v1802, 0
    %2301 = vmatprep.subr.bf16.mxu0 0
    %2302 = vmatpush1.bf16.msra.mxu0 0
    %2303 = vmatprep.subr.bf16.mxu0 0
    %2304 = vmatpush1.bf16.msra.mxu0 0
    %2305 = vmatprep.subr.bf16.mxu0 0
    %2306 = vmatpush1.bf16.msra.mxu0 0
    %2307 = vmatprep.subr.bf16.mxu0 0
    %2308 = vmatpush1.bf16.msra.mxu0 0
    %2309 = vmatprep.subr.bf16.mxu0 0
    %2310 = vmatpush1.bf16.msra.mxu0 0
    %2311 = vmatprep.subr.bf16.mxu0 0
    %2312 = vmatpush1.bf16.msra.mxu0 0
    %2313 = vmatprep.subr.bf16.mxu0 0
    %2314 = vmatpush1.bf16.msra.mxu0 0
    %2315 = vmatprep.subr.bf16.mxu0 0
    %2316 = vmatpush1.bf16.msra.mxu0 %v2299
    %2317 = vmatprep.subr.bf16.mxu0 0
    %2318 = vmatpush2.bf16.msra.mxu0 0
    %2319 = vmatprep.subr.bf16.mxu0 0
    %2320 = vmatpush2.bf16.msra.mxu0 0
    %2321 = vmatprep.subr.bf16.mxu0 0
    %2322 = vmatpush2.bf16.msra.mxu0 0
    %2323 = vmatprep.subr.bf16.mxu0 0
    %2324 = vmatpush2.bf16.msra.mxu0 0
    %2325 = vmatprep.subr.bf16.mxu0 0
    %2326 = vmatpush2.bf16.msra.mxu0 0
    %2327 = vmatprep.subr.bf16.mxu0 0
    %2328 = vmatpush2.bf16.msra.mxu0 0
    %2329 = vmatprep.subr.bf16.mxu0 0
    %2330 = vmatpush2.bf16.msra.mxu0 0
    %2331 = vmatprep.subr.bf16.mxu0 0
    %2332 = vmatpush2.bf16.msra.mxu0 0
    %2333 = vmatprep.mubr.bf16.mxu0 0
    %2334 = vmatmul.mubr.bf16.gmra.mxu0 %v2296
    %v2335 = vpop.f32.mrf.mxu0
    %v2336 = vadd.f32 %v2289, %v2335
    %v2337 = vpop.f32.mrf.mxu0
    %v2338 = vpop.f32.mrf.mxu0
    %v2339 = vadd.f32 %v2292, %v2338
    %v2340 = vpop.f32.mrf.mxu0
    %2341 = vdwg.mxu0
    %2342 = vrot.lane.b32.xlu0 %v1806, 112
    %v2343 = vpop.permute.xlu0 %2342
    %2344 = vrot.lane.b32.xlu0 %v1806, 80
    %v2345 = vpop.permute.xlu0 %2344
    %v2347 = vsel %vm386, %v2343, 0
    %v2350 = vsel %vm386, %v2345, 0
    %2352 = vmatprep.subr.bf16.mxu0 0
    %2353 = vmatpush1.bf16.xpose.msra.mxu0 0
    %2354 = vmatprep.subr.bf16.mxu0 0
    %2355 = vmatpush1.bf16.xpose.msra.mxu0 0
    %2356 = vmatprep.subr.bf16.mxu0 0
    %2357 = vmatpush1.bf16.xpose.msra.mxu0 0
    %2358 = vmatprep.subr.bf16.mxu0 0
    %2359 = vmatpush1.bf16.xpose.msra.mxu0 0
    %2360 = vmatprep.subr.bf16.mxu0 0
    %2361 = vmatpush1.bf16.xpose.msra.mxu0 0
    %2362 = vmatprep.subr.bf16.mxu0 0
    %2363 = vmatpush1.bf16.xpose.msra.mxu0 0
    %2364 = vmatprep.subr.bf16.mxu0 0
    %2365 = vmatpush1.bf16.xpose.msra.mxu0 0
    %2366 = vmatprep.subr.bf16.mxu0 0
    %2367 = vmatpush1.bf16.xpose.msra.mxu0 %v2350
    %2368 = vmatprep.subr.bf16.mxu0 0
    %2369 = vmatpush2.bf16.xpose.msra.mxu0 0
    %2370 = vmatprep.subr.bf16.mxu0 0
    %2371 = vmatpush2.bf16.xpose.msra.mxu0 0
    %2372 = vmatprep.subr.bf16.mxu0 0
    %2373 = vmatpush2.bf16.xpose.msra.mxu0 0
    %2374 = vmatprep.subr.bf16.mxu0 0
    %2375 = vmatpush2.bf16.xpose.msra.mxu0 0
    %2376 = vmatprep.subr.bf16.mxu0 0
    %2377 = vmatpush2.bf16.xpose.msra.mxu0 0
    %2378 = vmatprep.subr.bf16.mxu0 0
    %2379 = vmatpush2.bf16.xpose.msra.mxu0 0
    %2380 = vmatprep.subr.bf16.mxu0 0
    %2381 = vmatpush2.bf16.xpose.msra.mxu0 0
    %2382 = vmatprep.subr.bf16.mxu0 0
    %2383 = vmatpush2.bf16.xpose.msra.mxu0 0
    %2384 = vmatprep.mubr.bf16.mxu0 0
    %2385 = vmatmul.mubr.bf16.gmra.mxu0 %v2347
    %v2386 = vpop.f32.mrf.mxu0
    %v2387 = vadd.f32 %v263, %v2386
    %v2388 = vpop.f32.mrf.mxu0
    %v2389 = vpop.f32.mrf.mxu0
    %v2390 = vpop.f32.mrf.mxu0
    %2391 = vdwg.mxu0
    %2392 = vrot.lane.b32.xlu0 %v1807, 112
    %v2393 = vpop.permute.xlu0 %2392
    %2394 = vrot.lane.b32.xlu0 %v1807, 80
    %v2395 = vpop.permute.xlu0 %2394
    %v2397 = vsel %vm386, %v2393, 0
    %v2400 = vsel %vm386, %v2395, 0
    %2402 = vmatprep.subr.bf16.mxu0 0
    %2403 = vmatpush1.bf16.xpose.msra.mxu0 0
    %2404 = vmatprep.subr.bf16.mxu0 0
    %2405 = vmatpush1.bf16.xpose.msra.mxu0 0
    %2406 = vmatprep.subr.bf16.mxu0 0
    %2407 = vmatpush1.bf16.xpose.msra.mxu0 0
    %2408 = vmatprep.subr.bf16.mxu0 0
    %2409 = vmatpush1.bf16.xpose.msra.mxu0 0
    %2410 = vmatprep.subr.bf16.mxu0 0
    %2411 = vmatpush1.bf16.xpose.msra.mxu0 0
    %2412 = vmatprep.subr.bf16.mxu0 0
    %2413 = vmatpush1.bf16.xpose.msra.mxu0 0
    %2414 = vmatprep.subr.bf16.mxu0 0
    %2415 = vmatpush1.bf16.xpose.msra.mxu0 0
    %2416 = vmatprep.subr.bf16.mxu0 0
    %2417 = vmatpush1.bf16.xpose.msra.mxu0 %v2400
    %2418 = vmatprep.subr.bf16.mxu0 0
    %2419 = vmatpush2.bf16.xpose.msra.mxu0 0
    %2420 = vmatprep.subr.bf16.mxu0 0
    %2421 = vmatpush2.bf16.xpose.msra.mxu0 0
    %2422 = vmatprep.subr.bf16.mxu0 0
    %2423 = vmatpush2.bf16.xpose.msra.mxu0 0
    %2424 = vmatprep.subr.bf16.mxu0 0
    %2425 = vmatpush2.bf16.xpose.msra.mxu0 0
    %2426 = vmatprep.subr.bf16.mxu0 0
    %2427 = vmatpush2.bf16.xpose.msra.mxu0 0
    %2428 = vmatprep.subr.bf16.mxu0 0
    %2429 = vmatpush2.bf16.xpose.msra.mxu0 0
    %2430 = vmatprep.subr.bf16.mxu0 0
    %2431 = vmatpush2.bf16.xpose.msra.mxu0 0
    %2432 = vmatprep.subr.bf16.mxu0 0
    %2433 = vmatpush2.bf16.xpose.msra.mxu0 0
    %2434 = vmatprep.mubr.bf16.mxu0 0
    %2435 = vmatmul.mubr.bf16.gmra.mxu0 %v2397
    %v2436 = vpop.f32.mrf.mxu0
    %v2437 = vadd.f32 %v263, %v2436
    %v2438 = vpop.f32.mrf.mxu0
    %v2439 = vpop.f32.mrf.mxu0
    %v2440 = vpop.f32.mrf.mxu0
    %2441 = vdwg.mxu0
    %v2442 = vsel %vm386, %v2387, -inf
    %2443 = vmax.xlane.f32.xlu0 %v2442
    %v2444 = vpop.xlane.xlu0 %2443
    %v2445 = vsel %vm386, %v2437, -inf
    %2446 = vmax.xlane.f32.xlu0 %v2445
    %v2447 = vpop.xlane.xlu0 %2446
    %v2448 = vsub.f32 %v2387, %v2444
    %v2449 = vsub.f32 %v2437, %v2447
    %v2450 = vmul.f32 %v2448, 1.442695
    %v2451 = vpow.pop %v2450
    %v2452 = vmul.f32 %v2449, 1.442695
    %v2453 = vpow.pop %v2452
    %v2454 = vsel %vm386, %v2451, 0.0
    %2455 = vadd.xlane.f32.xlu0 %v2454
    %v2456 = vpop.xlane.xlu0 %2455
    %v2457 = vsel %vm386, %v2453, 0.0
    %2458 = vadd.xlane.f32.xlu0 %v2457
    %v2459 = vpop.xlane.xlu0 %2458
    %v2460 = vrcp.pop %v2456
    %v2461 = vrcp.pop %v2459
    %v2462 = vmul.f32 %v2451, %v2460
    %v2463 = vmul.f32 %v2453, %v2461
    %v2464 = vpack.c.bf16 %v2462, %v2462
    %v2465 = vpack.c.bf16 %v2463, %v2463
    %2466 = vrot.lane.b32.xlu0 %v1806, 48
    %v2467 = vpop.permute.xlu0 %2466
    %v2469 = vsel %vm386, %v2464, 0
    %v2472 = vsel %vm511, %v2467, 0
    %2474 = vmatprep.subr.bf16.mxu0 0
    %2475 = vmatpush1.bf16.msra.mxu0 0
    %2476 = vmatprep.subr.bf16.mxu0 0
    %2477 = vmatpush1.bf16.msra.mxu0 0
    %2478 = vmatprep.subr.bf16.mxu0 0
    %2479 = vmatpush1.bf16.msra.mxu0 0
    %2480 = vmatprep.subr.bf16.mxu0 0
    %2481 = vmatpush1.bf16.msra.mxu0 0
    %2482 = vmatprep.subr.bf16.mxu0 0
    %2483 = vmatpush1.bf16.msra.mxu0 0
    %2484 = vmatprep.subr.bf16.mxu0 0
    %2485 = vmatpush1.bf16.msra.mxu0 0
    %2486 = vmatprep.subr.bf16.mxu0 0
    %2487 = vmatpush1.bf16.msra.mxu0 0
    %2488 = vmatprep.subr.bf16.mxu0 0
    %2489 = vmatpush1.bf16.msra.mxu0 %v2472
    %2490 = vmatprep.subr.bf16.mxu0 0
    %2491 = vmatpush2.bf16.msra.mxu0 0
    %2492 = vmatprep.subr.bf16.mxu0 0
    %2493 = vmatpush2.bf16.msra.mxu0 0
    %2494 = vmatprep.subr.bf16.mxu0 0
    %2495 = vmatpush2.bf16.msra.mxu0 0
    %2496 = vmatprep.subr.bf16.mxu0 0
    %2497 = vmatpush2.bf16.msra.mxu0 0
    %2498 = vmatprep.subr.bf16.mxu0 0
    %2499 = vmatpush2.bf16.msra.mxu0 0
    %2500 = vmatprep.subr.bf16.mxu0 0
    %2501 = vmatpush2.bf16.msra.mxu0 0
    %2502 = vmatprep.subr.bf16.mxu0 0
    %2503 = vmatpush2.bf16.msra.mxu0 0
    %2504 = vmatprep.subr.bf16.mxu0 0
    %2505 = vmatpush2.bf16.msra.mxu0 0
    %2506 = vmatprep.mubr.bf16.mxu0 0
    %2507 = vmatmul.mubr.bf16.gmra.mxu0 %v2469
    %v2508 = vpop.f32.mrf.mxu0
    %v2509 = vadd.f32 0.0, %v2508
    %v2510 = vpop.f32.mrf.mxu0
    %v2511 = vpop.f32.mrf.mxu0
    %v2512 = vpop.f32.mrf.mxu0
    %2513 = vdwg.mxu0
    %2514 = vrot.lane.b32.xlu0 %v1807, 48
    %v2515 = vpop.permute.xlu0 %2514
    %v2517 = vsel %vm386, %v2465, 0
    %v2520 = vsel %vm511, %v2515, 0
    %2522 = vmatprep.subr.bf16.mxu0 0
    %2523 = vmatpush1.bf16.msra.mxu0 0
    %2524 = vmatprep.subr.bf16.mxu0 0
    %2525 = vmatpush1.bf16.msra.mxu0 0
    %2526 = vmatprep.subr.bf16.mxu0 0
    %2527 = vmatpush1.bf16.msra.mxu0 0
    %2528 = vmatprep.subr.bf16.mxu0 0
    %2529 = vmatpush1.bf16.msra.mxu0 0
    %2530 = vmatprep.subr.bf16.mxu0 0
    %2531 = vmatpush1.bf16.msra.mxu0 0
    %2532 = vmatprep.subr.bf16.mxu0 0
    %2533 = vmatpush1.bf16.msra.mxu0 0
    %2534 = vmatprep.subr.bf16.mxu0 0
    %2535 = vmatpush1.bf16.msra.mxu0 0
    %2536 = vmatprep.subr.bf16.mxu0 0
    %2537 = vmatpush1.bf16.msra.mxu0 %v2520
    %2538 = vmatprep.subr.bf16.mxu0 0
    %2539 = vmatpush2.bf16.msra.mxu0 0
    %2540 = vmatprep.subr.bf16.mxu0 0
    %2541 = vmatpush2.bf16.msra.mxu0 0
    %2542 = vmatprep.subr.bf16.mxu0 0
    %2543 = vmatpush2.bf16.msra.mxu0 0
    %2544 = vmatprep.subr.bf16.mxu0 0
    %2545 = vmatpush2.bf16.msra.mxu0 0
    %2546 = vmatprep.subr.bf16.mxu0 0
    %2547 = vmatpush2.bf16.msra.mxu0 0
    %2548 = vmatprep.subr.bf16.mxu0 0
    %2549 = vmatpush2.bf16.msra.mxu0 0
    %2550 = vmatprep.subr.bf16.mxu0 0
    %2551 = vmatpush2.bf16.msra.mxu0 0
    %2552 = vmatprep.subr.bf16.mxu0 0
    %2553 = vmatpush2.bf16.msra.mxu0 0
    %2554 = vmatprep.mubr.bf16.mxu0 0
    %2555 = vmatmul.mubr.bf16.gmra.mxu0 %v2517
    %v2556 = vpop.f32.mrf.mxu0
    %v2557 = vadd.f32 0.0, %v2556
    %v2558 = vpop.f32.mrf.mxu0
    %v2559 = vpop.f32.mrf.mxu0
    %v2560 = vpop.f32.mrf.mxu0
    %2561 = vdwg.mxu0
    %v2562 = vpack.c.bf16 %v2557, %v2509
    %v2564 = vsel %vm386, %v2562, 0
    %v2567 = vsel %vm511, %v1804, 0
    %2569 = vmatprep.subr.bf16.mxu0 0
    %2570 = vmatpush1.bf16.msra.mxu0 0
    %2571 = vmatprep.subr.bf16.mxu0 0
    %2572 = vmatpush1.bf16.msra.mxu0 0
    %2573 = vmatprep.subr.bf16.mxu0 0
    %2574 = vmatpush1.bf16.msra.mxu0 0
    %2575 = vmatprep.subr.bf16.mxu0 0
    %2576 = vmatpush1.bf16.msra.mxu0 0
    %2577 = vmatprep.subr.bf16.mxu0 0
    %2578 = vmatpush1.bf16.msra.mxu0 0
    %2579 = vmatprep.subr.bf16.mxu0 0
    %2580 = vmatpush1.bf16.msra.mxu0 0
    %2581 = vmatprep.subr.bf16.mxu0 0
    %2582 = vmatpush1.bf16.msra.mxu0 0
    %2583 = vmatprep.subr.bf16.mxu0 0
    %2584 = vmatpush1.bf16.msra.mxu0 %v2567
    %2585 = vmatprep.subr.bf16.mxu0 0
    %2586 = vmatpush2.bf16.msra.mxu0 0
    %2587 = vmatprep.subr.bf16.mxu0 0
    %2588 = vmatpush2.bf16.msra.mxu0 0
    %2589 = vmatprep.subr.bf16.mxu0 0
    %2590 = vmatpush2.bf16.msra.mxu0 0
    %2591 = vmatprep.subr.bf16.mxu0 0
    %2592 = vmatpush2.bf16.msra.mxu0 0
    %2593 = vmatprep.subr.bf16.mxu0 0
    %2594 = vmatpush2.bf16.msra.mxu0 0
    %2595 = vmatprep.subr.bf16.mxu0 0
    %2596 = vmatpush2.bf16.msra.mxu0 0
    %2597 = vmatprep.subr.bf16.mxu0 0
    %2598 = vmatpush2.bf16.msra.mxu0 0
    %2599 = vmatprep.subr.bf16.mxu0 0
    %2600 = vmatpush2.bf16.msra.mxu0 0
    %2601 = vmatprep.mubr.bf16.mxu0 0
    %2602 = vmatmul.mubr.bf16.gmra.mxu0 %v2564
    %v2603 = vpop.f32.mrf.mxu0
    %v2604 = vadd.f32 0.0, %v2603
    %v2605 = vpop.f32.mrf.mxu0
    %v2606 = vpop.f32.mrf.mxu0
    %v2607 = vadd.f32 0.0, %v2606
    %v2608 = vpop.f32.mrf.mxu0
    %2609 = vdwg.mxu0
    %v2610 = vadd.f32 %v2336, %v2604
    %v2611 = vadd.f32 %v2339, %v2607
    %2612 = vrot.lane.b32.xlu0 %v1806, 104
    %v2613 = vpop.permute.xlu0 %2612
    %2614 = vrot.lane.b32.xlu0 %v1806, 72
    %v2615 = vpop.permute.xlu0 %2614
    %v2617 = vsel %vm386, %v2613, 0
    %v2620 = vsel %vm386, %v2615, 0
    %2622 = vmatprep.subr.bf16.mxu0 0
    %2623 = vmatpush1.bf16.xpose.msra.mxu0 0
    %2624 = vmatprep.subr.bf16.mxu0 0
    %2625 = vmatpush1.bf16.xpose.msra.mxu0 0
    %2626 = vmatprep.subr.bf16.mxu0 0
    %2627 = vmatpush1.bf16.xpose.msra.mxu0 0
    %2628 = vmatprep.subr.bf16.mxu0 0
    %2629 = vmatpush1.bf16.xpose.msra.mxu0 0
    %2630 = vmatprep.subr.bf16.mxu0 0
    %2631 = vmatpush1.bf16.xpose.msra.mxu0 0
    %2632 = vmatprep.subr.bf16.mxu0 0
    %2633 = vmatpush1.bf16.xpose.msra.mxu0 0
    %2634 = vmatprep.subr.bf16.mxu0 0
    %2635 = vmatpush1.bf16.xpose.msra.mxu0 0
    %2636 = vmatprep.subr.bf16.mxu0 0
    %2637 = vmatpush1.bf16.xpose.msra.mxu0 %v2620
    %2638 = vmatprep.subr.bf16.mxu0 0
    %2639 = vmatpush2.bf16.xpose.msra.mxu0 0
    %2640 = vmatprep.subr.bf16.mxu0 0
    %2641 = vmatpush2.bf16.xpose.msra.mxu0 0
    %2642 = vmatprep.subr.bf16.mxu0 0
    %2643 = vmatpush2.bf16.xpose.msra.mxu0 0
    %2644 = vmatprep.subr.bf16.mxu0 0
    %2645 = vmatpush2.bf16.xpose.msra.mxu0 0
    %2646 = vmatprep.subr.bf16.mxu0 0
    %2647 = vmatpush2.bf16.xpose.msra.mxu0 0
    %2648 = vmatprep.subr.bf16.mxu0 0
    %2649 = vmatpush2.bf16.xpose.msra.mxu0 0
    %2650 = vmatprep.subr.bf16.mxu0 0
    %2651 = vmatpush2.bf16.xpose.msra.mxu0 0
    %2652 = vmatprep.subr.bf16.mxu0 0
    %2653 = vmatpush2.bf16.xpose.msra.mxu0 0
    %2654 = vmatprep.mubr.bf16.mxu0 0
    %2655 = vmatmul.mubr.bf16.gmra.mxu0 %v2617
    %v2656 = vpop.f32.mrf.mxu0
    %v2657 = vadd.f32 %v263, %v2656
    %v2658 = vpop.f32.mrf.mxu0
    %v2659 = vpop.f32.mrf.mxu0
    %v2660 = vpop.f32.mrf.mxu0
    %2661 = vdwg.mxu0
    %2662 = vrot.lane.b32.xlu0 %v1807, 104
    %v2663 = vpop.permute.xlu0 %2662
    %2664 = vrot.lane.b32.xlu0 %v1807, 72
    %v2665 = vpop.permute.xlu0 %2664
    %v2667 = vsel %vm386, %v2663, 0
    %v2670 = vsel %vm386, %v2665, 0
    %2672 = vmatprep.subr.bf16.mxu0 0
    %2673 = vmatpush1.bf16.xpose.msra.mxu0 0
    %2674 = vmatprep.subr.bf16.mxu0 0
    %2675 = vmatpush1.bf16.xpose.msra.mxu0 0
    %2676 = vmatprep.subr.bf16.mxu0 0
    %2677 = vmatpush1.bf16.xpose.msra.mxu0 0
    %2678 = vmatprep.subr.bf16.mxu0 0
    %2679 = vmatpush1.bf16.xpose.msra.mxu0 0
    %2680 = vmatprep.subr.bf16.mxu0 0
    %2681 = vmatpush1.bf16.xpose.msra.mxu0 0
    %2682 = vmatprep.subr.bf16.mxu0 0
    %2683 = vmatpush1.bf16.xpose.msra.mxu0 0
    %2684 = vmatprep.subr.bf16.mxu0 0
    %2685 = vmatpush1.bf16.xpose.msra.mxu0 0
    %2686 = vmatprep.subr.bf16.mxu0 0
    %2687 = vmatpush1.bf16.xpose.msra.mxu0 %v2670
    %2688 = vmatprep.subr.bf16.mxu0 0
    %2689 = vmatpush2.bf16.xpose.msra.mxu0 0
    %2690 = vmatprep.subr.bf16.mxu0 0
    %2691 = vmatpush2.bf16.xpose.msra.mxu0 0
    %2692 = vmatprep.subr.bf16.mxu0 0
    %2693 = vmatpush2.bf16.xpose.msra.mxu0 0
    %2694 = vmatprep.subr.bf16.mxu0 0
    %2695 = vmatpush2.bf16.xpose.msra.mxu0 0
    %2696 = vmatprep.subr.bf16.mxu0 0
    %2697 = vmatpush2.bf16.xpose.msra.mxu0 0
    %2698 = vmatprep.subr.bf16.mxu0 0
    %2699 = vmatpush2.bf16.xpose.msra.mxu0 0
    %2700 = vmatprep.subr.bf16.mxu0 0
    %2701 = vmatpush2.bf16.xpose.msra.mxu0 0
    %2702 = vmatprep.subr.bf16.mxu0 0
    %2703 = vmatpush2.bf16.xpose.msra.mxu0 0
    %2704 = vmatprep.mubr.bf16.mxu0 0
    %2705 = vmatmul.mubr.bf16.gmra.mxu0 %v2667
    %v2706 = vpop.f32.mrf.mxu0
    %v2707 = vadd.f32 %v263, %v2706
    %v2708 = vpop.f32.mrf.mxu0
    %v2709 = vpop.f32.mrf.mxu0
    %v2710 = vpop.f32.mrf.mxu0
    %2711 = vdwg.mxu0
    %v2712 = vsel %vm386, %v2657, -inf
    %2713 = vmax.xlane.f32.xlu0 %v2712
    %v2714 = vpop.xlane.xlu0 %2713
    %v2715 = vsel %vm386, %v2707, -inf
    %2716 = vmax.xlane.f32.xlu0 %v2715
    %v2717 = vpop.xlane.xlu0 %2716
    %v2718 = vsub.f32 %v2657, %v2714
    %v2719 = vsub.f32 %v2707, %v2717
    %v2720 = vmul.f32 %v2718, 1.442695
    %v2721 = vpow.pop %v2720
    %v2722 = vmul.f32 %v2719, 1.442695
    %v2723 = vpow.pop %v2722
    %v2724 = vsel %vm386, %v2721, 0.0
    %2725 = vadd.xlane.f32.xlu0 %v2724
    %v2726 = vpop.xlane.xlu0 %2725
    %v2727 = vsel %vm386, %v2723, 0.0
    %2728 = vadd.xlane.f32.xlu0 %v2727
    %v2729 = vpop.xlane.xlu0 %2728
    %v2730 = vrcp.pop %v2726
    %v2731 = vrcp.pop %v2729
    %v2732 = vmul.f32 %v2721, %v2730
    %v2733 = vmul.f32 %v2723, %v2731
    %v2734 = vpack.c.bf16 %v2732, %v2732
    %v2735 = vpack.c.bf16 %v2733, %v2733
    %2736 = vrot.lane.b32.xlu0 %v1806, 40
    %v2737 = vpop.permute.xlu0 %2736
    %v2739 = vsel %vm386, %v2734, 0
    %v2742 = vsel %vm511, %v2737, 0
    %2744 = vmatprep.subr.bf16.mxu0 0
    %2745 = vmatpush1.bf16.msra.mxu0 0
    %2746 = vmatprep.subr.bf16.mxu0 0
    %2747 = vmatpush1.bf16.msra.mxu0 0
    %2748 = vmatprep.subr.bf16.mxu0 0
    %2749 = vmatpush1.bf16.msra.mxu0 0
    %2750 = vmatprep.subr.bf16.mxu0 0
    %2751 = vmatpush1.bf16.msra.mxu0 0
    %2752 = vmatprep.subr.bf16.mxu0 0
    %2753 = vmatpush1.bf16.msra.mxu0 0
    %2754 = vmatprep.subr.bf16.mxu0 0
    %2755 = vmatpush1.bf16.msra.mxu0 0
    %2756 = vmatprep.subr.bf16.mxu0 0
    %2757 = vmatpush1.bf16.msra.mxu0 0
    %2758 = vmatprep.subr.bf16.mxu0 0
    %2759 = vmatpush1.bf16.msra.mxu0 %v2742
    %2760 = vmatprep.subr.bf16.mxu0 0
    %2761 = vmatpush2.bf16.msra.mxu0 0
    %2762 = vmatprep.subr.bf16.mxu0 0
    %2763 = vmatpush2.bf16.msra.mxu0 0
    %2764 = vmatprep.subr.bf16.mxu0 0
    %2765 = vmatpush2.bf16.msra.mxu0 0
    %2766 = vmatprep.subr.bf16.mxu0 0
    %2767 = vmatpush2.bf16.msra.mxu0 0
    %2768 = vmatprep.subr.bf16.mxu0 0
    %2769 = vmatpush2.bf16.msra.mxu0 0
    %2770 = vmatprep.subr.bf16.mxu0 0
    %2771 = vmatpush2.bf16.msra.mxu0 0
    %2772 = vmatprep.subr.bf16.mxu0 0
    %2773 = vmatpush2.bf16.msra.mxu0 0
    %2774 = vmatprep.subr.bf16.mxu0 0
    %2775 = vmatpush2.bf16.msra.mxu0 0
    %2776 = vmatprep.mubr.bf16.mxu0 0
    %2777 = vmatmul.mubr.bf16.gmra.mxu0 %v2739
    %v2778 = vpop.f32.mrf.mxu0
    %v2779 = vadd.f32 0.0, %v2778
    %v2780 = vpop.f32.mrf.mxu0
    %v2781 = vpop.f32.mrf.mxu0
    %v2782 = vpop.f32.mrf.mxu0
    %2783 = vdwg.mxu0
    %2784 = vrot.lane.b32.xlu0 %v1807, 40
    %v2785 = vpop.permute.xlu0 %2784
    %v2787 = vsel %vm386, %v2735, 0
    %v2790 = vsel %vm511, %v2785, 0
    %2792 = vmatprep.subr.bf16.mxu0 0
    %2793 = vmatpush1.bf16.msra.mxu0 0
    %2794 = vmatprep.subr.bf16.mxu0 0
    %2795 = vmatpush1.bf16.msra.mxu0 0
    %2796 = vmatprep.subr.bf16.mxu0 0
    %2797 = vmatpush1.bf16.msra.mxu0 0
    %2798 = vmatprep.subr.bf16.mxu0 0
    %2799 = vmatpush1.bf16.msra.mxu0 0
    %2800 = vmatprep.subr.bf16.mxu0 0
    %2801 = vmatpush1.bf16.msra.mxu0 0
    %2802 = vmatprep.subr.bf16.mxu0 0
    %2803 = vmatpush1.bf16.msra.mxu0 0
    %2804 = vmatprep.subr.bf16.mxu0 0
    %2805 = vmatpush1.bf16.msra.mxu0 0
    %2806 = vmatprep.subr.bf16.mxu0 0
    %2807 = vmatpush1.bf16.msra.mxu0 %v2790
    %2808 = vmatprep.subr.bf16.mxu0 0
    %2809 = vmatpush2.bf16.msra.mxu0 0
    %2810 = vmatprep.subr.bf16.mxu0 0
    %2811 = vmatpush2.bf16.msra.mxu0 0
    %2812 = vmatprep.subr.bf16.mxu0 0
    %2813 = vmatpush2.bf16.msra.mxu0 0
    %2814 = vmatprep.subr.bf16.mxu0 0
    %2815 = vmatpush2.bf16.msra.mxu0 0
    %2816 = vmatprep.subr.bf16.mxu0 0
    %2817 = vmatpush2.bf16.msra.mxu0 0
    %2818 = vmatprep.subr.bf16.mxu0 0
    %2819 = vmatpush2.bf16.msra.mxu0 0
    %2820 = vmatprep.subr.bf16.mxu0 0
    %2821 = vmatpush2.bf16.msra.mxu0 0
    %2822 = vmatprep.subr.bf16.mxu0 0
    %2823 = vmatpush2.bf16.msra.mxu0 0
    %2824 = vmatprep.mubr.bf16.mxu0 0
    %2825 = vmatmul.mubr.bf16.gmra.mxu0 %v2787
    %v2826 = vpop.f32.mrf.mxu0
    %v2827 = vadd.f32 0.0, %v2826
    %v2828 = vpop.f32.mrf.mxu0
    %v2829 = vpop.f32.mrf.mxu0
    %v2830 = vpop.f32.mrf.mxu0
    %2831 = vdwg.mxu0
    %v2832 = vpack.c.bf16 %v2827, %v2779
    %v2834 = vsel %vm386, %v2832, 0
    %v2837 = vsel %vm511, %v1805, 0
    %2839 = vmatprep.subr.bf16.mxu0 0
    %2840 = vmatpush1.bf16.msra.mxu0 0
    %2841 = vmatprep.subr.bf16.mxu0 0
    %2842 = vmatpush1.bf16.msra.mxu0 0
    %2843 = vmatprep.subr.bf16.mxu0 0
    %2844 = vmatpush1.bf16.msra.mxu0 0
    %2845 = vmatprep.subr.bf16.mxu0 0
    %2846 = vmatpush1.bf16.msra.mxu0 0
    %2847 = vmatprep.subr.bf16.mxu0 0
    %2848 = vmatpush1.bf16.msra.mxu0 0
    %2849 = vmatprep.subr.bf16.mxu0 0
    %2850 = vmatpush1.bf16.msra.mxu0 0
    %2851 = vmatprep.subr.bf16.mxu0 0
    %2852 = vmatpush1.bf16.msra.mxu0 0
    %2853 = vmatprep.subr.bf16.mxu0 0
    %2854 = vmatpush1.bf16.msra.mxu0 %v2837
    %2855 = vmatprep.subr.bf16.mxu0 0
    %2856 = vmatpush2.bf16.msra.mxu0 0
    %2857 = vmatprep.subr.bf16.mxu0 0
    %2858 = vmatpush2.bf16.msra.mxu0 0
    %2859 = vmatprep.subr.bf16.mxu0 0
    %2860 = vmatpush2.bf16.msra.mxu0 0
    %2861 = vmatprep.subr.bf16.mxu0 0
    %2862 = vmatpush2.bf16.msra.mxu0 0
    %2863 = vmatprep.subr.bf16.mxu0 0
    %2864 = vmatpush2.bf16.msra.mxu0 0
    %2865 = vmatprep.subr.bf16.mxu0 0
    %2866 = vmatpush2.bf16.msra.mxu0 0
    %2867 = vmatprep.subr.bf16.mxu0 0
    %2868 = vmatpush2.bf16.msra.mxu0 0
    %2869 = vmatprep.subr.bf16.mxu0 0
    %2870 = vmatpush2.bf16.msra.mxu0 0
    %2871 = vmatprep.mubr.bf16.mxu0 0
    %2872 = vmatmul.mubr.bf16.gmra.mxu0 %v2834
    %v2873 = vpop.f32.mrf.mxu0
    %v2874 = vadd.f32 0.0, %v2873
    %v2875 = vpop.f32.mrf.mxu0
    %v2876 = vpop.f32.mrf.mxu0
    %v2877 = vadd.f32 0.0, %v2876
    %v2878 = vpop.f32.mrf.mxu0
    %2879 = vdwg.mxu0
    %v2880 = vadd.f32 %v2610, %v2874
    %v2881 = vadd.f32 %v2611, %v2877
    %s2882 = scalar_lea.vmem %s8, 1
    %v2883 = vld [vmem:[%s2882] sm:$0x1]
    %v2885 = vlaneseq
    %v2886 = vshrl.u32 %v2885, 7
    %v2887 = vsub.s32 0, %v2886
    %v2888 = vrot.slane %v2883, %v2887
    %v2890 = vadd.f32 %v2880, %v2888
    %v2891 = vadd.f32 %v2881, %v2888
    %v2892 = vadd.f32 %v2890, %v1683
    %v2893 = vadd.f32 %v2891, %v1684
    %s2894 = scalar_lea.vmem %s9, 2
    %v2895 = vld [vmem:[%s2894] sm:$0x3]
    %v2896 = vsel %vm214, %v2892, 0.0
    %2897 = vadd.xlane.f32.xlu0 %v2896
    %v2898 = vpop.xlane.xlu0 %2897
    %v2899 = vsel %vm214, %v2893, 0.0
    %2900 = vadd.xlane.f32.xlu0 %v2899
    %v2901 = vpop.xlane.xlu0 %2900
    %v2902 = vmul.f32 %v2898, %v221
    %v2903 = vmul.f32 %v2901, %v221
    %v2904 = vmul.f32 %v2892, %v2892
    %v2905 = vmul.f32 %v2893, %v2893
    %v2906 = vsel %vm214, %v2904, 0.0
    %2907 = vadd.xlane.f32.xlu0 %v2906
    %v2908 = vpop.xlane.xlu0 %2907
    %v2909 = vsel %vm214, %v2905, 0.0
    %2910 = vadd.xlane.f32.xlu0 %v2909
    %v2911 = vpop.xlane.xlu0 %2910
    %v2912 = vmul.f32 %v2908, %v221
    %v2913 = vmul.f32 %v2911, %v221
    %v2914 = vmul.f32 %v2902, %v2902
    %v2915 = vmul.f32 %v2903, %v2903
    %v2916 = vsub.f32 %v2912, %v2914
    %v2917 = vsub.f32 %v2913, %v2915
    %v2918 = vmax.f32 %v2916, 0.0
    %v2919 = vmax.f32 %v2917, 0.0
    %v2920 = vsub.f32 %v2892, %v2902
    %v2921 = vsub.f32 %v2893, %v2903
    %v2922 = vadd.f32 %v2918, 1e-05
    %v2923 = vadd.f32 %v2919, 1e-05
    %v2924 = vrsqrt.pop %v2922
    %v2925 = vrsqrt.pop %v2923
    %v2926 = vmul.f32 %v2920, %v2924
    %v2927 = vmul.f32 %v2921, %v2925
    %v2928 = vlaneseq
    %v2929 = vshrl.u32 %v2928, 7
    %v2930 = vsub.s32 0, %v2929
    %v2931 = vrot.slane %v2895, %v2930
    %v2932 = vmul.f32 %v2926, %v2931
    %v2933 = vmul.f32 %v2927, %v2931
    %v2934 = vlaneseq
    %v2935 = vshrl.u32 %v2934, 7
    %v2936 = vsub.s32 1, %v2935
    %v2937 = vrot.slane %v2895, %v2936
    %v2938 = vadd.f32 %v2932, %v2937
    %v2939 = vadd.f32 %v2933, %v2937
    %s2940 = scalar_lea.vmem %s10, 16
    %v2941 = vld [vmem:[%s2940] sm:$0xf]
    %v2942 = vld [vmem:[%s2940 + $0x4] sm:$0xf]
    %v2943 = vld [vmem:[%s2940 + $0x8] sm:$0xf]
    %v2944 = vld [vmem:[%s2940 + $0xc] sm:$0xf]
    %s2945 = scalar_lea.vmem %s11, 1
    %v2946 = vld [vmem:[%s2945] sm:$0x1]
    %v2947 = vpack.c.bf16 %v2939, %v2938
    %v2949 = vlaneseq
    %v2950 = vshrl.u32 %v2949, 7
    %v2951 = vsub.s32 0, %v2950
    %v2952 = vrot.slane %v2946, %v2951
    %v2958 = vunpack.c.l.b16 %v2941
    %v2959 = vunpack.c.l.b16 %v2942
    %v2960 = vunpack.c.l.b16 %v2943
    %v2961 = vunpack.c.l.b16 %v2944
    %v2962 = vpack.c.b16 %v2959, %v2958
    %v2963 = vpack.c.b16 %v2961, %v2960
    %v2967 = vsel %vm214, %v2947, 0
    %2969 = vmatprep.subr.bf16.mxu0 0
    %2970 = vmatpush1.bf16.msra.mxu0 0
    %2971 = vmatprep.subr.bf16.mxu0 0
    %2972 = vmatpush1.bf16.msra.mxu0 0
    %2973 = vmatprep.subr.bf16.mxu0 0
    %2974 = vmatpush1.bf16.msra.mxu0 0
    %2975 = vmatprep.subr.bf16.mxu0 0
    %2976 = vmatpush1.bf16.msra.mxu0 0
    %2977 = vmatprep.subr.bf16.mxu0 0
    %2978 = vmatpush1.bf16.msra.mxu0 0
    %2979 = vmatprep.subr.bf16.mxu0 0
    %2980 = vmatpush1.bf16.msra.mxu0 0
    %2981 = vmatprep.subr.bf16.mxu0 0
    %2982 = vmatpush1.bf16.msra.mxu0 %v2963
    %2983 = vmatprep.subr.bf16.mxu0 0
    %2984 = vmatpush1.bf16.msra.mxu0 %v2962
    %2985 = vmatprep.subr.bf16.mxu0 0
    %2986 = vmatpush2.bf16.msra.mxu0 0
    %2987 = vmatprep.subr.bf16.mxu0 0
    %2988 = vmatpush2.bf16.msra.mxu0 0
    %2989 = vmatprep.subr.bf16.mxu0 0
    %2990 = vmatpush2.bf16.msra.mxu0 0
    %2991 = vmatprep.subr.bf16.mxu0 0
    %2992 = vmatpush2.bf16.msra.mxu0 0
    %2993 = vmatprep.subr.bf16.mxu0 0
    %2994 = vmatpush2.bf16.msra.mxu0 0
    %2995 = vmatprep.subr.bf16.mxu0 0
    %2996 = vmatpush2.bf16.msra.mxu0 0
    %2997 = vmatprep.subr.bf16.mxu0 0
    %2998 = vmatpush2.bf16.msra.mxu0 0
    %2999 = vmatprep.subr.bf16.mxu0 0
    %3000 = vmatpush2.bf16.msra.mxu0 0
    %3001 = vmatprep.mubr.bf16.mxu0 0
    %3002 = vmatmul.mubr.bf16.gmra.mxu0 %v2967
    %v3003 = vpop.f32.mrf.mxu0
    %v3004 = vadd.f32 %v2952, %v3003
    %v3005 = vpop.f32.mrf.mxu0
    %v3006 = vpop.f32.mrf.mxu0
    %v3007 = vadd.f32 %v2952, %v3006
    %v3008 = vpop.f32.mrf.mxu0
    %3009 = vdwg.mxu0
    %v3010 = vmul.f32 %v3004, 1.702
    %v3011 = vmul.f32 %v3007, 1.702
    %v3012 = vxor.u32 %v3010, 2147483648
    %v3013 = vxor.u32 %v3011, 2147483648
    %v3014 = vmul.f32 %v3012, 1.442695
    %v3015 = vpow.pop %v3014
    %v3016 = vmul.f32 %v3013, 1.442695
    %v3017 = vpow.pop %v3016
    %v3018 = vadd.f32 %v3015, 1.0
    %v3019 = vadd.f32 %v3017, 1.0
    %v3020 = vrcp.pop %v3018
    %v3021 = vmul.f32 1.0, %v3020
    %v3022 = vrcp.pop %v3019
    %v3023 = vmul.f32 1.0, %v3022
    %v3024 = vmul.f32 %v3004, %v3021
    %v3025 = vmul.f32 %v3007, %v3023
    %s3026 = scalar_lea.vmem %s12, 32
    %v3027 = vld [vmem:[%s3026] sm:$0xf]
    %v3028 = vld [vmem:[%s3026 + $0x4] sm:$0xf]
    %v3029 = vld [vmem:[%s3026 + $0x8] sm:$0xf]
    %v3030 = vld [vmem:[%s3026 + $0xc] sm:$0xf]
    %v3031 = vld [vmem:[%s3026 + $0x10] sm:$0xf]
    %v3032 = vld [vmem:[%s3026 + $0x14] sm:$0xf]
    %v3033 = vld [vmem:[%s3026 + $0x18] sm:$0xf]
    %v3034 = vld [vmem:[%s3026 + $0x1c] sm:$0xf]
    %s3035 = scalar_lea.vmem %s13, 1
    %v3036 = vld [vmem:[%s3035] sm:$0x1]
    %v3037 = vpack.c.bf16 %v3025, %v3024
    %v3039 = vlaneseq
    %v3040 = vshrl.u32 %v3039, 7
    %v3041 = vsub.s32 0, %v3040
    %v3042 = vrot.slane %v3036, %v3041
    %v3052 = vunpack.c.l.b16 %v3027
    %v3053 = vunpack.c.l.b16 %v3028
    %v3054 = vunpack.c.l.b16 %v3029
    %v3055 = vunpack.c.l.b16 %v3030
    %v3056 = vunpack.c.l.b16 %v3031
    %v3057 = vunpack.c.l.b16 %v3032
    %v3058 = vunpack.c.l.b16 %v3033
    %v3059 = vunpack.c.l.b16 %v3034
    %v3060 = vpack.c.b16 %v3053, %v3052
    %v3061 = vpack.c.b16 %v3055, %v3054
    %v3062 = vpack.c.b16 %v3057, %v3056
    %v3063 = vpack.c.b16 %v3059, %v3058
    %v3069 = vsel %vm167, %v3037, 0
    %3071 = vmatprep.subr.bf16.mxu0 0
    %3072 = vmatpush1.bf16.msra.mxu0 0
    %3073 = vmatprep.subr.bf16.mxu0 0
    %3074 = vmatpush1.bf16.msra.mxu0 0
    %3075 = vmatprep.subr.bf16.mxu0 0
    %3076 = vmatpush1.bf16.msra.mxu0 0
    %3077 = vmatprep.subr.bf16.mxu0 0
    %3078 = vmatpush1.bf16.msra.mxu0 0
    %3079 = vmatprep.subr.bf16.mxu0 0
    %3080 = vmatpush1.bf16.msra.mxu0 %v3063
    %3081 = vmatprep.subr.bf16.mxu0 0
    %3082 = vmatpush1.bf16.msra.mxu0 %v3062
    %3083 = vmatprep.subr.bf16.mxu0 0
    %3084 = vmatpush1.bf16.msra.mxu0 %v3061
    %3085 = vmatprep.subr.bf16.mxu0 0
    %3086 = vmatpush1.bf16.msra.mxu0 %v3060
    %3087 = vmatprep.subr.bf16.mxu0 0
    %3088 = vmatpush2.bf16.msra.mxu0 0
    %3089 = vmatprep.subr.bf16.mxu0 0
    %3090 = vmatpush2.bf16.msra.mxu0 0
    %3091 = vmatprep.subr.bf16.mxu0 0
    %3092 = vmatpush2.bf16.msra.mxu0 0
    %3093 = vmatprep.subr.bf16.mxu0 0
    %3094 = vmatpush2.bf16.msra.mxu0 0
    %3095 = vmatprep.subr.bf16.mxu0 0
    %3096 = vmatpush2.bf16.msra.mxu0 0
    %3097 = vmatprep.subr.bf16.mxu0 0
    %3098 = vmatpush2.bf16.msra.mxu0 0
    %3099 = vmatprep.subr.bf16.mxu0 0
    %3100 = vmatpush2.bf16.msra.mxu0 0
    %3101 = vmatprep.subr.bf16.mxu0 0
    %3102 = vmatpush2.bf16.msra.mxu0 0
    %3103 = vmatprep.mubr.bf16.mxu0 0
    %3104 = vmatmul.mubr.bf16.gmra.mxu0 %v3069
    %v3105 = vpop.f32.mrf.mxu0
    %v3106 = vadd.f32 %v3042, %v3105
    %v3107 = vpop.f32.mrf.mxu0
    %v3108 = vpop.f32.mrf.mxu0
    %v3109 = vadd.f32 %v3042, %v3108
    %v3110 = vpop.f32.mrf.mxu0
    %3111 = vdwg.mxu0
    %v3112 = vadd.f32 %v3106, %v2892
    %v3113 = vadd.f32 %v3109, %v2893
    %v3114 = vld [vmem:[%s14] sm:$0x1]
    %v3115 = vld [vmem:[%s14 + $0x1] sm:$0x1]
    %v3118 = vrot.slane %v3113, 7
    %vm3119 = vcmask 1041409
    %v3120 = vsel %vm3119, %v3118, %v3112
    %vm3122 = vcmask 254976
    %v3123 = vsel %vm3122, %v3120, 0.0
    %3124 = vadd.xlane.f32.xlu0 %v3123
    %v3125 = vpop.xlane.xlu0 %3124
    %v3126 = vmul.f32 %v3125, %v221
    %v3127 = vmul.f32 %v3112, %v3112
    %v3128 = vmul.f32 %v3113, %v3113
    %v3131 = vrot.slane %v3128, 7
    %v3132 = vsel %vm3119, %v3131, %v3127
    %v3134 = vsel %vm3122, %v3132, 0.0
    %3135 = vadd.xlane.f32.xlu0 %v3134
    %v3136 = vpop.xlane.xlu0 %3135
    %v3137 = vmul.f32 %v3136, %v221
    %v3138 = vmul.f32 %v3126, %v3126
    %v3139 = vsub.f32 %v3137, %v3138
    %v3140 = vmax.f32 %v3139, 0.0
    %v3142 = vrot.slane %v3126, 1
    %v3145 = vsub.f32 %v3112, %v3126
    %v3146 = vsub.f32 %v3113, %v3142
    %v3147 = vadd.f32 %v3140, 1e-05
    %v3148 = vrsqrt.pop %v3147
    %v3150 = vrot.slane %v3148, 1
    %v3153 = vmul.f32 %v3145, %v3148
    %v3154 = vmul.f32 %v3146, %v3150
    %v3155 = vlaneseq
    %v3156 = vshrl.u32 %v3155, 7
    %v3157 = vsub.s32 0, %v3156
    %v3158 = vrot.slane %v3114, %v3157
    %v3159 = vmul.f32 %v3153, %v3158
    %v3160 = vmul.f32 %v3154, %v3158
    %v3161 = vlaneseq
    %v3162 = vshrl.u32 %v3161, 7
    %v3163 = vsub.s32 0, %v3162
    %v3164 = vrot.slane %v3115, %v3163
    %v3165 = vadd.f32 %v3159, %v3164
    %v3166 = vadd.f32 %v3160, %v3164
    %v3167 = vpack.c.bf16 %v3165, %v3165
    %v3168 = vpack.c.bf16 %v3166, %v3166
    %v3169 = vld [vmem:[%s15] sm:$0xf]
    %v3170 = vld [vmem:[%s15 + $0x4] sm:$0xf]
    %v3171 = vld [vmem:[%s15 + $0x8] sm:$0xf]
    %v3172 = vld [vmem:[%s15 + $0xc] sm:$0xf]
    %v3173 = vld [vmem:[%s16] sm:$0x1]
    %v3175 = vlaneseq
    %v3176 = vshrl.u32 %v3175, 7
    %v3177 = vsub.s32 0, %v3176
    %v3178 = vrot.slane %v3173, %v3177
    %v3182 = vunpack.c.l.b16 %v3167
    %v3183 = vunpack.c.l.b16 %v3168
    %v3184 = vrot.slane %v3183, 7
    %v3185 = vsel %vm3119, %v3184, %v3182
    %v3186 = vpack.c.b16 %v3185, %v3185
    %v3191 = vunpack.c.l.b16 %v3169
    %v3192 = vunpack.c.l.b16 %v3170
    %v3193 = vunpack.c.l.b16 %v3171
    %v3194 = vunpack.c.l.b16 %v3172
    %v3195 = vpack.c.b16 %v3192, %v3191
    %v3196 = vpack.c.b16 %v3194, %v3193
    %v3200 = vsel %vm214, %v3186, 0
    %3202 = vmatprep.subr.bf16.mxu0 0
    %3203 = vmatpush1.bf16.msra.mxu0 0
    %3204 = vmatprep.subr.bf16.mxu0 0
    %3205 = vmatpush1.bf16.msra.mxu0 0
    %3206 = vmatprep.subr.bf16.mxu0 0
    %3207 = vmatpush1.bf16.msra.mxu0 0
    %3208 = vmatprep.subr.bf16.mxu0 0
    %3209 = vmatpush1.bf16.msra.mxu0 0
    %3210 = vmatprep.subr.bf16.mxu0 0
    %3211 = vmatpush1.bf16.msra.mxu0 0
    %3212 = vmatprep.subr.bf16.mxu0 0
    %3213 = vmatpush1.bf16.msra.mxu0 0
    %3214 = vmatprep.subr.bf16.mxu0 0
    %3215 = vmatpush1.bf16.msra.mxu0 %v3196
    %3216 = vmatprep.subr.bf16.mxu0 0
    %3217 = vmatpush1.bf16.msra.mxu0 %v3195
    %3218 = vmatprep.subr.bf16.mxu0 0
    %3219 = vmatpush2.bf16.msra.mxu0 0
    %3220 = vmatprep.subr.bf16.mxu0 0
    %3221 = vmatpush2.bf16.msra.mxu0 0
    %3222 = vmatprep.subr.bf16.mxu0 0
    %3223 = vmatpush2.bf16.msra.mxu0 0
    %3224 = vmatprep.subr.bf16.mxu0 0
    %3225 = vmatpush2.bf16.msra.mxu0 0
    %3226 = vmatprep.subr.bf16.mxu0 0
    %3227 = vmatpush2.bf16.msra.mxu0 0
    %3228 = vmatprep.subr.bf16.mxu0 0
    %3229 = vmatpush2.bf16.msra.mxu0 0
    %3230 = vmatprep.subr.bf16.mxu0 0
    %3231 = vmatpush2.bf16.msra.mxu0 0
    %3232 = vmatprep.subr.bf16.mxu0 0
    %3233 = vmatpush2.bf16.msra.mxu0 0
    %3234 = vmatprep.mubr.bf16.mxu0 0
    %3235 = vmatmul.mubr.bf16.gmra.mxu0 %v3200
    %v3236 = vpop.f32.mrf.mxu0
    %v3237 = vadd.f32 %v3178, %v3236
    %v3238 = vpop.f32.mrf.mxu0
    %v3239 = vpop.f32.mrf.mxu0
    %v3240 = vpop.f32.mrf.mxu0
    %3241 = vdwg.mxu0
    %vm3242 = vcmask 123904
    %3243 = vst.msk [vmem:[#allocation2] sm:$0x3] %vm3242, %v3237
    // Predicated region
    $region70: #{i2v_encoder_forward.1} parent=1 // pred_check
      _
    $region71: #{i2v_encoder_forward.1} parent=1 // pred_check_branch
      %3245 = sbr.rel (0) target = $region73
    $region72: #{i2v_encoder_forward.1} parent=1 // pred_region
      %s3247 = ssub.s32 32, 32
      %3248 = vsyncadd [#allocation3], %s3247
      %s3250 = sshll.u32 [#allocation2], 4
      %s3251 = int_to_ptr.vmem [resolvable:$true] %s3250
      %3253 = dma.vmem_to_hbm [thread:$0]  %s3251, 32, %s17, [#allocation3]
    $region73: #{i2v_encoder_forward.1} parent=1 // pred_fallthru
      _
    // Predicated region
    $region74: #{i2v_encoder_forward.1} parent=1 // pred_check
      _
    $region75: #{i2v_encoder_forward.1} parent=1 // pred_check_branch
      %3255 = sbr.rel (0) target = $region77
    $region76: #{i2v_encoder_forward.1} parent=1 // pred_region
      %3256 = dma.done [#allocation3], 32
    $region77: #{i2v_encoder_forward.1} parent=1 // pred_fallthru
      _
    %3257 = vsyncpa [#allocation3], 1

</llo_original>
